<compile_context>
chip_gen: v7x
topology: tpu7x:2x2x1
jax: 0.10.0
libtpu: 0.0.40
codegen_flags: <defaults>
</compile_context>

<pallas_src>
import jax
import jax.numpy as jnp
from jax.experimental import pallas as pl
from jax.experimental.pallas import tpu as pltpu

_BN_EPS = 1e-5


def _mlp_kernel(x_ref,
                w1_ref, b1_ref,
                w2_ref, b2_ref,
                w3_ref, b3_ref,
                w4t_ref, b4_ref,
                o_ref):
    """Fused fc1..fc3 (BN folded into W/b) + ReLU, then fc4 + sigmoid.

    The last matmul is computed transposed so the batch tile sits on the lane
    axis of the output block (lane-dense stores for small output_size).
    """
    x = x_ref[...]

    h = jnp.dot(x, w1_ref[...], preferred_element_type=jnp.float32) + b1_ref[...]
    h = jnp.maximum(h, 0.0)

    h = jnp.dot(h, w2_ref[...], preferred_element_type=jnp.float32) + b2_ref[...]
    h = jnp.maximum(h, 0.0)

    h = jnp.dot(h, w3_ref[...], preferred_element_type=jnp.float32) + b3_ref[...]
    h = jnp.maximum(h, 0.0)

    # (D_out, H) contracted with (tile, H) on H -> (D_out, tile).
    logits_t = jax.lax.dot_general(
        w4t_ref[...], h,
        dimension_numbers=(((1,), (1,)), ((), ())),
        preferred_element_type=jnp.float32)
    o_ref[...] = jax.nn.sigmoid(logits_t + b4_ref[...]).astype(o_ref.dtype)


def _round_up(x, m):
    return -(-x // m) * m


def _pick_batch_tile(batch):
    # Lane-dense (transposed) output requires tile % 128 == 0. Prefer
    # 256-multiples (v6e/v7x MXU rows) and >= 2 grid steps when batch allows
    # (v7x megacore). Cap the tile so VMEM stays modest.
    if batch <= 128:
        return 128
    if batch <= 256:
        return 256
    half = -(-batch // 2)
    return min(_round_up(half, 256), 2048)


@jax.jit
def mynet_forward(x, params):
    """x: [B, input_size] f32. params: BN-folded kernel params (see fuse_params)."""
    B, D_in = x.shape
    H = params["w1"].shape[1]
    D_out = params["w4t"].shape[0]

    tile = _pick_batch_tile(B)
    B_pad = _round_up(B, tile)
    if B_pad != B:
        x = jnp.pad(x, ((0, B_pad - B), (0, 0)))

    b1 = params["b1"].reshape(1, H)
    b2 = params["b2"].reshape(1, H)
    b3 = params["b3"].reshape(1, H)
    b4 = params["b4"].reshape(D_out, 1)

    def const2d(shape):
        # Fully-resident parameter block (constant index map).
        return pl.BlockSpec(shape, lambda i: (0, 0))

    in_specs = [
        pl.BlockSpec((tile, D_in), lambda i: (i, 0)),   # x tile (batch-parallel)
        const2d((D_in, H)), const2d((1, H)),            # fc1 (BN1 folded)
        const2d((H, H)),    const2d((1, H)),            # fc2 (BN2 folded)
        const2d((H, H)),    const2d((1, H)),            # fc3 (BN3 folded)
        const2d((D_out, H)), const2d((D_out, 1)),       # fc4 ([out, in] layout)
    ]
    out_spec = pl.BlockSpec((D_out, tile), lambda i: (0, i))

    out_t = pl.pallas_call(
        _mlp_kernel,
        out_shape=jax.ShapeDtypeStruct((D_out, B_pad), jnp.float32),
        grid_spec=pltpu.PrefetchScalarGridSpec(
            num_scalar_prefetch=0,
            grid=(B_pad // tile,),
            in_specs=in_specs,
            out_specs=out_spec,
        ),
        compiler_params=pltpu.CompilerParams(
            dimension_semantics=("parallel",)),
    )(x, params["w1"], b1, params["w2"], b2, params["w3"], b3,
      params["w4t"], b4)

    # Back to PyTorch layout [B, D_out], drop padded rows.
    return out_t.T[:B]


def init_raw_params(key, input_size, hidden_size, output_size):
    """PyTorch-convention parameters with independent RNG keys per tensor."""
    ks = iter(jax.random.split(key, 20))

    def linear(fan_in, fan_out):
        bound = 1.0 / (fan_in ** 0.5)
        w = jax.random.uniform(next(ks), (fan_out, fan_in), jnp.float32, -bound, bound)
        b = jax.random.uniform(next(ks), (fan_out,), jnp.float32, -bound, bound)
        return w, b

    def bn(n):
        gamma = 1.0 + 0.1 * jax.random.normal(next(ks), (n,), jnp.float32)
        beta = 0.1 * jax.random.normal(next(ks), (n,), jnp.float32)
        mean = 0.1 * jax.random.normal(next(ks), (n,), jnp.float32)
        var = 1.0 + 0.1 * jax.random.uniform(next(ks), (n,), jnp.float32)
        return gamma, beta, mean, var

    raw = {}
    raw["w1"], raw["b1"] = linear(input_size, hidden_size)
    raw["g1"], raw["be1"], raw["m1"], raw["v1"] = bn(hidden_size)
    raw["w2"], raw["b2"] = linear(hidden_size, hidden_size)
    raw["g2"], raw["be2"], raw["m2"], raw["v2"] = bn(hidden_size)
    raw["w3"], raw["b3"] = linear(hidden_size, hidden_size)
    raw["g3"], raw["be3"], raw["m3"], raw["v3"] = bn(hidden_size)
    raw["w4"], raw["b4"] = linear(hidden_size, output_size)
    return raw


def fuse_params(raw):
    """Fold eval-mode BatchNorm + bias into the Linear weights for the kernel."""
    def fold(w, b, gamma, beta, mean, var):
        scale = gamma / jnp.sqrt(var + _BN_EPS)
        w_f = w.T * scale[None, :]            # [in, out], BN scale folded in
        b_f = (b - mean) * scale + beta       # [out]
        return w_f, b_f

    w1, b1 = fold(raw["w1"], raw["b1"], raw["g1"], raw["be1"], raw["m1"], raw["v1"])
    w2, b2 = fold(raw["w2"], raw["b2"], raw["g2"], raw["be2"], raw["m2"], raw["v2"])
    w3, b3 = fold(raw["w3"], raw["b3"], raw["g3"], raw["be3"], raw["m3"], raw["v3"])
    return dict(w1=w1, b1=b1, w2=w2, b2=b2, w3=w3, b3=b3,
                w4t=raw["w4"], b4=raw["b4"])   # fc4 kept as [out, in] for transposed matmul


def reference_forward(x, raw):
    """Pure-JAX eval-mode reference (dropout = identity), unfused BN."""
    def bn(h, g, be, m, v):
        return (h - m) / jnp.sqrt(v + _BN_EPS) * g + be

    h = x @ raw["w1"].T + raw["b1"]
    h = jnp.maximum(bn(h, raw["g1"], raw["be1"], raw["m1"], raw["v1"]), 0.0)
    h = h @ raw["w2"].T + raw["b2"]
    h = jnp.maximum(bn(h, raw["g2"], raw["be2"], raw["m2"], raw["v2"]), 0.0)
    h = h @ raw["w3"].T + raw["b3"]
    h = jnp.maximum(bn(h, raw["g3"], raw["be3"], raw["m3"], raw["v3"]), 0.0)
    h = h @ raw["w4"].T + raw["b4"]
    return jax.nn.sigmoid(h)


if __name__ == "__main__":
    # Keep the pure-JAX reference matmuls at full f32 so it matches the
    # kernel's preferred_element_type=f32 MXU path.
    jax.config.update("jax_default_matmul_precision", "highest")

    input_size, hidden_size, output_size = 32, 64, 16
    batch = 8

    key = jax.random.PRNGKey(0)
    kx, kp = jax.random.split(key)
    x = jax.random.normal(kx, (batch, input_size), jnp.float32)

    raw = init_raw_params(kp, input_size, hidden_size, output_size)
    params = fuse_params(raw)

    out = mynet_forward(x, params)
    out = jax.block_until_ready(out)

    ref = reference_forward(x, raw)
    assert out.shape == (batch, output_size)
    assert jnp.allclose(out, ref, atol=1e-4, rtol=1e-4), "mismatch vs reference"

    print("KERNEL_OK")
</pallas_src>

<mosaic_0001>
module attributes {stable_mosaic.version = 11 : i64} {
  func.func @_mlp_kernel(%arg0: i32, %arg1: memref<128x32xf32, #tpu.memory_space<vmem>>, %arg2: memref<32x64xf32, #tpu.memory_space<vmem>>, %arg3: memref<1x64xf32, #tpu.memory_space<vmem>>, %arg4: memref<64x64xf32, #tpu.memory_space<vmem>>, %arg5: memref<1x64xf32, #tpu.memory_space<vmem>>, %arg6: memref<64x64xf32, #tpu.memory_space<vmem>>, %arg7: memref<1x64xf32, #tpu.memory_space<vmem>>, %arg8: memref<16x64xf32, #tpu.memory_space<vmem>>, %arg9: memref<16x1xf32, #tpu.memory_space<vmem>>, %arg10: memref<16x128xf32, #tpu.memory_space<vmem>>) attributes {dimension_semantics = [#tpu.dimension_semantics<parallel>], iteration_bounds = array<i64: 1>, scalar_prefetch = 0 : i64, scratch_operands = 0 : i64, tpu.core_type = #tpu.core_type<tc>, window_params = [{transform_indices = @transform_0, window_bounds = array<i64: 128, 32>}, {pipeline_mode = #tpu.pipeline_mode<synchronous>, transform_indices = @transform_1, window_bounds = array<i64: 32, 64>}, {pipeline_mode = #tpu.pipeline_mode<synchronous>, transform_indices = @transform_2, window_bounds = array<i64: 1, 64>}, {pipeline_mode = #tpu.pipeline_mode<synchronous>, transform_indices = @transform_3, window_bounds = array<i64: 64, 64>}, {pipeline_mode = #tpu.pipeline_mode<synchronous>, transform_indices = @transform_4, window_bounds = array<i64: 1, 64>}, {pipeline_mode = #tpu.pipeline_mode<synchronous>, transform_indices = @transform_5, window_bounds = array<i64: 64, 64>}, {pipeline_mode = #tpu.pipeline_mode<synchronous>, transform_indices = @transform_6, window_bounds = array<i64: 1, 64>}, {pipeline_mode = #tpu.pipeline_mode<synchronous>, transform_indices = @transform_7, window_bounds = array<i64: 16, 64>}, {pipeline_mode = #tpu.pipeline_mode<synchronous>, transform_indices = @transform_8, window_bounds = array<i64: 16, 1>}, {transform_indices = @transform_9, window_bounds = array<i64: 16, 128>}]} {
    %c0 = arith.constant 0 : index
    %c0_0 = arith.constant 0 : index
    %0 = vector.load %arg1[%c0, %c0_0] : memref<128x32xf32, #tpu.memory_space<vmem>>, vector<128x32xf32>
    %c0_1 = arith.constant 0 : index
    %c0_2 = arith.constant 0 : index
    %1 = vector.load %arg2[%c0_1, %c0_2] : memref<32x64xf32, #tpu.memory_space<vmem>>, vector<32x64xf32>
    %cst = arith.constant dense<0.000000e+00> : vector<128x64xf32>
    %2 = tpu.matmul %0, %1, %cst {dimension_numbers = #tpu.dot_dimension_numbers<[1], [0], [0], [1], [0, 0, 1, 1], [], []>, precision = #tpu.contract_precision<fp32>} : vector<128x32xf32>, vector<32x64xf32>, vector<128x64xf32> -> vector<128x64xf32>
    %c0_3 = arith.constant 0 : index
    %c0_4 = arith.constant 0 : index
    %3 = vector.load %arg3[%c0_3, %c0_4] : memref<1x64xf32, #tpu.memory_space<vmem>>, vector<1x64xf32>
    %4 = vector.broadcast %3 : vector<1x64xf32> to vector<128x64xf32>
    %5 = arith.addf %2, %4 : vector<128x64xf32>
    %cst_5 = arith.constant 0.000000e+00 : f32
    %6 = vector.broadcast %cst_5 : f32 to vector<128x64xf32>
    %7 = arith.maximumf %5, %6 : vector<128x64xf32>
    %c0_6 = arith.constant 0 : index
    %c0_7 = arith.constant 0 : index
    %8 = vector.load %arg4[%c0_6, %c0_7] : memref<64x64xf32, #tpu.memory_space<vmem>>, vector<64x64xf32>
    %cst_8 = arith.constant dense<0.000000e+00> : vector<128x64xf32>
    %9 = tpu.matmul %7, %8, %cst_8 {dimension_numbers = #tpu.dot_dimension_numbers<[1], [0], [0], [1], [0, 0, 1, 1], [], []>, precision = #tpu.contract_precision<fp32>} : vector<128x64xf32>, vector<64x64xf32>, vector<128x64xf32> -> vector<128x64xf32>
    %c0_9 = arith.constant 0 : index
    %c0_10 = arith.constant 0 : index
    %10 = vector.load %arg5[%c0_9, %c0_10] : memref<1x64xf32, #tpu.memory_space<vmem>>, vector<1x64xf32>
    %11 = vector.broadcast %10 : vector<1x64xf32> to vector<128x64xf32>
    %12 = arith.addf %9, %11 : vector<128x64xf32>
    %cst_11 = arith.constant 0.000000e+00 : f32
    %13 = vector.broadcast %cst_11 : f32 to vector<128x64xf32>
    %14 = arith.maximumf %12, %13 : vector<128x64xf32>
    %c0_12 = arith.constant 0 : index
    %c0_13 = arith.constant 0 : index
    %15 = vector.load %arg6[%c0_12, %c0_13] : memref<64x64xf32, #tpu.memory_space<vmem>>, vector<64x64xf32>
    %cst_14 = arith.constant dense<0.000000e+00> : vector<128x64xf32>
    %16 = tpu.matmul %14, %15, %cst_14 {dimension_numbers = #tpu.dot_dimension_numbers<[1], [0], [0], [1], [0, 0, 1, 1], [], []>, precision = #tpu.contract_precision<fp32>} : vector<128x64xf32>, vector<64x64xf32>, vector<128x64xf32> -> vector<128x64xf32>
    %c0_15 = arith.constant 0 : index
    %c0_16 = arith.constant 0 : index
    %17 = vector.load %arg7[%c0_15, %c0_16] : memref<1x64xf32, #tpu.memory_space<vmem>>, vector<1x64xf32>
    %18 = vector.broadcast %17 : vector<1x64xf32> to vector<128x64xf32>
    %19 = arith.addf %16, %18 : vector<128x64xf32>
    %cst_17 = arith.constant 0.000000e+00 : f32
    %20 = vector.broadcast %cst_17 : f32 to vector<128x64xf32>
    %21 = arith.maximumf %19, %20 : vector<128x64xf32>
    %c0_18 = arith.constant 0 : index
    %c0_19 = arith.constant 0 : index
    %22 = vector.load %arg8[%c0_18, %c0_19] : memref<16x64xf32, #tpu.memory_space<vmem>>, vector<16x64xf32>
    %cst_20 = arith.constant dense<0.000000e+00> : vector<16x128xf32>
    %23 = tpu.matmul %22, %21, %cst_20 {dimension_numbers = #tpu.dot_dimension_numbers<[1], [1], [0], [0], [0, 0, 1, 0], [], []>, precision = #tpu.contract_precision<fp32>} : vector<16x64xf32>, vector<128x64xf32>, vector<16x128xf32> -> vector<16x128xf32>
    %c0_21 = arith.constant 0 : index
    %c0_22 = arith.constant 0 : index
    %24 = vector.load %arg9[%c0_21, %c0_22] : memref<16x1xf32, #tpu.memory_space<vmem>>, vector<16x1xf32>
    %25 = vector.broadcast %24 : vector<16x1xf32> to vector<16x128xf32>
    %26 = arith.addf %23, %25 : vector<16x128xf32>
    %27 = arith.negf %26 : vector<16x128xf32>
    %28 = math.exp %27 : vector<16x128xf32>
    %cst_23 = arith.constant 1.000000e+00 : f32
    %29 = vector.broadcast %cst_23 : f32 to vector<16x128xf32>
    %30 = arith.addf %29, %28 : vector<16x128xf32>
    %31 = arith.divf %29, %30 : vector<16x128xf32>
    %c0_24 = arith.constant 0 : index
    %c0_25 = arith.constant 0 : index
    %32 = vector.load %arg10[%c0_24, %c0_25] : memref<16x128xf32, #tpu.memory_space<vmem>>, vector<16x128xf32>
    tpu.vector_store %arg10[%c0_24, %c0_25], %31 {strides = array<i32>} : memref<16x128xf32, #tpu.memory_space<vmem>>, vector<16x128xf32>,
    return
  }
  func.func @transform_0(%arg0: i32) -> (i32, i32) {
    %c0_i32 = arith.constant 0 : i32
    %c0_i32_0 = arith.constant 0 : i32
    return %arg0, %c0_i32 : i32, i32
  }
  func.func @transform_1(%arg0: i32) -> (i32, i32) {
    %c0_i32 = arith.constant 0 : i32
    %c0_i32_0 = arith.constant 0 : i32
    %c0_i32_1 = arith.constant 0 : i32
    return %c0_i32, %c0_i32_0 : i32, i32
  }
  func.func @transform_2(%arg0: i32) -> (i32, i32) {
    %c0_i32 = arith.constant 0 : i32
    %c0_i32_0 = arith.constant 0 : i32
    %c0_i32_1 = arith.constant 0 : i32
    return %c0_i32, %c0_i32_0 : i32, i32
  }
  func.func @transform_3(%arg0: i32) -> (i32, i32) {
    %c0_i32 = arith.constant 0 : i32
    %c0_i32_0 = arith.constant 0 : i32
    %c0_i32_1 = arith.constant 0 : i32
    return %c0_i32, %c0_i32_0 : i32, i32
  }
  func.func @transform_4(%arg0: i32) -> (i32, i32) {
    %c0_i32 = arith.constant 0 : i32
    %c0_i32_0 = arith.constant 0 : i32
    %c0_i32_1 = arith.constant 0 : i32
    return %c0_i32, %c0_i32_0 : i32, i32
  }
  func.func @transform_5(%arg0: i32) -> (i32, i32) {
    %c0_i32 = arith.constant 0 : i32
    %c0_i32_0 = arith.constant 0 : i32
    %c0_i32_1 = arith.constant 0 : i32
    return %c0_i32, %c0_i32_0 : i32, i32
  }
  func.func @transform_6(%arg0: i32) -> (i32, i32) {
    %c0_i32 = arith.constant 0 : i32
    %c0_i32_0 = arith.constant 0 : i32
    %c0_i32_1 = arith.constant 0 : i32
    return %c0_i32, %c0_i32_0 : i32, i32
  }
  func.func @transform_7(%arg0: i32) -> (i32, i32) {
    %c0_i32 = arith.constant 0 : i32
    %c0_i32_0 = arith.constant 0 : i32
    %c0_i32_1 = arith.constant 0 : i32
    return %c0_i32, %c0_i32_0 : i32, i32
  }
  func.func @transform_8(%arg0: i32) -> (i32, i32) {
    %c0_i32 = arith.constant 0 : i32
    %c0_i32_0 = arith.constant 0 : i32
    %c0_i32_1 = arith.constant 0 : i32
    return %c0_i32, %c0_i32_0 : i32, i32
  }
  func.func @transform_9(%arg0: i32) -> (i32, i32) {
    %c0_i32 = arith.constant 0 : i32
    %c0_i32_0 = arith.constant 0 : i32
    return %c0_i32, %arg0 : i32, i32
  }
}

</mosaic_0001>

<llo_original>
// kernel: mynet_forward.1
$region0: #{mynet_forward.1}
  #allocation0 [shape = 'u32[]', space=smem, size = 0x4, offset = 0x4, fixed_abs, tag = 'smem constant byte address 0x4 - core index']
  #allocation1 [shape = 'u32[144,128]{1,0:T(1,128)}', space=vmem, size = 0x12000, scoped, tag = 'internal scratch']
  %s0 = inlined_call_operand.vmem [shape: f32[128,32], index: 0, kind: input, shape index: {}]
  %s1 = inlined_call_operand.vmem [shape: f32[32,64], index: 1, kind: input, shape index: {}]
  %s2 = inlined_call_operand.hbm [shape: f32[1,64], index: 2, kind: input, shape index: {}]
  %s3 = inlined_call_operand.vmem [shape: f32[64,64], index: 3, kind: input, shape index: {}]
  %s4 = inlined_call_operand.hbm [shape: f32[1,64], index: 4, kind: input, shape index: {}]
  %s5 = inlined_call_operand.vmem [shape: f32[64,64], index: 5, kind: input, shape index: {}]
  %s6 = inlined_call_operand.vmem [shape: f32[1,64], index: 6, kind: input, shape index: {}]
  %s7 = inlined_call_operand.vmem [shape: f32[16,64], index: 7, kind: input, shape index: {}]
  %s8 = inlined_call_operand.vmem [shape: f32[16,1], index: 8, kind: input, shape index: {}]
  %s9 = inlined_call_operand.vmem [shape: f32[16,128], index: 9, kind: output, shape index: {}]
  %s10 = sld [smem:[#allocation0]]
  $region54: #{mynet_forward.1} parent=0
    _
  %s12 = ssub.s32 1, %s10
  %s13 = scalar_select 0, %s12, %s10
  $region1: #{mynet_forward.1} parent=0
    #allocation2 [shape = 'u8[512]{0}', space=vmem, size = 0x400, scoped, tag = 'input window, operand 2, single buffered']
    #allocation3 [shape = 's32[1]{0}', space=sflag, size = 0x4, scoped, tag = 'scoped memory for mynet_forward.1']
    #allocation4 [shape = 'u8[512]{0}', space=vmem, size = 0x400, scoped, tag = 'input window, operand 4, single buffered']
    #allocation5 [shape = 's32[1]{0}', space=sflag, size = 0x4, scoped, tag = 'scoped memory for mynet_forward.1']
    %14 = vsyncpa [#allocation3], 0
    %15 = vsyncpa [#allocation5], 0
    // Predicated region
    $region2: #{mynet_forward.1} parent=1 // pred_check
      _
    $region3: #{mynet_forward.1} parent=1 // pred_check_branch
      %17 = sbr.rel (0) target = $region5
    $region4: #{mynet_forward.1} parent=1 // pred_region
      _
    $region5: #{mynet_forward.1} parent=1 // pred_fallthru
      _
    // Predicated region
    $region6: #{mynet_forward.1} parent=1 // pred_check
      _
    $region7: #{mynet_forward.1} parent=1 // pred_check_branch
      %19 = sbr.rel (0) target = $region9
    $region8: #{mynet_forward.1} parent=1 // pred_region
      _
    $region9: #{mynet_forward.1} parent=1 // pred_fallthru
      _
    // Predicated region
    $region10: #{mynet_forward.1} parent=1 // pred_check
      _
    $region11: #{mynet_forward.1} parent=1 // pred_check_branch
      %21 = sbr.rel (0) target = $region13
    $region12: #{mynet_forward.1} parent=1 // pred_region
      %s23 = ssub.s32 16, 16
      %24 = vsyncadd [#allocation3], %s23
      %s26 = sshll.u32 [#allocation2], 4
      %s27 = int_to_ptr.vmem [resolvable:$true] %s26
      %29 = dma.hbm_to_vmem [thread:$0]  %s2, 16, %s27, [#allocation3]
    $region13: #{mynet_forward.1} parent=1 // pred_fallthru
      _
    // Predicated region
    $region14: #{mynet_forward.1} parent=1 // pred_check
      _
    $region15: #{mynet_forward.1} parent=1 // pred_check_branch
      %31 = sbr.rel (0) target = $region17
    $region16: #{mynet_forward.1} parent=1 // pred_region
      _
    $region17: #{mynet_forward.1} parent=1 // pred_fallthru
      _
    // Predicated region
    $region18: #{mynet_forward.1} parent=1 // pred_check
      _
    $region19: #{mynet_forward.1} parent=1 // pred_check_branch
      %33 = sbr.rel (0) target = $region21
    $region20: #{mynet_forward.1} parent=1 // pred_region
      %s35 = ssub.s32 16, 16
      %36 = vsyncadd [#allocation5], %s35
      %s38 = sshll.u32 [#allocation4], 4
      %s39 = int_to_ptr.vmem [resolvable:$true] %s38
      %41 = dma.hbm_to_vmem [thread:$0]  %s4, 16, %s39, [#allocation5]
    $region21: #{mynet_forward.1} parent=1 // pred_fallthru
      _
    // Predicated region
    $region22: #{mynet_forward.1} parent=1 // pred_check
      _
    $region23: #{mynet_forward.1} parent=1 // pred_check_branch
      %43 = sbr.rel (0) target = $region25
    $region24: #{mynet_forward.1} parent=1 // pred_region
      _
    $region25: #{mynet_forward.1} parent=1 // pred_fallthru
      _
    // Predicated region
    $region26: #{mynet_forward.1} parent=1 // pred_check
      _
    $region27: #{mynet_forward.1} parent=1 // pred_check_branch
      %45 = sbr.rel (0) target = $region29
    $region28: #{mynet_forward.1} parent=1 // pred_region
      _
    $region29: #{mynet_forward.1} parent=1 // pred_fallthru
      _
    // Predicated region
    $region30: #{mynet_forward.1} parent=1 // pred_check
      _
    $region31: #{mynet_forward.1} parent=1 // pred_check_branch
      %47 = sbr.rel (0) target = $region33
    $region32: #{mynet_forward.1} parent=1 // pred_region
      _
    $region33: #{mynet_forward.1} parent=1 // pred_fallthru
      _
    // Predicated region
    $region34: #{mynet_forward.1} parent=1 // pred_check
      _
    $region35: #{mynet_forward.1} parent=1 // pred_check_branch
      %49 = sbr.rel (0) target = $region37
    $region36: #{mynet_forward.1} parent=1 // pred_region
      _
    $region37: #{mynet_forward.1} parent=1 // pred_fallthru
      _
    // Predicated region
    $region38: #{mynet_forward.1} parent=1 // pred_check
      _
    $region39: #{mynet_forward.1} parent=1 // pred_check_branch
      %51 = sbr.rel (0) target = $region41
    $region40: #{mynet_forward.1} parent=1 // pred_region
      %52 = dma.done [#allocation3], 16
    $region41: #{mynet_forward.1} parent=1 // pred_fallthru
      _
    // Predicated region
    $region42: #{mynet_forward.1} parent=1 // pred_check
      _
    $region43: #{mynet_forward.1} parent=1 // pred_check_branch
      %54 = sbr.rel (0) target = $region45
    $region44: #{mynet_forward.1} parent=1 // pred_region
      %55 = dma.done [#allocation5], 16
    $region45: #{mynet_forward.1} parent=1 // pred_fallthru
      _
    %v56 = vld [vmem:[%s0] sm:$0xff]
    %v57 = vld [vmem:[%s0 + $0x8] sm:$0xff]
    %v58 = vld [vmem:[%s0 + $0x10] sm:$0xff]
    %v59 = vld [vmem:[%s0 + $0x18] sm:$0xff]
    %v60 = vld [vmem:[%s0 + $0x20] sm:$0xff]
    %v61 = vld [vmem:[%s0 + $0x28] sm:$0xff]
    %v62 = vld [vmem:[%s0 + $0x30] sm:$0xff]
    %v63 = vld [vmem:[%s0 + $0x38] sm:$0xff]
    %v64 = vld [vmem:[%s0 + $0x40] sm:$0xff]
    %v65 = vld [vmem:[%s0 + $0x48] sm:$0xff]
    %v66 = vld [vmem:[%s0 + $0x50] sm:$0xff]
    %v67 = vld [vmem:[%s0 + $0x58] sm:$0xff]
    %v68 = vld [vmem:[%s0 + $0x60] sm:$0xff]
    %v69 = vld [vmem:[%s0 + $0x68] sm:$0xff]
    %v70 = vld [vmem:[%s0 + $0x70] sm:$0xff]
    %v71 = vld [vmem:[%s0 + $0x78] sm:$0xff]
    %v72 = vld [vmem:[%s1] sm:$0xff]
    %v73 = vld [vmem:[%s1 + $0x8] sm:$0xff]
    %v74 = vld [vmem:[%s1 + $0x10] sm:$0xff]
    %v75 = vld [vmem:[%s1 + $0x18] sm:$0xff]
    %v76 = vld [vmem:[#allocation2] sm:$0x1]
    %v78 = vlaneseq
    %v79 = vshrl.u32 %v78, 7
    %v80 = vsub.s32 0, %v79
    %v81 = vrot.slane %v76, %v80
    %vm83 = vcmask 261120
    %v85 = vsel %vm83, %v56, 0
    %v88 = vsel %vm83, %v57, 0
    %v91 = vsel %vm83, %v58, 0
    %v94 = vsel %vm83, %v59, 0
    %v97 = vsel %vm83, %v60, 0
    %v100 = vsel %vm83, %v61, 0
    %v103 = vsel %vm83, %v62, 0
    %v106 = vsel %vm83, %v63, 0
    %v109 = vsel %vm83, %v64, 0
    %v112 = vsel %vm83, %v65, 0
    %v115 = vsel %vm83, %v66, 0
    %v118 = vsel %vm83, %v67, 0
    %v121 = vsel %vm83, %v68, 0
    %v124 = vsel %vm83, %v69, 0
    %v127 = vsel %vm83, %v70, 0
    %v130 = vsel %vm83, %v71, 0
    %132 = vmatprep.subr.mxu0 0.0
    %v133 = vand.u32 %v72, 4294901760
    %134 = vmatpush1.msra.mxu0 %v133
    %135 = vmatprep.subr.mxu0 0.0
    %v136 = vand.u32 %v73, 4294901760
    %137 = vmatpush1.msra.mxu0 %v136
    %138 = vmatprep.subr.mxu0 0.0
    %v139 = vand.u32 %v74, 4294901760
    %140 = vmatpush1.msra.mxu0 %v139
    %141 = vmatprep.subr.mxu0 0.0
    %v142 = vand.u32 %v75, 4294901760
    %143 = vmatpush1.msra.mxu0 %v142
    %144 = vmatprep.subr.mxu0 0.0
    %145 = vmatpush1.msra.mxu0 0.0
    %146 = vmatprep.subr.mxu0 0.0
    %147 = vmatpush1.msra.mxu0 0.0
    %148 = vmatprep.subr.mxu0 0.0
    %149 = vmatpush1.msra.mxu0 0.0
    %150 = vmatprep.subr.mxu0 0.0
    %151 = vmatpush1.msra.mxu0 0.0
    %152 = vmatprep.subr.mxu0 0.0
    %153 = vmatpush1.msra.mxu0 0.0
    %154 = vmatprep.subr.mxu0 0.0
    %155 = vmatpush1.msra.mxu0 0.0
    %156 = vmatprep.subr.mxu0 0.0
    %157 = vmatpush1.msra.mxu0 0.0
    %158 = vmatprep.subr.mxu0 0.0
    %159 = vmatpush1.msra.mxu0 0.0
    %160 = vmatprep.subr.mxu0 0.0
    %161 = vmatpush1.msra.mxu0 0.0
    %162 = vmatprep.subr.mxu0 0.0
    %163 = vmatpush1.msra.mxu0 0.0
    %164 = vmatprep.subr.mxu0 0.0
    %165 = vmatpush1.msra.mxu0 0.0
    %166 = vmatprep.subr.mxu0 0.0
    %167 = vmatpush1.msra.mxu0 0.0
    %168 = vmatprep.subr.mxu0 0.0
    %169 = vmatpush1.msra.mxu0 0.0
    %170 = vmatprep.subr.mxu0 0.0
    %171 = vmatpush1.msra.mxu0 0.0
    %172 = vmatprep.subr.mxu0 0.0
    %173 = vmatpush1.msra.mxu0 0.0
    %174 = vmatprep.subr.mxu0 0.0
    %175 = vmatpush1.msra.mxu0 0.0
    %176 = vmatprep.subr.mxu0 0.0
    %177 = vmatpush1.msra.mxu0 0.0
    %178 = vmatprep.subr.mxu0 0.0
    %179 = vmatpush1.msra.mxu0 0.0
    %180 = vmatprep.subr.mxu0 0.0
    %181 = vmatpush1.msra.mxu0 0.0
    %182 = vmatprep.subr.mxu0 0.0
    %183 = vmatpush1.msra.mxu0 0.0
    %184 = vmatprep.subr.mxu0 0.0
    %185 = vmatpush1.msra.mxu0 0.0
    %186 = vmatprep.subr.mxu0 0.0
    %187 = vmatpush1.msra.mxu0 0.0
    %188 = vmatprep.subr.mxu0 0.0
    %189 = vmatpush1.msra.mxu0 0.0
    %190 = vmatprep.subr.mxu0 0.0
    %191 = vmatpush1.msra.mxu0 0.0
    %192 = vmatprep.subr.mxu0 0.0
    %193 = vmatpush1.msra.mxu0 0.0
    %194 = vmatprep.subr.mxu0 0.0
    %195 = vmatpush1.msra.mxu0 0.0
    %196 = vmatprep.subr.mxu0 0.0
    %197 = vmatpush1.msra.mxu0 0.0
    %198 = vmatprep.subr.mxu0 0.0
    %199 = vmatpush1.msra.mxu0 0.0
    %200 = vmatprep.mubr.f32.mxu0 0.0
    %v201 = vand.u32 %v85, 4294901760
    %v202 = vsub.f32 %v85, %v201
    %v203 = vand.u32 %v202, 4294901760
    %v204 = vsub.f32 %v202, %v203
    %v205 = vand.u32 %v204, 4294901760
    %206 = vmatmul.mubr.f32.gmra.mrb[0].mxu0 %v205
    %v207 = vpop.f32.mrb[0].mxu0
    %v208 = vadd.f32 %v81, %v207
    %v209 = vpop.f32.mrb[0].mxu0
    %210 = vmatprep.mubr.f32.mxu0 0.0
    %v211 = vand.u32 %v88, 4294901760
    %v212 = vsub.f32 %v88, %v211
    %v213 = vand.u32 %v212, 4294901760
    %v214 = vsub.f32 %v212, %v213
    %v215 = vand.u32 %v214, 4294901760
    %216 = vmatmul.mubr.f32.gmra.mrb[0].mxu0 %v215
    %v217 = vpop.f32.mrb[0].mxu0
    %v218 = vadd.f32 %v81, %v217
    %v219 = vpop.f32.mrb[0].mxu0
    %220 = vmatprep.mubr.f32.mxu0 0.0
    %v221 = vand.u32 %v91, 4294901760
    %v222 = vsub.f32 %v91, %v221
    %v223 = vand.u32 %v222, 4294901760
    %v224 = vsub.f32 %v222, %v223
    %v225 = vand.u32 %v224, 4294901760
    %226 = vmatmul.mubr.f32.gmra.mrb[0].mxu0 %v225
    %v227 = vpop.f32.mrb[0].mxu0
    %v228 = vadd.f32 %v81, %v227
    %v229 = vpop.f32.mrb[0].mxu0
    %230 = vmatprep.mubr.f32.mxu0 0.0
    %v231 = vand.u32 %v94, 4294901760
    %v232 = vsub.f32 %v94, %v231
    %v233 = vand.u32 %v232, 4294901760
    %v234 = vsub.f32 %v232, %v233
    %v235 = vand.u32 %v234, 4294901760
    %236 = vmatmul.mubr.f32.gmra.mrb[0].mxu0 %v235
    %v237 = vpop.f32.mrb[0].mxu0
    %v238 = vadd.f32 %v81, %v237
    %v239 = vpop.f32.mrb[0].mxu0
    %240 = vmatprep.mubr.f32.mxu0 0.0
    %v241 = vand.u32 %v97, 4294901760
    %v242 = vsub.f32 %v97, %v241
    %v243 = vand.u32 %v242, 4294901760
    %v244 = vsub.f32 %v242, %v243
    %v245 = vand.u32 %v244, 4294901760
    %246 = vmatmul.mubr.f32.gmra.mrb[0].mxu0 %v245
    %v247 = vpop.f32.mrb[0].mxu0
    %v248 = vadd.f32 %v81, %v247
    %v249 = vpop.f32.mrb[0].mxu0
    %250 = vmatprep.mubr.f32.mxu0 0.0
    %v251 = vand.u32 %v100, 4294901760
    %v252 = vsub.f32 %v100, %v251
    %v253 = vand.u32 %v252, 4294901760
    %v254 = vsub.f32 %v252, %v253
    %v255 = vand.u32 %v254, 4294901760
    %256 = vmatmul.mubr.f32.gmra.mrb[0].mxu0 %v255
    %v257 = vpop.f32.mrb[0].mxu0
    %v258 = vadd.f32 %v81, %v257
    %v259 = vpop.f32.mrb[0].mxu0
    %260 = vmatprep.mubr.f32.mxu0 0.0
    %v261 = vand.u32 %v103, 4294901760
    %v262 = vsub.f32 %v103, %v261
    %v263 = vand.u32 %v262, 4294901760
    %v264 = vsub.f32 %v262, %v263
    %v265 = vand.u32 %v264, 4294901760
    %266 = vmatmul.mubr.f32.gmra.mrb[0].mxu0 %v265
    %v267 = vpop.f32.mrb[0].mxu0
    %v268 = vadd.f32 %v81, %v267
    %v269 = vpop.f32.mrb[0].mxu0
    %270 = vmatprep.mubr.f32.mxu0 0.0
    %v271 = vand.u32 %v106, 4294901760
    %v272 = vsub.f32 %v106, %v271
    %v273 = vand.u32 %v272, 4294901760
    %v274 = vsub.f32 %v272, %v273
    %v275 = vand.u32 %v274, 4294901760
    %276 = vmatmul.mubr.f32.gmra.mrb[0].mxu0 %v275
    %v277 = vpop.f32.mrb[0].mxu0
    %v278 = vadd.f32 %v81, %v277
    %v279 = vpop.f32.mrb[0].mxu0
    %280 = vmatprep.mubr.f32.mxu0 0.0
    %v281 = vand.u32 %v109, 4294901760
    %v282 = vsub.f32 %v109, %v281
    %v283 = vand.u32 %v282, 4294901760
    %v284 = vsub.f32 %v282, %v283
    %v285 = vand.u32 %v284, 4294901760
    %286 = vmatmul.mubr.f32.gmra.mrb[0].mxu0 %v285
    %v287 = vpop.f32.mrb[0].mxu0
    %v288 = vadd.f32 %v81, %v287
    %v289 = vpop.f32.mrb[0].mxu0
    %290 = vmatprep.mubr.f32.mxu0 0.0
    %v291 = vand.u32 %v112, 4294901760
    %v292 = vsub.f32 %v112, %v291
    %v293 = vand.u32 %v292, 4294901760
    %v294 = vsub.f32 %v292, %v293
    %v295 = vand.u32 %v294, 4294901760
    %296 = vmatmul.mubr.f32.gmra.mrb[0].mxu0 %v295
    %v297 = vpop.f32.mrb[0].mxu0
    %v298 = vadd.f32 %v81, %v297
    %v299 = vpop.f32.mrb[0].mxu0
    %300 = vmatprep.mubr.f32.mxu0 0.0
    %v301 = vand.u32 %v115, 4294901760
    %v302 = vsub.f32 %v115, %v301
    %v303 = vand.u32 %v302, 4294901760
    %v304 = vsub.f32 %v302, %v303
    %v305 = vand.u32 %v304, 4294901760
    %306 = vmatmul.mubr.f32.gmra.mrb[0].mxu0 %v305
    %v307 = vpop.f32.mrb[0].mxu0
    %v308 = vadd.f32 %v81, %v307
    %v309 = vpop.f32.mrb[0].mxu0
    %310 = vmatprep.mubr.f32.mxu0 0.0
    %v311 = vand.u32 %v118, 4294901760
    %v312 = vsub.f32 %v118, %v311
    %v313 = vand.u32 %v312, 4294901760
    %v314 = vsub.f32 %v312, %v313
    %v315 = vand.u32 %v314, 4294901760
    %316 = vmatmul.mubr.f32.gmra.mrb[0].mxu0 %v315
    %v317 = vpop.f32.mrb[0].mxu0
    %v318 = vadd.f32 %v81, %v317
    %v319 = vpop.f32.mrb[0].mxu0
    %320 = vmatprep.mubr.f32.mxu0 0.0
    %v321 = vand.u32 %v121, 4294901760
    %v322 = vsub.f32 %v121, %v321
    %v323 = vand.u32 %v322, 4294901760
    %v324 = vsub.f32 %v322, %v323
    %v325 = vand.u32 %v324, 4294901760
    %326 = vmatmul.mubr.f32.gmra.mrb[0].mxu0 %v325
    %v327 = vpop.f32.mrb[0].mxu0
    %v328 = vadd.f32 %v81, %v327
    %v329 = vpop.f32.mrb[0].mxu0
    %330 = vmatprep.mubr.f32.mxu0 0.0
    %v331 = vand.u32 %v124, 4294901760
    %v332 = vsub.f32 %v124, %v331
    %v333 = vand.u32 %v332, 4294901760
    %v334 = vsub.f32 %v332, %v333
    %v335 = vand.u32 %v334, 4294901760
    %336 = vmatmul.mubr.f32.gmra.mrb[0].mxu0 %v335
    %v337 = vpop.f32.mrb[0].mxu0
    %v338 = vadd.f32 %v81, %v337
    %v339 = vpop.f32.mrb[0].mxu0
    %340 = vmatprep.mubr.f32.mxu0 0.0
    %v341 = vand.u32 %v127, 4294901760
    %v342 = vsub.f32 %v127, %v341
    %v343 = vand.u32 %v342, 4294901760
    %v344 = vsub.f32 %v342, %v343
    %v345 = vand.u32 %v344, 4294901760
    %346 = vmatmul.mubr.f32.gmra.mrb[0].mxu0 %v345
    %v347 = vpop.f32.mrb[0].mxu0
    %v348 = vadd.f32 %v81, %v347
    %v349 = vpop.f32.mrb[0].mxu0
    %350 = vmatprep.mubr.f32.mxu0 0.0
    %v351 = vand.u32 %v130, 4294901760
    %v352 = vsub.f32 %v130, %v351
    %v353 = vand.u32 %v352, 4294901760
    %v354 = vsub.f32 %v352, %v353
    %v355 = vand.u32 %v354, 4294901760
    %356 = vmatmul.mubr.f32.gmra.mrb[0].mxu0 %v355
    %v357 = vpop.f32.mrb[0].mxu0
    %v358 = vadd.f32 %v81, %v357
    %v359 = vpop.f32.mrb[0].mxu0
    %360 = vdwg.mxu0
    %361 = vmatprep.subr.mxu0 0.0
    %v362 = vand.u32 %v72, 4294901760
    %v363 = vsub.f32 %v72, %v362
    %v364 = vand.u32 %v363, 4294901760
    %v365 = vsub.f32 %v363, %v364
    %v366 = vand.u32 %v365, 4294901760
    %367 = vmatpush1.msra.mxu0 %v366
    %368 = vmatprep.subr.mxu0 0.0
    %v369 = vand.u32 %v73, 4294901760
    %v370 = vsub.f32 %v73, %v369
    %v371 = vand.u32 %v370, 4294901760
    %v372 = vsub.f32 %v370, %v371
    %v373 = vand.u32 %v372, 4294901760
    %374 = vmatpush1.msra.mxu0 %v373
    %375 = vmatprep.subr.mxu0 0.0
    %v376 = vand.u32 %v74, 4294901760
    %v377 = vsub.f32 %v74, %v376
    %v378 = vand.u32 %v377, 4294901760
    %v379 = vsub.f32 %v377, %v378
    %v380 = vand.u32 %v379, 4294901760
    %381 = vmatpush1.msra.mxu0 %v380
    %382 = vmatprep.subr.mxu0 0.0
    %v383 = vand.u32 %v75, 4294901760
    %v384 = vsub.f32 %v75, %v383
    %v385 = vand.u32 %v384, 4294901760
    %v386 = vsub.f32 %v384, %v385
    %v387 = vand.u32 %v386, 4294901760
    %388 = vmatpush1.msra.mxu0 %v387
    %389 = vmatprep.subr.mxu0 0.0
    %390 = vmatpush1.msra.mxu0 0.0
    %391 = vmatprep.subr.mxu0 0.0
    %392 = vmatpush1.msra.mxu0 0.0
    %393 = vmatprep.subr.mxu0 0.0
    %394 = vmatpush1.msra.mxu0 0.0
    %395 = vmatprep.subr.mxu0 0.0
    %396 = vmatpush1.msra.mxu0 0.0
    %397 = vmatprep.subr.mxu0 0.0
    %398 = vmatpush1.msra.mxu0 0.0
    %399 = vmatprep.subr.mxu0 0.0
    %400 = vmatpush1.msra.mxu0 0.0
    %401 = vmatprep.subr.mxu0 0.0
    %402 = vmatpush1.msra.mxu0 0.0
    %403 = vmatprep.subr.mxu0 0.0
    %404 = vmatpush1.msra.mxu0 0.0
    %405 = vmatprep.subr.mxu0 0.0
    %406 = vmatpush1.msra.mxu0 0.0
    %407 = vmatprep.subr.mxu0 0.0
    %408 = vmatpush1.msra.mxu0 0.0
    %409 = vmatprep.subr.mxu0 0.0
    %410 = vmatpush1.msra.mxu0 0.0
    %411 = vmatprep.subr.mxu0 0.0
    %412 = vmatpush1.msra.mxu0 0.0
    %413 = vmatprep.subr.mxu0 0.0
    %414 = vmatpush1.msra.mxu0 0.0
    %415 = vmatprep.subr.mxu0 0.0
    %416 = vmatpush1.msra.mxu0 0.0
    %417 = vmatprep.subr.mxu0 0.0
    %418 = vmatpush1.msra.mxu0 0.0
    %419 = vmatprep.subr.mxu0 0.0
    %420 = vmatpush1.msra.mxu0 0.0
    %421 = vmatprep.subr.mxu0 0.0
    %422 = vmatpush1.msra.mxu0 0.0
    %423 = vmatprep.subr.mxu0 0.0
    %424 = vmatpush1.msra.mxu0 0.0
    %425 = vmatprep.subr.mxu0 0.0
    %426 = vmatpush1.msra.mxu0 0.0
    %427 = vmatprep.subr.mxu0 0.0
    %428 = vmatpush1.msra.mxu0 0.0
    %429 = vmatprep.subr.mxu0 0.0
    %430 = vmatpush1.msra.mxu0 0.0
    %431 = vmatprep.subr.mxu0 0.0
    %432 = vmatpush1.msra.mxu0 0.0
    %433 = vmatprep.subr.mxu0 0.0
    %434 = vmatpush1.msra.mxu0 0.0
    %435 = vmatprep.subr.mxu0 0.0
    %436 = vmatpush1.msra.mxu0 0.0
    %437 = vmatprep.subr.mxu0 0.0
    %438 = vmatpush1.msra.mxu0 0.0
    %439 = vmatprep.subr.mxu0 0.0
    %440 = vmatpush1.msra.mxu0 0.0
    %441 = vmatprep.subr.mxu0 0.0
    %442 = vmatpush1.msra.mxu0 0.0
    %443 = vmatprep.subr.mxu0 0.0
    %444 = vmatpush1.msra.mxu0 0.0
    %445 = vmatprep.mubr.f32.mxu0 0.0
    %v446 = vand.u32 %v85, 4294901760
    %447 = vmatmul.mubr.f32.gmra.mrb[0].mxu0 %v446
    %v448 = vpop.f32.mrb[0].mxu0
    %v449 = vadd.f32 %v208, %v448
    %v450 = vpop.f32.mrb[0].mxu0
    %451 = vmatprep.mubr.f32.mxu0 0.0
    %v452 = vand.u32 %v88, 4294901760
    %453 = vmatmul.mubr.f32.gmra.mrb[0].mxu0 %v452
    %v454 = vpop.f32.mrb[0].mxu0
    %v455 = vadd.f32 %v218, %v454
    %v456 = vpop.f32.mrb[0].mxu0
    %457 = vmatprep.mubr.f32.mxu0 0.0
    %v458 = vand.u32 %v91, 4294901760
    %459 = vmatmul.mubr.f32.gmra.mrb[0].mxu0 %v458
    %v460 = vpop.f32.mrb[0].mxu0
    %v461 = vadd.f32 %v228, %v460
    %v462 = vpop.f32.mrb[0].mxu0
    %463 = vmatprep.mubr.f32.mxu0 0.0
    %v464 = vand.u32 %v94, 4294901760
    %465 = vmatmul.mubr.f32.gmra.mrb[0].mxu0 %v464
    %v466 = vpop.f32.mrb[0].mxu0
    %v467 = vadd.f32 %v238, %v466
    %v468 = vpop.f32.mrb[0].mxu0
    %469 = vmatprep.mubr.f32.mxu0 0.0
    %v470 = vand.u32 %v97, 4294901760
    %471 = vmatmul.mubr.f32.gmra.mrb[0].mxu0 %v470
    %v472 = vpop.f32.mrb[0].mxu0
    %v473 = vadd.f32 %v248, %v472
    %v474 = vpop.f32.mrb[0].mxu0
    %475 = vmatprep.mubr.f32.mxu0 0.0
    %v476 = vand.u32 %v100, 4294901760
    %477 = vmatmul.mubr.f32.gmra.mrb[0].mxu0 %v476
    %v478 = vpop.f32.mrb[0].mxu0
    %v479 = vadd.f32 %v258, %v478
    %v480 = vpop.f32.mrb[0].mxu0
    %481 = vmatprep.mubr.f32.mxu0 0.0
    %v482 = vand.u32 %v103, 4294901760
    %483 = vmatmul.mubr.f32.gmra.mrb[0].mxu0 %v482
    %v484 = vpop.f32.mrb[0].mxu0
    %v485 = vadd.f32 %v268, %v484
    %v486 = vpop.f32.mrb[0].mxu0
    %487 = vmatprep.mubr.f32.mxu0 0.0
    %v488 = vand.u32 %v106, 4294901760
    %489 = vmatmul.mubr.f32.gmra.mrb[0].mxu0 %v488
    %v490 = vpop.f32.mrb[0].mxu0
    %v491 = vadd.f32 %v278, %v490
    %v492 = vpop.f32.mrb[0].mxu0
    %493 = vmatprep.mubr.f32.mxu0 0.0
    %v494 = vand.u32 %v109, 4294901760
    %495 = vmatmul.mubr.f32.gmra.mrb[0].mxu0 %v494
    %v496 = vpop.f32.mrb[0].mxu0
    %v497 = vadd.f32 %v288, %v496
    %v498 = vpop.f32.mrb[0].mxu0
    %499 = vmatprep.mubr.f32.mxu0 0.0
    %v500 = vand.u32 %v112, 4294901760
    %501 = vmatmul.mubr.f32.gmra.mrb[0].mxu0 %v500
    %v502 = vpop.f32.mrb[0].mxu0
    %v503 = vadd.f32 %v298, %v502
    %v504 = vpop.f32.mrb[0].mxu0
    %505 = vmatprep.mubr.f32.mxu0 0.0
    %v506 = vand.u32 %v115, 4294901760
    %507 = vmatmul.mubr.f32.gmra.mrb[0].mxu0 %v506
    %v508 = vpop.f32.mrb[0].mxu0
    %v509 = vadd.f32 %v308, %v508
    %v510 = vpop.f32.mrb[0].mxu0
    %511 = vmatprep.mubr.f32.mxu0 0.0
    %v512 = vand.u32 %v118, 4294901760
    %513 = vmatmul.mubr.f32.gmra.mrb[0].mxu0 %v512
    %v514 = vpop.f32.mrb[0].mxu0
    %v515 = vadd.f32 %v318, %v514
    %v516 = vpop.f32.mrb[0].mxu0
    %517 = vmatprep.mubr.f32.mxu0 0.0
    %v518 = vand.u32 %v121, 4294901760
    %519 = vmatmul.mubr.f32.gmra.mrb[0].mxu0 %v518
    %v520 = vpop.f32.mrb[0].mxu0
    %v521 = vadd.f32 %v328, %v520
    %v522 = vpop.f32.mrb[0].mxu0
    %523 = vmatprep.mubr.f32.mxu0 0.0
    %v524 = vand.u32 %v124, 4294901760
    %525 = vmatmul.mubr.f32.gmra.mrb[0].mxu0 %v524
    %v526 = vpop.f32.mrb[0].mxu0
    %v527 = vadd.f32 %v338, %v526
    %v528 = vpop.f32.mrb[0].mxu0
    %529 = vmatprep.mubr.f32.mxu0 0.0
    %v530 = vand.u32 %v127, 4294901760
    %531 = vmatmul.mubr.f32.gmra.mrb[0].mxu0 %v530
    %v532 = vpop.f32.mrb[0].mxu0
    %v533 = vadd.f32 %v348, %v532
    %v534 = vpop.f32.mrb[0].mxu0
    %535 = vmatprep.mubr.f32.mxu0 0.0
    %v536 = vand.u32 %v130, 4294901760
    %537 = vmatmul.mubr.f32.gmra.mrb[0].mxu0 %v536
    %v538 = vpop.f32.mrb[0].mxu0
    %v539 = vadd.f32 %v358, %v538
    %v540 = vpop.f32.mrb[0].mxu0
    %541 = vdwg.mxu0
    %542 = vmatprep.subr.mxu0 0.0
    %v543 = vand.u32 %v72, 4294901760
    %v544 = vsub.f32 %v72, %v543
    %545 = vmatpush1.msra.mxu0 %v544
    %546 = vmatprep.subr.mxu0 0.0
    %v547 = vand.u32 %v73, 4294901760
    %v548 = vsub.f32 %v73, %v547
    %549 = vmatpush1.msra.mxu0 %v548
    %550 = vmatprep.subr.mxu0 0.0
    %v551 = vand.u32 %v74, 4294901760
    %v552 = vsub.f32 %v74, %v551
    %553 = vmatpush1.msra.mxu0 %v552
    %554 = vmatprep.subr.mxu0 0.0
    %v555 = vand.u32 %v75, 4294901760
    %v556 = vsub.f32 %v75, %v555
    %557 = vmatpush1.msra.mxu0 %v556
    %558 = vmatprep.subr.mxu0 0.0
    %559 = vmatpush1.msra.mxu0 0.0
    %560 = vmatprep.subr.mxu0 0.0
    %561 = vmatpush1.msra.mxu0 0.0
    %562 = vmatprep.subr.mxu0 0.0
    %563 = vmatpush1.msra.mxu0 0.0
    %564 = vmatprep.subr.mxu0 0.0
    %565 = vmatpush1.msra.mxu0 0.0
    %566 = vmatprep.subr.mxu0 0.0
    %567 = vmatpush1.msra.mxu0 0.0
    %568 = vmatprep.subr.mxu0 0.0
    %569 = vmatpush1.msra.mxu0 0.0
    %570 = vmatprep.subr.mxu0 0.0
    %571 = vmatpush1.msra.mxu0 0.0
    %572 = vmatprep.subr.mxu0 0.0
    %573 = vmatpush1.msra.mxu0 0.0
    %574 = vmatprep.subr.mxu0 0.0
    %575 = vmatpush1.msra.mxu0 0.0
    %576 = vmatprep.subr.mxu0 0.0
    %577 = vmatpush1.msra.mxu0 0.0
    %578 = vmatprep.subr.mxu0 0.0
    %579 = vmatpush1.msra.mxu0 0.0
    %580 = vmatprep.subr.mxu0 0.0
    %581 = vmatpush1.msra.mxu0 0.0
    %582 = vmatprep.subr.mxu0 0.0
    %583 = vmatpush1.msra.mxu0 0.0
    %584 = vmatprep.subr.mxu0 0.0
    %585 = vmatpush1.msra.mxu0 0.0
    %586 = vmatprep.subr.mxu0 0.0
    %587 = vmatpush1.msra.mxu0 0.0
    %588 = vmatprep.subr.mxu0 0.0
    %589 = vmatpush1.msra.mxu0 0.0
    %590 = vmatprep.subr.mxu0 0.0
    %591 = vmatpush1.msra.mxu0 0.0
    %592 = vmatprep.subr.mxu0 0.0
    %593 = vmatpush1.msra.mxu0 0.0
    %594 = vmatprep.subr.mxu0 0.0
    %595 = vmatpush1.msra.mxu0 0.0
    %596 = vmatprep.subr.mxu0 0.0
    %597 = vmatpush1.msra.mxu0 0.0
    %598 = vmatprep.subr.mxu0 0.0
    %599 = vmatpush1.msra.mxu0 0.0
    %600 = vmatprep.subr.mxu0 0.0
    %601 = vmatpush1.msra.mxu0 0.0
    %602 = vmatprep.subr.mxu0 0.0
    %603 = vmatpush1.msra.mxu0 0.0
    %604 = vmatprep.subr.mxu0 0.0
    %605 = vmatpush1.msra.mxu0 0.0
    %606 = vmatprep.subr.mxu0 0.0
    %607 = vmatpush1.msra.mxu0 0.0
    %608 = vmatprep.subr.mxu0 0.0
    %609 = vmatpush1.msra.mxu0 0.0
    %610 = vmatprep.subr.mxu0 0.0
    %611 = vmatpush1.msra.mxu0 0.0
    %612 = vmatprep.subr.mxu0 0.0
    %613 = vmatpush1.msra.mxu0 0.0
    %614 = vmatprep.mubr.f32.mxu0 0.0
    %v615 = vand.u32 %v85, 4294901760
    %v616 = vsub.f32 %v85, %v615
    %617 = vmatmul.mubr.f32.gmra.mrb[0].mxu0 %v616
    %v618 = vpop.f32.mrb[0].mxu0
    %v619 = vadd.f32 %v449, %v618
    %v620 = vpop.f32.mrb[0].mxu0
    %621 = vmatprep.mubr.f32.mxu0 0.0
    %v622 = vand.u32 %v88, 4294901760
    %v623 = vsub.f32 %v88, %v622
    %624 = vmatmul.mubr.f32.gmra.mrb[0].mxu0 %v623
    %v625 = vpop.f32.mrb[0].mxu0
    %v626 = vadd.f32 %v455, %v625
    %v627 = vpop.f32.mrb[0].mxu0
    %628 = vmatprep.mubr.f32.mxu0 0.0
    %v629 = vand.u32 %v91, 4294901760
    %v630 = vsub.f32 %v91, %v629
    %631 = vmatmul.mubr.f32.gmra.mrb[0].mxu0 %v630
    %v632 = vpop.f32.mrb[0].mxu0
    %v633 = vadd.f32 %v461, %v632
    %v634 = vpop.f32.mrb[0].mxu0
    %635 = vmatprep.mubr.f32.mxu0 0.0
    %v636 = vand.u32 %v94, 4294901760
    %v637 = vsub.f32 %v94, %v636
    %638 = vmatmul.mubr.f32.gmra.mrb[0].mxu0 %v637
    %v639 = vpop.f32.mrb[0].mxu0
    %v640 = vadd.f32 %v467, %v639
    %v641 = vpop.f32.mrb[0].mxu0
    %642 = vmatprep.mubr.f32.mxu0 0.0
    %v643 = vand.u32 %v97, 4294901760
    %v644 = vsub.f32 %v97, %v643
    %645 = vmatmul.mubr.f32.gmra.mrb[0].mxu0 %v644
    %v646 = vpop.f32.mrb[0].mxu0
    %v647 = vadd.f32 %v473, %v646
    %v648 = vpop.f32.mrb[0].mxu0
    %649 = vmatprep.mubr.f32.mxu0 0.0
    %v650 = vand.u32 %v100, 4294901760
    %v651 = vsub.f32 %v100, %v650
    %652 = vmatmul.mubr.f32.gmra.mrb[0].mxu0 %v651
    %v653 = vpop.f32.mrb[0].mxu0
    %v654 = vadd.f32 %v479, %v653
    %v655 = vpop.f32.mrb[0].mxu0
    %656 = vmatprep.mubr.f32.mxu0 0.0
    %v657 = vand.u32 %v103, 4294901760
    %v658 = vsub.f32 %v103, %v657
    %659 = vmatmul.mubr.f32.gmra.mrb[0].mxu0 %v658
    %v660 = vpop.f32.mrb[0].mxu0
    %v661 = vadd.f32 %v485, %v660
    %v662 = vpop.f32.mrb[0].mxu0
    %663 = vmatprep.mubr.f32.mxu0 0.0
    %v664 = vand.u32 %v106, 4294901760
    %v665 = vsub.f32 %v106, %v664
    %666 = vmatmul.mubr.f32.gmra.mrb[0].mxu0 %v665
    %v667 = vpop.f32.mrb[0].mxu0
    %v668 = vadd.f32 %v491, %v667
    %v669 = vpop.f32.mrb[0].mxu0
    %670 = vmatprep.mubr.f32.mxu0 0.0
    %v671 = vand.u32 %v109, 4294901760
    %v672 = vsub.f32 %v109, %v671
    %673 = vmatmul.mubr.f32.gmra.mrb[0].mxu0 %v672
    %v674 = vpop.f32.mrb[0].mxu0
    %v675 = vadd.f32 %v497, %v674
    %v676 = vpop.f32.mrb[0].mxu0
    %677 = vmatprep.mubr.f32.mxu0 0.0
    %v678 = vand.u32 %v112, 4294901760
    %v679 = vsub.f32 %v112, %v678
    %680 = vmatmul.mubr.f32.gmra.mrb[0].mxu0 %v679
    %v681 = vpop.f32.mrb[0].mxu0
    %v682 = vadd.f32 %v503, %v681
    %v683 = vpop.f32.mrb[0].mxu0
    %684 = vmatprep.mubr.f32.mxu0 0.0
    %v685 = vand.u32 %v115, 4294901760
    %v686 = vsub.f32 %v115, %v685
    %687 = vmatmul.mubr.f32.gmra.mrb[0].mxu0 %v686
    %v688 = vpop.f32.mrb[0].mxu0
    %v689 = vadd.f32 %v509, %v688
    %v690 = vpop.f32.mrb[0].mxu0
    %691 = vmatprep.mubr.f32.mxu0 0.0
    %v692 = vand.u32 %v118, 4294901760
    %v693 = vsub.f32 %v118, %v692
    %694 = vmatmul.mubr.f32.gmra.mrb[0].mxu0 %v693
    %v695 = vpop.f32.mrb[0].mxu0
    %v696 = vadd.f32 %v515, %v695
    %v697 = vpop.f32.mrb[0].mxu0
    %698 = vmatprep.mubr.f32.mxu0 0.0
    %v699 = vand.u32 %v121, 4294901760
    %v700 = vsub.f32 %v121, %v699
    %701 = vmatmul.mubr.f32.gmra.mrb[0].mxu0 %v700
    %v702 = vpop.f32.mrb[0].mxu0
    %v703 = vadd.f32 %v521, %v702
    %v704 = vpop.f32.mrb[0].mxu0
    %705 = vmatprep.mubr.f32.mxu0 0.0
    %v706 = vand.u32 %v124, 4294901760
    %v707 = vsub.f32 %v124, %v706
    %708 = vmatmul.mubr.f32.gmra.mrb[0].mxu0 %v707
    %v709 = vpop.f32.mrb[0].mxu0
    %v710 = vadd.f32 %v527, %v709
    %v711 = vpop.f32.mrb[0].mxu0
    %712 = vmatprep.mubr.f32.mxu0 0.0
    %v713 = vand.u32 %v127, 4294901760
    %v714 = vsub.f32 %v127, %v713
    %715 = vmatmul.mubr.f32.gmra.mrb[0].mxu0 %v714
    %v716 = vpop.f32.mrb[0].mxu0
    %v717 = vadd.f32 %v533, %v716
    %v718 = vpop.f32.mrb[0].mxu0
    %719 = vmatprep.mubr.f32.mxu0 0.0
    %v720 = vand.u32 %v130, 4294901760
    %v721 = vsub.f32 %v130, %v720
    %722 = vmatmul.mubr.f32.gmra.mrb[0].mxu0 %v721
    %v723 = vpop.f32.mrb[0].mxu0
    %v724 = vadd.f32 %v539, %v723
    %v725 = vpop.f32.mrb[0].mxu0
    %726 = vdwg.mxu0
    %727 = vmatprep.subr.mxu0 0.0
    %v728 = vand.u32 %v72, 4294901760
    %729 = vmatpush1.msra.mxu0 %v728
    %730 = vmatprep.subr.mxu0 0.0
    %v731 = vand.u32 %v73, 4294901760
    %732 = vmatpush1.msra.mxu0 %v731
    %733 = vmatprep.subr.mxu0 0.0
    %v734 = vand.u32 %v74, 4294901760
    %735 = vmatpush1.msra.mxu0 %v734
    %736 = vmatprep.subr.mxu0 0.0
    %v737 = vand.u32 %v75, 4294901760
    %738 = vmatpush1.msra.mxu0 %v737
    %739 = vmatprep.subr.mxu0 0.0
    %740 = vmatpush1.msra.mxu0 0.0
    %741 = vmatprep.subr.mxu0 0.0
    %742 = vmatpush1.msra.mxu0 0.0
    %743 = vmatprep.subr.mxu0 0.0
    %744 = vmatpush1.msra.mxu0 0.0
    %745 = vmatprep.subr.mxu0 0.0
    %746 = vmatpush1.msra.mxu0 0.0
    %747 = vmatprep.subr.mxu0 0.0
    %748 = vmatpush1.msra.mxu0 0.0
    %749 = vmatprep.subr.mxu0 0.0
    %750 = vmatpush1.msra.mxu0 0.0
    %751 = vmatprep.subr.mxu0 0.0
    %752 = vmatpush1.msra.mxu0 0.0
    %753 = vmatprep.subr.mxu0 0.0
    %754 = vmatpush1.msra.mxu0 0.0
    %755 = vmatprep.subr.mxu0 0.0
    %756 = vmatpush1.msra.mxu0 0.0
    %757 = vmatprep.subr.mxu0 0.0
    %758 = vmatpush1.msra.mxu0 0.0
    %759 = vmatprep.subr.mxu0 0.0
    %760 = vmatpush1.msra.mxu0 0.0
    %761 = vmatprep.subr.mxu0 0.0
    %762 = vmatpush1.msra.mxu0 0.0
    %763 = vmatprep.subr.mxu0 0.0
    %764 = vmatpush1.msra.mxu0 0.0
    %765 = vmatprep.subr.mxu0 0.0
    %766 = vmatpush1.msra.mxu0 0.0
    %767 = vmatprep.subr.mxu0 0.0
    %768 = vmatpush1.msra.mxu0 0.0
    %769 = vmatprep.subr.mxu0 0.0
    %770 = vmatpush1.msra.mxu0 0.0
    %771 = vmatprep.subr.mxu0 0.0
    %772 = vmatpush1.msra.mxu0 0.0
    %773 = vmatprep.subr.mxu0 0.0
    %774 = vmatpush1.msra.mxu0 0.0
    %775 = vmatprep.subr.mxu0 0.0
    %776 = vmatpush1.msra.mxu0 0.0
    %777 = vmatprep.subr.mxu0 0.0
    %778 = vmatpush1.msra.mxu0 0.0
    %779 = vmatprep.subr.mxu0 0.0
    %780 = vmatpush1.msra.mxu0 0.0
    %781 = vmatprep.subr.mxu0 0.0
    %782 = vmatpush1.msra.mxu0 0.0
    %783 = vmatprep.subr.mxu0 0.0
    %784 = vmatpush1.msra.mxu0 0.0
    %785 = vmatprep.subr.mxu0 0.0
    %786 = vmatpush1.msra.mxu0 0.0
    %787 = vmatprep.subr.mxu0 0.0
    %788 = vmatpush1.msra.mxu0 0.0
    %789 = vmatprep.subr.mxu0 0.0
    %790 = vmatpush1.msra.mxu0 0.0
    %791 = vmatprep.subr.mxu0 0.0
    %792 = vmatpush1.msra.mxu0 0.0
    %793 = vmatprep.subr.mxu0 0.0
    %794 = vmatpush1.msra.mxu0 0.0
    %795 = vmatprep.mubr.f32.mxu0 0.0
    %v796 = vand.u32 %v85, 4294901760
    %v797 = vsub.f32 %v85, %v796
    %v798 = vand.u32 %v797, 4294901760
    %799 = vmatmul.mubr.f32.gmra.mrb[0].mxu0 %v798
    %v800 = vpop.f32.mrb[0].mxu0
    %v801 = vadd.f32 %v619, %v800
    %v802 = vpop.f32.mrb[0].mxu0
    %803 = vmatprep.mubr.f32.mxu0 0.0
    %v804 = vand.u32 %v88, 4294901760
    %v805 = vsub.f32 %v88, %v804
    %v806 = vand.u32 %v805, 4294901760
    %807 = vmatmul.mubr.f32.gmra.mrb[0].mxu0 %v806
    %v808 = vpop.f32.mrb[0].mxu0
    %v809 = vadd.f32 %v626, %v808
    %v810 = vpop.f32.mrb[0].mxu0
    %811 = vmatprep.mubr.f32.mxu0 0.0
    %v812 = vand.u32 %v91, 4294901760
    %v813 = vsub.f32 %v91, %v812
    %v814 = vand.u32 %v813, 4294901760
    %815 = vmatmul.mubr.f32.gmra.mrb[0].mxu0 %v814
    %v816 = vpop.f32.mrb[0].mxu0
    %v817 = vadd.f32 %v633, %v816
    %v818 = vpop.f32.mrb[0].mxu0
    %819 = vmatprep.mubr.f32.mxu0 0.0
    %v820 = vand.u32 %v94, 4294901760
    %v821 = vsub.f32 %v94, %v820
    %v822 = vand.u32 %v821, 4294901760
    %823 = vmatmul.mubr.f32.gmra.mrb[0].mxu0 %v822
    %v824 = vpop.f32.mrb[0].mxu0
    %v825 = vadd.f32 %v640, %v824
    %v826 = vpop.f32.mrb[0].mxu0
    %827 = vmatprep.mubr.f32.mxu0 0.0
    %v828 = vand.u32 %v97, 4294901760
    %v829 = vsub.f32 %v97, %v828
    %v830 = vand.u32 %v829, 4294901760
    %831 = vmatmul.mubr.f32.gmra.mrb[0].mxu0 %v830
    %v832 = vpop.f32.mrb[0].mxu0
    %v833 = vadd.f32 %v647, %v832
    %v834 = vpop.f32.mrb[0].mxu0
    %835 = vmatprep.mubr.f32.mxu0 0.0
    %v836 = vand.u32 %v100, 4294901760
    %v837 = vsub.f32 %v100, %v836
    %v838 = vand.u32 %v837, 4294901760
    %839 = vmatmul.mubr.f32.gmra.mrb[0].mxu0 %v838
    %v840 = vpop.f32.mrb[0].mxu0
    %v841 = vadd.f32 %v654, %v840
    %v842 = vpop.f32.mrb[0].mxu0
    %843 = vmatprep.mubr.f32.mxu0 0.0
    %v844 = vand.u32 %v103, 4294901760
    %v845 = vsub.f32 %v103, %v844
    %v846 = vand.u32 %v845, 4294901760
    %847 = vmatmul.mubr.f32.gmra.mrb[0].mxu0 %v846
    %v848 = vpop.f32.mrb[0].mxu0
    %v849 = vadd.f32 %v661, %v848
    %v850 = vpop.f32.mrb[0].mxu0
    %851 = vmatprep.mubr.f32.mxu0 0.0
    %v852 = vand.u32 %v106, 4294901760
    %v853 = vsub.f32 %v106, %v852
    %v854 = vand.u32 %v853, 4294901760
    %855 = vmatmul.mubr.f32.gmra.mrb[0].mxu0 %v854
    %v856 = vpop.f32.mrb[0].mxu0
    %v857 = vadd.f32 %v668, %v856
    %v858 = vpop.f32.mrb[0].mxu0
    %859 = vmatprep.mubr.f32.mxu0 0.0
    %v860 = vand.u32 %v109, 4294901760
    %v861 = vsub.f32 %v109, %v860
    %v862 = vand.u32 %v861, 4294901760
    %863 = vmatmul.mubr.f32.gmra.mrb[0].mxu0 %v862
    %v864 = vpop.f32.mrb[0].mxu0
    %v865 = vadd.f32 %v675, %v864
    %v866 = vpop.f32.mrb[0].mxu0
    %867 = vmatprep.mubr.f32.mxu0 0.0
    %v868 = vand.u32 %v112, 4294901760
    %v869 = vsub.f32 %v112, %v868
    %v870 = vand.u32 %v869, 4294901760
    %871 = vmatmul.mubr.f32.gmra.mrb[0].mxu0 %v870
    %v872 = vpop.f32.mrb[0].mxu0
    %v873 = vadd.f32 %v682, %v872
    %v874 = vpop.f32.mrb[0].mxu0
    %875 = vmatprep.mubr.f32.mxu0 0.0
    %v876 = vand.u32 %v115, 4294901760
    %v877 = vsub.f32 %v115, %v876
    %v878 = vand.u32 %v877, 4294901760
    %879 = vmatmul.mubr.f32.gmra.mrb[0].mxu0 %v878
    %v880 = vpop.f32.mrb[0].mxu0
    %v881 = vadd.f32 %v689, %v880
    %v882 = vpop.f32.mrb[0].mxu0
    %883 = vmatprep.mubr.f32.mxu0 0.0
    %v884 = vand.u32 %v118, 4294901760
    %v885 = vsub.f32 %v118, %v884
    %v886 = vand.u32 %v885, 4294901760
    %887 = vmatmul.mubr.f32.gmra.mrb[0].mxu0 %v886
    %v888 = vpop.f32.mrb[0].mxu0
    %v889 = vadd.f32 %v696, %v888
    %v890 = vpop.f32.mrb[0].mxu0
    %891 = vmatprep.mubr.f32.mxu0 0.0
    %v892 = vand.u32 %v121, 4294901760
    %v893 = vsub.f32 %v121, %v892
    %v894 = vand.u32 %v893, 4294901760
    %895 = vmatmul.mubr.f32.gmra.mrb[0].mxu0 %v894
    %v896 = vpop.f32.mrb[0].mxu0
    %v897 = vadd.f32 %v703, %v896
    %v898 = vpop.f32.mrb[0].mxu0
    %899 = vmatprep.mubr.f32.mxu0 0.0
    %v900 = vand.u32 %v124, 4294901760
    %v901 = vsub.f32 %v124, %v900
    %v902 = vand.u32 %v901, 4294901760
    %903 = vmatmul.mubr.f32.gmra.mrb[0].mxu0 %v902
    %v904 = vpop.f32.mrb[0].mxu0
    %v905 = vadd.f32 %v710, %v904
    %v906 = vpop.f32.mrb[0].mxu0
    %907 = vmatprep.mubr.f32.mxu0 0.0
    %v908 = vand.u32 %v127, 4294901760
    %v909 = vsub.f32 %v127, %v908
    %v910 = vand.u32 %v909, 4294901760
    %911 = vmatmul.mubr.f32.gmra.mrb[0].mxu0 %v910
    %v912 = vpop.f32.mrb[0].mxu0
    %v913 = vadd.f32 %v717, %v912
    %v914 = vpop.f32.mrb[0].mxu0
    %915 = vmatprep.mubr.f32.mxu0 0.0
    %v916 = vand.u32 %v130, 4294901760
    %v917 = vsub.f32 %v130, %v916
    %v918 = vand.u32 %v917, 4294901760
    %919 = vmatmul.mubr.f32.gmra.mrb[0].mxu0 %v918
    %v920 = vpop.f32.mrb[0].mxu0
    %v921 = vadd.f32 %v724, %v920
    %v922 = vpop.f32.mrb[0].mxu0
    %923 = vdwg.mxu0
    %924 = vmatprep.subr.mxu0 0.0
    %v925 = vand.u32 %v72, 4294901760
    %v926 = vsub.f32 %v72, %v925
    %v927 = vand.u32 %v926, 4294901760
    %928 = vmatpush1.msra.mxu0 %v927
    %929 = vmatprep.subr.mxu0 0.0
    %v930 = vand.u32 %v73, 4294901760
    %v931 = vsub.f32 %v73, %v930
    %v932 = vand.u32 %v931, 4294901760
    %933 = vmatpush1.msra.mxu0 %v932
    %934 = vmatprep.subr.mxu0 0.0
    %v935 = vand.u32 %v74, 4294901760
    %v936 = vsub.f32 %v74, %v935
    %v937 = vand.u32 %v936, 4294901760
    %938 = vmatpush1.msra.mxu0 %v937
    %939 = vmatprep.subr.mxu0 0.0
    %v940 = vand.u32 %v75, 4294901760
    %v941 = vsub.f32 %v75, %v940
    %v942 = vand.u32 %v941, 4294901760
    %943 = vmatpush1.msra.mxu0 %v942
    %944 = vmatprep.subr.mxu0 0.0
    %945 = vmatpush1.msra.mxu0 0.0
    %946 = vmatprep.subr.mxu0 0.0
    %947 = vmatpush1.msra.mxu0 0.0
    %948 = vmatprep.subr.mxu0 0.0
    %949 = vmatpush1.msra.mxu0 0.0
    %950 = vmatprep.subr.mxu0 0.0
    %951 = vmatpush1.msra.mxu0 0.0
    %952 = vmatprep.subr.mxu0 0.0
    %953 = vmatpush1.msra.mxu0 0.0
    %954 = vmatprep.subr.mxu0 0.0
    %955 = vmatpush1.msra.mxu0 0.0
    %956 = vmatprep.subr.mxu0 0.0
    %957 = vmatpush1.msra.mxu0 0.0
    %958 = vmatprep.subr.mxu0 0.0
    %959 = vmatpush1.msra.mxu0 0.0
    %960 = vmatprep.subr.mxu0 0.0
    %961 = vmatpush1.msra.mxu0 0.0
    %962 = vmatprep.subr.mxu0 0.0
    %963 = vmatpush1.msra.mxu0 0.0
    %964 = vmatprep.subr.mxu0 0.0
    %965 = vmatpush1.msra.mxu0 0.0
    %966 = vmatprep.subr.mxu0 0.0
    %967 = vmatpush1.msra.mxu0 0.0
    %968 = vmatprep.subr.mxu0 0.0
    %969 = vmatpush1.msra.mxu0 0.0
    %970 = vmatprep.subr.mxu0 0.0
    %971 = vmatpush1.msra.mxu0 0.0
    %972 = vmatprep.subr.mxu0 0.0
    %973 = vmatpush1.msra.mxu0 0.0
    %974 = vmatprep.subr.mxu0 0.0
    %975 = vmatpush1.msra.mxu0 0.0
    %976 = vmatprep.subr.mxu0 0.0
    %977 = vmatpush1.msra.mxu0 0.0
    %978 = vmatprep.subr.mxu0 0.0
    %979 = vmatpush1.msra.mxu0 0.0
    %980 = vmatprep.subr.mxu0 0.0
    %981 = vmatpush1.msra.mxu0 0.0
    %982 = vmatprep.subr.mxu0 0.0
    %983 = vmatpush1.msra.mxu0 0.0
    %984 = vmatprep.subr.mxu0 0.0
    %985 = vmatpush1.msra.mxu0 0.0
    %986 = vmatprep.subr.mxu0 0.0
    %987 = vmatpush1.msra.mxu0 0.0
    %988 = vmatprep.subr.mxu0 0.0
    %989 = vmatpush1.msra.mxu0 0.0
    %990 = vmatprep.subr.mxu0 0.0
    %991 = vmatpush1.msra.mxu0 0.0
    %992 = vmatprep.subr.mxu0 0.0
    %993 = vmatpush1.msra.mxu0 0.0
    %994 = vmatprep.subr.mxu0 0.0
    %995 = vmatpush1.msra.mxu0 0.0
    %996 = vmatprep.subr.mxu0 0.0
    %997 = vmatpush1.msra.mxu0 0.0
    %998 = vmatprep.subr.mxu0 0.0
    %999 = vmatpush1.msra.mxu0 0.0
    %1000 = vmatprep.mubr.f32.mxu0 0.0
    %v1001 = vand.u32 %v85, 4294901760
    %1002 = vmatmul.mubr.f32.gmra.mrb[0].mxu0 %v1001
    %v1003 = vpop.f32.mrb[0].mxu0
    %v1004 = vadd.f32 %v801, %v1003
    %v1005 = vpop.f32.mrb[0].mxu0
    %1006 = vmatprep.mubr.f32.mxu0 0.0
    %v1007 = vand.u32 %v88, 4294901760
    %1008 = vmatmul.mubr.f32.gmra.mrb[0].mxu0 %v1007
    %v1009 = vpop.f32.mrb[0].mxu0
    %v1010 = vadd.f32 %v809, %v1009
    %v1011 = vpop.f32.mrb[0].mxu0
    %1012 = vmatprep.mubr.f32.mxu0 0.0
    %v1013 = vand.u32 %v91, 4294901760
    %1014 = vmatmul.mubr.f32.gmra.mrb[0].mxu0 %v1013
    %v1015 = vpop.f32.mrb[0].mxu0
    %v1016 = vadd.f32 %v817, %v1015
    %v1017 = vpop.f32.mrb[0].mxu0
    %1018 = vmatprep.mubr.f32.mxu0 0.0
    %v1019 = vand.u32 %v94, 4294901760
    %1020 = vmatmul.mubr.f32.gmra.mrb[0].mxu0 %v1019
    %v1021 = vpop.f32.mrb[0].mxu0
    %v1022 = vadd.f32 %v825, %v1021
    %v1023 = vpop.f32.mrb[0].mxu0
    %1024 = vmatprep.mubr.f32.mxu0 0.0
    %v1025 = vand.u32 %v97, 4294901760
    %1026 = vmatmul.mubr.f32.gmra.mrb[0].mxu0 %v1025
    %v1027 = vpop.f32.mrb[0].mxu0
    %v1028 = vadd.f32 %v833, %v1027
    %v1029 = vpop.f32.mrb[0].mxu0
    %1030 = vmatprep.mubr.f32.mxu0 0.0
    %v1031 = vand.u32 %v100, 4294901760
    %1032 = vmatmul.mubr.f32.gmra.mrb[0].mxu0 %v1031
    %v1033 = vpop.f32.mrb[0].mxu0
    %v1034 = vadd.f32 %v841, %v1033
    %v1035 = vpop.f32.mrb[0].mxu0
    %1036 = vmatprep.mubr.f32.mxu0 0.0
    %v1037 = vand.u32 %v103, 4294901760
    %1038 = vmatmul.mubr.f32.gmra.mrb[0].mxu0 %v1037
    %v1039 = vpop.f32.mrb[0].mxu0
    %v1040 = vadd.f32 %v849, %v1039
    %v1041 = vpop.f32.mrb[0].mxu0
    %1042 = vmatprep.mubr.f32.mxu0 0.0
    %v1043 = vand.u32 %v106, 4294901760
    %1044 = vmatmul.mubr.f32.gmra.mrb[0].mxu0 %v1043
    %v1045 = vpop.f32.mrb[0].mxu0
    %v1046 = vadd.f32 %v857, %v1045
    %v1047 = vpop.f32.mrb[0].mxu0
    %1048 = vmatprep.mubr.f32.mxu0 0.0
    %v1049 = vand.u32 %v109, 4294901760
    %1050 = vmatmul.mubr.f32.gmra.mrb[0].mxu0 %v1049
    %v1051 = vpop.f32.mrb[0].mxu0
    %v1052 = vadd.f32 %v865, %v1051
    %v1053 = vpop.f32.mrb[0].mxu0
    %1054 = vmatprep.mubr.f32.mxu0 0.0
    %v1055 = vand.u32 %v112, 4294901760
    %1056 = vmatmul.mubr.f32.gmra.mrb[0].mxu0 %v1055
    %v1057 = vpop.f32.mrb[0].mxu0
    %v1058 = vadd.f32 %v873, %v1057
    %v1059 = vpop.f32.mrb[0].mxu0
    %1060 = vmatprep.mubr.f32.mxu0 0.0
    %v1061 = vand.u32 %v115, 4294901760
    %1062 = vmatmul.mubr.f32.gmra.mrb[0].mxu0 %v1061
    %v1063 = vpop.f32.mrb[0].mxu0
    %v1064 = vadd.f32 %v881, %v1063
    %v1065 = vpop.f32.mrb[0].mxu0
    %1066 = vmatprep.mubr.f32.mxu0 0.0
    %v1067 = vand.u32 %v118, 4294901760
    %1068 = vmatmul.mubr.f32.gmra.mrb[0].mxu0 %v1067
    %v1069 = vpop.f32.mrb[0].mxu0
    %v1070 = vadd.f32 %v889, %v1069
    %v1071 = vpop.f32.mrb[0].mxu0
    %1072 = vmatprep.mubr.f32.mxu0 0.0
    %v1073 = vand.u32 %v121, 4294901760
    %1074 = vmatmul.mubr.f32.gmra.mrb[0].mxu0 %v1073
    %v1075 = vpop.f32.mrb[0].mxu0
    %v1076 = vadd.f32 %v897, %v1075
    %v1077 = vpop.f32.mrb[0].mxu0
    %1078 = vmatprep.mubr.f32.mxu0 0.0
    %v1079 = vand.u32 %v124, 4294901760
    %1080 = vmatmul.mubr.f32.gmra.mrb[0].mxu0 %v1079
    %v1081 = vpop.f32.mrb[0].mxu0
    %v1082 = vadd.f32 %v905, %v1081
    %v1083 = vpop.f32.mrb[0].mxu0
    %1084 = vmatprep.mubr.f32.mxu0 0.0
    %v1085 = vand.u32 %v127, 4294901760
    %1086 = vmatmul.mubr.f32.gmra.mrb[0].mxu0 %v1085
    %v1087 = vpop.f32.mrb[0].mxu0
    %v1088 = vadd.f32 %v913, %v1087
    %v1089 = vpop.f32.mrb[0].mxu0
    %1090 = vmatprep.mubr.f32.mxu0 0.0
    %v1091 = vand.u32 %v130, 4294901760
    %1092 = vmatmul.mubr.f32.gmra.mrb[0].mxu0 %v1091
    %v1093 = vpop.f32.mrb[0].mxu0
    %v1094 = vadd.f32 %v921, %v1093
    %v1095 = vpop.f32.mrb[0].mxu0
    %1096 = vdwg.mxu0
    %1097 = vmatprep.subr.mxu0 0.0
    %v1098 = vand.u32 %v72, 4294901760
    %1099 = vmatpush1.msra.mxu0 %v1098
    %1100 = vmatprep.subr.mxu0 0.0
    %v1101 = vand.u32 %v73, 4294901760
    %1102 = vmatpush1.msra.mxu0 %v1101
    %1103 = vmatprep.subr.mxu0 0.0
    %v1104 = vand.u32 %v74, 4294901760
    %1105 = vmatpush1.msra.mxu0 %v1104
    %1106 = vmatprep.subr.mxu0 0.0
    %v1107 = vand.u32 %v75, 4294901760
    %1108 = vmatpush1.msra.mxu0 %v1107
    %1109 = vmatprep.subr.mxu0 0.0
    %1110 = vmatpush1.msra.mxu0 0.0
    %1111 = vmatprep.subr.mxu0 0.0
    %1112 = vmatpush1.msra.mxu0 0.0
    %1113 = vmatprep.subr.mxu0 0.0
    %1114 = vmatpush1.msra.mxu0 0.0
    %1115 = vmatprep.subr.mxu0 0.0
    %1116 = vmatpush1.msra.mxu0 0.0
    %1117 = vmatprep.subr.mxu0 0.0
    %1118 = vmatpush1.msra.mxu0 0.0
    %1119 = vmatprep.subr.mxu0 0.0
    %1120 = vmatpush1.msra.mxu0 0.0
    %1121 = vmatprep.subr.mxu0 0.0
    %1122 = vmatpush1.msra.mxu0 0.0
    %1123 = vmatprep.subr.mxu0 0.0
    %1124 = vmatpush1.msra.mxu0 0.0
    %1125 = vmatprep.subr.mxu0 0.0
    %1126 = vmatpush1.msra.mxu0 0.0
    %1127 = vmatprep.subr.mxu0 0.0
    %1128 = vmatpush1.msra.mxu0 0.0
    %1129 = vmatprep.subr.mxu0 0.0
    %1130 = vmatpush1.msra.mxu0 0.0
    %1131 = vmatprep.subr.mxu0 0.0
    %1132 = vmatpush1.msra.mxu0 0.0
    %1133 = vmatprep.subr.mxu0 0.0
    %1134 = vmatpush1.msra.mxu0 0.0
    %1135 = vmatprep.subr.mxu0 0.0
    %1136 = vmatpush1.msra.mxu0 0.0
    %1137 = vmatprep.subr.mxu0 0.0
    %1138 = vmatpush1.msra.mxu0 0.0
    %1139 = vmatprep.subr.mxu0 0.0
    %1140 = vmatpush1.msra.mxu0 0.0
    %1141 = vmatprep.subr.mxu0 0.0
    %1142 = vmatpush1.msra.mxu0 0.0
    %1143 = vmatprep.subr.mxu0 0.0
    %1144 = vmatpush1.msra.mxu0 0.0
    %1145 = vmatprep.subr.mxu0 0.0
    %1146 = vmatpush1.msra.mxu0 0.0
    %1147 = vmatprep.subr.mxu0 0.0
    %1148 = vmatpush1.msra.mxu0 0.0
    %1149 = vmatprep.subr.mxu0 0.0
    %1150 = vmatpush1.msra.mxu0 0.0
    %1151 = vmatprep.subr.mxu0 0.0
    %1152 = vmatpush1.msra.mxu0 0.0
    %1153 = vmatprep.subr.mxu0 0.0
    %1154 = vmatpush1.msra.mxu0 0.0
    %1155 = vmatprep.subr.mxu0 0.0
    %1156 = vmatpush1.msra.mxu0 0.0
    %1157 = vmatprep.subr.mxu0 0.0
    %1158 = vmatpush1.msra.mxu0 0.0
    %1159 = vmatprep.subr.mxu0 0.0
    %1160 = vmatpush1.msra.mxu0 0.0
    %1161 = vmatprep.subr.mxu0 0.0
    %1162 = vmatpush1.msra.mxu0 0.0
    %1163 = vmatprep.subr.mxu0 0.0
    %1164 = vmatpush1.msra.mxu0 0.0
    %1165 = vmatprep.mubr.f32.mxu0 0.0
    %v1166 = vand.u32 %v85, 4294901760
    %1167 = vmatmul.mubr.f32.gmra.mrb[0].mxu0 %v1166
    %v1168 = vpop.f32.mrb[0].mxu0
    %v1169 = vadd.f32 %v1004, %v1168
    %v1170 = vpop.f32.mrb[0].mxu0
    %1171 = vmatprep.mubr.f32.mxu0 0.0
    %v1172 = vand.u32 %v88, 4294901760
    %1173 = vmatmul.mubr.f32.gmra.mrb[0].mxu0 %v1172
    %v1174 = vpop.f32.mrb[0].mxu0
    %v1175 = vadd.f32 %v1010, %v1174
    %v1176 = vpop.f32.mrb[0].mxu0
    %1177 = vmatprep.mubr.f32.mxu0 0.0
    %v1178 = vand.u32 %v91, 4294901760
    %1179 = vmatmul.mubr.f32.gmra.mrb[0].mxu0 %v1178
    %v1180 = vpop.f32.mrb[0].mxu0
    %v1181 = vadd.f32 %v1016, %v1180
    %v1182 = vpop.f32.mrb[0].mxu0
    %1183 = vmatprep.mubr.f32.mxu0 0.0
    %v1184 = vand.u32 %v94, 4294901760
    %1185 = vmatmul.mubr.f32.gmra.mrb[0].mxu0 %v1184
    %v1186 = vpop.f32.mrb[0].mxu0
    %v1187 = vadd.f32 %v1022, %v1186
    %v1188 = vpop.f32.mrb[0].mxu0
    %1189 = vmatprep.mubr.f32.mxu0 0.0
    %v1190 = vand.u32 %v97, 4294901760
    %1191 = vmatmul.mubr.f32.gmra.mrb[0].mxu0 %v1190
    %v1192 = vpop.f32.mrb[0].mxu0
    %v1193 = vadd.f32 %v1028, %v1192
    %v1194 = vpop.f32.mrb[0].mxu0
    %1195 = vmatprep.mubr.f32.mxu0 0.0
    %v1196 = vand.u32 %v100, 4294901760
    %1197 = vmatmul.mubr.f32.gmra.mrb[0].mxu0 %v1196
    %v1198 = vpop.f32.mrb[0].mxu0
    %v1199 = vadd.f32 %v1034, %v1198
    %v1200 = vpop.f32.mrb[0].mxu0
    %1201 = vmatprep.mubr.f32.mxu0 0.0
    %v1202 = vand.u32 %v103, 4294901760
    %1203 = vmatmul.mubr.f32.gmra.mrb[0].mxu0 %v1202
    %v1204 = vpop.f32.mrb[0].mxu0
    %v1205 = vadd.f32 %v1040, %v1204
    %v1206 = vpop.f32.mrb[0].mxu0
    %1207 = vmatprep.mubr.f32.mxu0 0.0
    %v1208 = vand.u32 %v106, 4294901760
    %1209 = vmatmul.mubr.f32.gmra.mrb[0].mxu0 %v1208
    %v1210 = vpop.f32.mrb[0].mxu0
    %v1211 = vadd.f32 %v1046, %v1210
    %v1212 = vpop.f32.mrb[0].mxu0
    %1213 = vmatprep.mubr.f32.mxu0 0.0
    %v1214 = vand.u32 %v109, 4294901760
    %1215 = vmatmul.mubr.f32.gmra.mrb[0].mxu0 %v1214
    %v1216 = vpop.f32.mrb[0].mxu0
    %v1217 = vadd.f32 %v1052, %v1216
    %v1218 = vpop.f32.mrb[0].mxu0
    %1219 = vmatprep.mubr.f32.mxu0 0.0
    %v1220 = vand.u32 %v112, 4294901760
    %1221 = vmatmul.mubr.f32.gmra.mrb[0].mxu0 %v1220
    %v1222 = vpop.f32.mrb[0].mxu0
    %v1223 = vadd.f32 %v1058, %v1222
    %v1224 = vpop.f32.mrb[0].mxu0
    %1225 = vmatprep.mubr.f32.mxu0 0.0
    %v1226 = vand.u32 %v115, 4294901760
    %1227 = vmatmul.mubr.f32.gmra.mrb[0].mxu0 %v1226
    %v1228 = vpop.f32.mrb[0].mxu0
    %v1229 = vadd.f32 %v1064, %v1228
    %v1230 = vpop.f32.mrb[0].mxu0
    %1231 = vmatprep.mubr.f32.mxu0 0.0
    %v1232 = vand.u32 %v118, 4294901760
    %1233 = vmatmul.mubr.f32.gmra.mrb[0].mxu0 %v1232
    %v1234 = vpop.f32.mrb[0].mxu0
    %v1235 = vadd.f32 %v1070, %v1234
    %v1236 = vpop.f32.mrb[0].mxu0
    %1237 = vmatprep.mubr.f32.mxu0 0.0
    %v1238 = vand.u32 %v121, 4294901760
    %1239 = vmatmul.mubr.f32.gmra.mrb[0].mxu0 %v1238
    %v1240 = vpop.f32.mrb[0].mxu0
    %v1241 = vadd.f32 %v1076, %v1240
    %v1242 = vpop.f32.mrb[0].mxu0
    %1243 = vmatprep.mubr.f32.mxu0 0.0
    %v1244 = vand.u32 %v124, 4294901760
    %1245 = vmatmul.mubr.f32.gmra.mrb[0].mxu0 %v1244
    %v1246 = vpop.f32.mrb[0].mxu0
    %v1247 = vadd.f32 %v1082, %v1246
    %v1248 = vpop.f32.mrb[0].mxu0
    %1249 = vmatprep.mubr.f32.mxu0 0.0
    %v1250 = vand.u32 %v127, 4294901760
    %1251 = vmatmul.mubr.f32.gmra.mrb[0].mxu0 %v1250
    %v1252 = vpop.f32.mrb[0].mxu0
    %v1253 = vadd.f32 %v1088, %v1252
    %v1254 = vpop.f32.mrb[0].mxu0
    %1255 = vmatprep.mubr.f32.mxu0 0.0
    %v1256 = vand.u32 %v130, 4294901760
    %1257 = vmatmul.mubr.f32.gmra.mrb[0].mxu0 %v1256
    %v1258 = vpop.f32.mrb[0].mxu0
    %v1259 = vadd.f32 %v1094, %v1258
    %v1260 = vpop.f32.mrb[0].mxu0
    %1261 = vdwg.mxu0
    %v1262 = vmax.f32 %v1169, 0.0
    %v1263 = vmax.f32 %v1175, 0.0
    %v1264 = vmax.f32 %v1181, 0.0
    %v1265 = vmax.f32 %v1187, 0.0
    %v1266 = vmax.f32 %v1193, 0.0
    %v1267 = vmax.f32 %v1199, 0.0
    %v1268 = vmax.f32 %v1205, 0.0
    %v1269 = vmax.f32 %v1211, 0.0
    %v1270 = vmax.f32 %v1217, 0.0
    %v1271 = vmax.f32 %v1223, 0.0
    %v1272 = vmax.f32 %v1229, 0.0
    %v1273 = vmax.f32 %v1235, 0.0
    %v1274 = vmax.f32 %v1241, 0.0
    %v1275 = vmax.f32 %v1247, 0.0
    %v1276 = vmax.f32 %v1253, 0.0
    %v1277 = vmax.f32 %v1259, 0.0
    %v1278 = vld [vmem:[%s3] sm:$0xff]
    %v1279 = vld [vmem:[%s3 + $0x8] sm:$0xff]
    %v1280 = vld [vmem:[%s3 + $0x10] sm:$0xff]
    %v1281 = vld [vmem:[%s3 + $0x18] sm:$0xff]
    %v1282 = vld [vmem:[%s3 + $0x20] sm:$0xff]
    %v1283 = vld [vmem:[%s3 + $0x28] sm:$0xff]
    %v1284 = vld [vmem:[%s3 + $0x30] sm:$0xff]
    %v1285 = vld [vmem:[%s3 + $0x38] sm:$0xff]
    %v1286 = vld [vmem:[#allocation4] sm:$0x1]
    %v1288 = vlaneseq
    %v1289 = vshrl.u32 %v1288, 7
    %v1290 = vsub.s32 0, %v1289
    %v1291 = vrot.slane %v1286, %v1290
    %vm1293 = vcmask 523264
    %v1295 = vsel %vm1293, %v1262, 0
    %v1298 = vsel %vm1293, %v1263, 0
    %v1301 = vsel %vm1293, %v1264, 0
    %v1304 = vsel %vm1293, %v1265, 0
    %v1307 = vsel %vm1293, %v1266, 0
    %v1310 = vsel %vm1293, %v1267, 0
    %v1313 = vsel %vm1293, %v1268, 0
    %v1316 = vsel %vm1293, %v1269, 0
    %v1319 = vsel %vm1293, %v1270, 0
    %v1322 = vsel %vm1293, %v1271, 0
    %v1325 = vsel %vm1293, %v1272, 0
    %v1328 = vsel %vm1293, %v1273, 0
    %v1331 = vsel %vm1293, %v1274, 0
    %v1334 = vsel %vm1293, %v1275, 0
    %v1337 = vsel %vm1293, %v1276, 0
    %v1340 = vsel %vm1293, %v1277, 0
    %1342 = vmatprep.subr.mxu0 0.0
    %v1343 = vand.u32 %v1278, 4294901760
    %1344 = vmatpush1.msra.mxu0 %v1343
    %1345 = vmatprep.subr.mxu0 0.0
    %v1346 = vand.u32 %v1279, 4294901760
    %1347 = vmatpush1.msra.mxu0 %v1346
    %1348 = vmatprep.subr.mxu0 0.0
    %v1349 = vand.u32 %v1280, 4294901760
    %1350 = vmatpush1.msra.mxu0 %v1349
    %1351 = vmatprep.subr.mxu0 0.0
    %v1352 = vand.u32 %v1281, 4294901760
    %1353 = vmatpush1.msra.mxu0 %v1352
    %1354 = vmatprep.subr.mxu0 0.0
    %v1355 = vand.u32 %v1282, 4294901760
    %1356 = vmatpush1.msra.mxu0 %v1355
    %1357 = vmatprep.subr.mxu0 0.0
    %v1358 = vand.u32 %v1283, 4294901760
    %1359 = vmatpush1.msra.mxu0 %v1358
    %1360 = vmatprep.subr.mxu0 0.0
    %v1361 = vand.u32 %v1284, 4294901760
    %1362 = vmatpush1.msra.mxu0 %v1361
    %1363 = vmatprep.subr.mxu0 0.0
    %v1364 = vand.u32 %v1285, 4294901760
    %1365 = vmatpush1.msra.mxu0 %v1364
    %1366 = vmatprep.subr.mxu0 0.0
    %1367 = vmatpush1.msra.mxu0 0.0
    %1368 = vmatprep.subr.mxu0 0.0
    %1369 = vmatpush1.msra.mxu0 0.0
    %1370 = vmatprep.subr.mxu0 0.0
    %1371 = vmatpush1.msra.mxu0 0.0
    %1372 = vmatprep.subr.mxu0 0.0
    %1373 = vmatpush1.msra.mxu0 0.0
    %1374 = vmatprep.subr.mxu0 0.0
    %1375 = vmatpush1.msra.mxu0 0.0
    %1376 = vmatprep.subr.mxu0 0.0
    %1377 = vmatpush1.msra.mxu0 0.0
    %1378 = vmatprep.subr.mxu0 0.0
    %1379 = vmatpush1.msra.mxu0 0.0
    %1380 = vmatprep.subr.mxu0 0.0
    %1381 = vmatpush1.msra.mxu0 0.0
    %1382 = vmatprep.subr.mxu0 0.0
    %1383 = vmatpush1.msra.mxu0 0.0
    %1384 = vmatprep.subr.mxu0 0.0
    %1385 = vmatpush1.msra.mxu0 0.0
    %1386 = vmatprep.subr.mxu0 0.0
    %1387 = vmatpush1.msra.mxu0 0.0
    %1388 = vmatprep.subr.mxu0 0.0
    %1389 = vmatpush1.msra.mxu0 0.0
    %1390 = vmatprep.subr.mxu0 0.0
    %1391 = vmatpush1.msra.mxu0 0.0
    %1392 = vmatprep.subr.mxu0 0.0
    %1393 = vmatpush1.msra.mxu0 0.0
    %1394 = vmatprep.subr.mxu0 0.0
    %1395 = vmatpush1.msra.mxu0 0.0
    %1396 = vmatprep.subr.mxu0 0.0
    %1397 = vmatpush1.msra.mxu0 0.0
    %1398 = vmatprep.subr.mxu0 0.0
    %1399 = vmatpush1.msra.mxu0 0.0
    %1400 = vmatprep.subr.mxu0 0.0
    %1401 = vmatpush1.msra.mxu0 0.0
    %1402 = vmatprep.subr.mxu0 0.0
    %1403 = vmatpush1.msra.mxu0 0.0
    %1404 = vmatprep.subr.mxu0 0.0
    %1405 = vmatpush1.msra.mxu0 0.0
    %1406 = vmatprep.subr.mxu0 0.0
    %1407 = vmatpush1.msra.mxu0 0.0
    %1408 = vmatprep.subr.mxu0 0.0
    %1409 = vmatpush1.msra.mxu0 0.0
    %1410 = vmatprep.subr.mxu0 0.0
    %1411 = vmatpush1.msra.mxu0 0.0
    %1412 = vmatprep.subr.mxu0 0.0
    %1413 = vmatpush1.msra.mxu0 0.0
    %1414 = vmatprep.mubr.f32.mxu0 0.0
    %v1415 = vand.u32 %v1295, 4294901760
    %v1416 = vsub.f32 %v1295, %v1415
    %v1417 = vand.u32 %v1416, 4294901760
    %v1418 = vsub.f32 %v1416, %v1417
    %v1419 = vand.u32 %v1418, 4294901760
    %1420 = vmatmul.mubr.f32.gmra.mrb[0].mxu0 %v1419
    %v1421 = vpop.f32.mrb[0].mxu0
    %v1422 = vadd.f32 %v1291, %v1421
    %v1423 = vpop.f32.mrb[0].mxu0
    %1424 = vmatprep.mubr.f32.mxu0 0.0
    %v1425 = vand.u32 %v1298, 4294901760
    %v1426 = vsub.f32 %v1298, %v1425
    %v1427 = vand.u32 %v1426, 4294901760
    %v1428 = vsub.f32 %v1426, %v1427
    %v1429 = vand.u32 %v1428, 4294901760
    %1430 = vmatmul.mubr.f32.gmra.mrb[0].mxu0 %v1429
    %v1431 = vpop.f32.mrb[0].mxu0
    %v1432 = vadd.f32 %v1291, %v1431
    %v1433 = vpop.f32.mrb[0].mxu0
    %1434 = vmatprep.mubr.f32.mxu0 0.0
    %v1435 = vand.u32 %v1301, 4294901760
    %v1436 = vsub.f32 %v1301, %v1435
    %v1437 = vand.u32 %v1436, 4294901760
    %v1438 = vsub.f32 %v1436, %v1437
    %v1439 = vand.u32 %v1438, 4294901760
    %1440 = vmatmul.mubr.f32.gmra.mrb[0].mxu0 %v1439
    %v1441 = vpop.f32.mrb[0].mxu0
    %v1442 = vadd.f32 %v1291, %v1441
    %v1443 = vpop.f32.mrb[0].mxu0
    %1444 = vmatprep.mubr.f32.mxu0 0.0
    %v1445 = vand.u32 %v1304, 4294901760
    %v1446 = vsub.f32 %v1304, %v1445
    %v1447 = vand.u32 %v1446, 4294901760
    %v1448 = vsub.f32 %v1446, %v1447
    %v1449 = vand.u32 %v1448, 4294901760
    %1450 = vmatmul.mubr.f32.gmra.mrb[0].mxu0 %v1449
    %v1451 = vpop.f32.mrb[0].mxu0
    %v1452 = vadd.f32 %v1291, %v1451
    %v1453 = vpop.f32.mrb[0].mxu0
    %1454 = vmatprep.mubr.f32.mxu0 0.0
    %v1455 = vand.u32 %v1307, 4294901760
    %v1456 = vsub.f32 %v1307, %v1455
    %v1457 = vand.u32 %v1456, 4294901760
    %v1458 = vsub.f32 %v1456, %v1457
    %v1459 = vand.u32 %v1458, 4294901760
    %1460 = vmatmul.mubr.f32.gmra.mrb[0].mxu0 %v1459
    %v1461 = vpop.f32.mrb[0].mxu0
    %v1462 = vadd.f32 %v1291, %v1461
    %v1463 = vpop.f32.mrb[0].mxu0
    %1464 = vmatprep.mubr.f32.mxu0 0.0
    %v1465 = vand.u32 %v1310, 4294901760
    %v1466 = vsub.f32 %v1310, %v1465
    %v1467 = vand.u32 %v1466, 4294901760
    %v1468 = vsub.f32 %v1466, %v1467
    %v1469 = vand.u32 %v1468, 4294901760
    %1470 = vmatmul.mubr.f32.gmra.mrb[0].mxu0 %v1469
    %v1471 = vpop.f32.mrb[0].mxu0
    %v1472 = vadd.f32 %v1291, %v1471
    %v1473 = vpop.f32.mrb[0].mxu0
    %1474 = vmatprep.mubr.f32.mxu0 0.0
    %v1475 = vand.u32 %v1313, 4294901760
    %v1476 = vsub.f32 %v1313, %v1475
    %v1477 = vand.u32 %v1476, 4294901760
    %v1478 = vsub.f32 %v1476, %v1477
    %v1479 = vand.u32 %v1478, 4294901760
    %1480 = vmatmul.mubr.f32.gmra.mrb[0].mxu0 %v1479
    %v1481 = vpop.f32.mrb[0].mxu0
    %v1482 = vadd.f32 %v1291, %v1481
    %v1483 = vpop.f32.mrb[0].mxu0
    %1484 = vmatprep.mubr.f32.mxu0 0.0
    %v1485 = vand.u32 %v1316, 4294901760
    %v1486 = vsub.f32 %v1316, %v1485
    %v1487 = vand.u32 %v1486, 4294901760
    %v1488 = vsub.f32 %v1486, %v1487
    %v1489 = vand.u32 %v1488, 4294901760
    %1490 = vmatmul.mubr.f32.gmra.mrb[0].mxu0 %v1489
    %v1491 = vpop.f32.mrb[0].mxu0
    %v1492 = vadd.f32 %v1291, %v1491
    %v1493 = vpop.f32.mrb[0].mxu0
    %1494 = vmatprep.mubr.f32.mxu0 0.0
    %v1495 = vand.u32 %v1319, 4294901760
    %v1496 = vsub.f32 %v1319, %v1495
    %v1497 = vand.u32 %v1496, 4294901760
    %v1498 = vsub.f32 %v1496, %v1497
    %v1499 = vand.u32 %v1498, 4294901760
    %1500 = vmatmul.mubr.f32.gmra.mrb[0].mxu0 %v1499
    %v1501 = vpop.f32.mrb[0].mxu0
    %v1502 = vadd.f32 %v1291, %v1501
    %v1503 = vpop.f32.mrb[0].mxu0
    %1504 = vmatprep.mubr.f32.mxu0 0.0
    %v1505 = vand.u32 %v1322, 4294901760
    %v1506 = vsub.f32 %v1322, %v1505
    %v1507 = vand.u32 %v1506, 4294901760
    %v1508 = vsub.f32 %v1506, %v1507
    %v1509 = vand.u32 %v1508, 4294901760
    %1510 = vmatmul.mubr.f32.gmra.mrb[0].mxu0 %v1509
    %v1511 = vpop.f32.mrb[0].mxu0
    %v1512 = vadd.f32 %v1291, %v1511
    %v1513 = vpop.f32.mrb[0].mxu0
    %1514 = vmatprep.mubr.f32.mxu0 0.0
    %v1515 = vand.u32 %v1325, 4294901760
    %v1516 = vsub.f32 %v1325, %v1515
    %v1517 = vand.u32 %v1516, 4294901760
    %v1518 = vsub.f32 %v1516, %v1517
    %v1519 = vand.u32 %v1518, 4294901760
    %1520 = vmatmul.mubr.f32.gmra.mrb[0].mxu0 %v1519
    %v1521 = vpop.f32.mrb[0].mxu0
    %v1522 = vadd.f32 %v1291, %v1521
    %v1523 = vpop.f32.mrb[0].mxu0
    %1524 = vmatprep.mubr.f32.mxu0 0.0
    %v1525 = vand.u32 %v1328, 4294901760
    %v1526 = vsub.f32 %v1328, %v1525
    %v1527 = vand.u32 %v1526, 4294901760
    %v1528 = vsub.f32 %v1526, %v1527
    %v1529 = vand.u32 %v1528, 4294901760
    %1530 = vmatmul.mubr.f32.gmra.mrb[0].mxu0 %v1529
    %v1531 = vpop.f32.mrb[0].mxu0
    %v1532 = vadd.f32 %v1291, %v1531
    %v1533 = vpop.f32.mrb[0].mxu0
    %1534 = vmatprep.mubr.f32.mxu0 0.0
    %v1535 = vand.u32 %v1331, 4294901760
    %v1536 = vsub.f32 %v1331, %v1535
    %v1537 = vand.u32 %v1536, 4294901760
    %v1538 = vsub.f32 %v1536, %v1537
    %v1539 = vand.u32 %v1538, 4294901760
    %1540 = vmatmul.mubr.f32.gmra.mrb[0].mxu0 %v1539
    %v1541 = vpop.f32.mrb[0].mxu0
    %v1542 = vadd.f32 %v1291, %v1541
    %v1543 = vpop.f32.mrb[0].mxu0
    %1544 = vmatprep.mubr.f32.mxu0 0.0
    %v1545 = vand.u32 %v1334, 4294901760
    %v1546 = vsub.f32 %v1334, %v1545
    %v1547 = vand.u32 %v1546, 4294901760
    %v1548 = vsub.f32 %v1546, %v1547
    %v1549 = vand.u32 %v1548, 4294901760
    %1550 = vmatmul.mubr.f32.gmra.mrb[0].mxu0 %v1549
    %v1551 = vpop.f32.mrb[0].mxu0
    %v1552 = vadd.f32 %v1291, %v1551
    %v1553 = vpop.f32.mrb[0].mxu0
    %1554 = vmatprep.mubr.f32.mxu0 0.0
    %v1555 = vand.u32 %v1337, 4294901760
    %v1556 = vsub.f32 %v1337, %v1555
    %v1557 = vand.u32 %v1556, 4294901760
    %v1558 = vsub.f32 %v1556, %v1557
    %v1559 = vand.u32 %v1558, 4294901760
    %1560 = vmatmul.mubr.f32.gmra.mrb[0].mxu0 %v1559
    %v1561 = vpop.f32.mrb[0].mxu0
    %v1562 = vadd.f32 %v1291, %v1561
    %v1563 = vpop.f32.mrb[0].mxu0
    %1564 = vmatprep.mubr.f32.mxu0 0.0
    %v1565 = vand.u32 %v1340, 4294901760
    %v1566 = vsub.f32 %v1340, %v1565
    %v1567 = vand.u32 %v1566, 4294901760
    %v1568 = vsub.f32 %v1566, %v1567
    %v1569 = vand.u32 %v1568, 4294901760
    %1570 = vmatmul.mubr.f32.gmra.mrb[0].mxu0 %v1569
    %v1571 = vpop.f32.mrb[0].mxu0
    %v1572 = vadd.f32 %v1291, %v1571
    %v1573 = vpop.f32.mrb[0].mxu0
    %1574 = vdwg.mxu0
    %1575 = vmatprep.subr.mxu0 0.0
    %v1576 = vand.u32 %v1278, 4294901760
    %v1577 = vsub.f32 %v1278, %v1576
    %v1578 = vand.u32 %v1577, 4294901760
    %v1579 = vsub.f32 %v1577, %v1578
    %v1580 = vand.u32 %v1579, 4294901760
    %1581 = vmatpush1.msra.mxu0 %v1580
    %1582 = vmatprep.subr.mxu0 0.0
    %v1583 = vand.u32 %v1279, 4294901760
    %v1584 = vsub.f32 %v1279, %v1583
    %v1585 = vand.u32 %v1584, 4294901760
    %v1586 = vsub.f32 %v1584, %v1585
    %v1587 = vand.u32 %v1586, 4294901760
    %1588 = vmatpush1.msra.mxu0 %v1587
    %1589 = vmatprep.subr.mxu0 0.0
    %v1590 = vand.u32 %v1280, 4294901760
    %v1591 = vsub.f32 %v1280, %v1590
    %v1592 = vand.u32 %v1591, 4294901760
    %v1593 = vsub.f32 %v1591, %v1592
    %v1594 = vand.u32 %v1593, 4294901760
    %1595 = vmatpush1.msra.mxu0 %v1594
    %1596 = vmatprep.subr.mxu0 0.0
    %v1597 = vand.u32 %v1281, 4294901760
    %v1598 = vsub.f32 %v1281, %v1597
    %v1599 = vand.u32 %v1598, 4294901760
    %v1600 = vsub.f32 %v1598, %v1599
    %v1601 = vand.u32 %v1600, 4294901760
    %1602 = vmatpush1.msra.mxu0 %v1601
    %1603 = vmatprep.subr.mxu0 0.0
    %v1604 = vand.u32 %v1282, 4294901760
    %v1605 = vsub.f32 %v1282, %v1604
    %v1606 = vand.u32 %v1605, 4294901760
    %v1607 = vsub.f32 %v1605, %v1606
    %v1608 = vand.u32 %v1607, 4294901760
    %1609 = vmatpush1.msra.mxu0 %v1608
    %1610 = vmatprep.subr.mxu0 0.0
    %v1611 = vand.u32 %v1283, 4294901760
    %v1612 = vsub.f32 %v1283, %v1611
    %v1613 = vand.u32 %v1612, 4294901760
    %v1614 = vsub.f32 %v1612, %v1613
    %v1615 = vand.u32 %v1614, 4294901760
    %1616 = vmatpush1.msra.mxu0 %v1615
    %1617 = vmatprep.subr.mxu0 0.0
    %v1618 = vand.u32 %v1284, 4294901760
    %v1619 = vsub.f32 %v1284, %v1618
    %v1620 = vand.u32 %v1619, 4294901760
    %v1621 = vsub.f32 %v1619, %v1620
    %v1622 = vand.u32 %v1621, 4294901760
    %1623 = vmatpush1.msra.mxu0 %v1622
    %1624 = vmatprep.subr.mxu0 0.0
    %v1625 = vand.u32 %v1285, 4294901760
    %v1626 = vsub.f32 %v1285, %v1625
    %v1627 = vand.u32 %v1626, 4294901760
    %v1628 = vsub.f32 %v1626, %v1627
    %v1629 = vand.u32 %v1628, 4294901760
    %1630 = vmatpush1.msra.mxu0 %v1629
    %1631 = vmatprep.subr.mxu0 0.0
    %1632 = vmatpush1.msra.mxu0 0.0
    %1633 = vmatprep.subr.mxu0 0.0
    %1634 = vmatpush1.msra.mxu0 0.0
    %1635 = vmatprep.subr.mxu0 0.0
    %1636 = vmatpush1.msra.mxu0 0.0
    %1637 = vmatprep.subr.mxu0 0.0
    %1638 = vmatpush1.msra.mxu0 0.0
    %1639 = vmatprep.subr.mxu0 0.0
    %1640 = vmatpush1.msra.mxu0 0.0
    %1641 = vmatprep.subr.mxu0 0.0
    %1642 = vmatpush1.msra.mxu0 0.0
    %1643 = vmatprep.subr.mxu0 0.0
    %1644 = vmatpush1.msra.mxu0 0.0
    %1645 = vmatprep.subr.mxu0 0.0
    %1646 = vmatpush1.msra.mxu0 0.0
    %1647 = vmatprep.subr.mxu0 0.0
    %1648 = vmatpush1.msra.mxu0 0.0
    %1649 = vmatprep.subr.mxu0 0.0
    %1650 = vmatpush1.msra.mxu0 0.0
    %1651 = vmatprep.subr.mxu0 0.0
    %1652 = vmatpush1.msra.mxu0 0.0
    %1653 = vmatprep.subr.mxu0 0.0
    %1654 = vmatpush1.msra.mxu0 0.0
    %1655 = vmatprep.subr.mxu0 0.0
    %1656 = vmatpush1.msra.mxu0 0.0
    %1657 = vmatprep.subr.mxu0 0.0
    %1658 = vmatpush1.msra.mxu0 0.0
    %1659 = vmatprep.subr.mxu0 0.0
    %1660 = vmatpush1.msra.mxu0 0.0
    %1661 = vmatprep.subr.mxu0 0.0
    %1662 = vmatpush1.msra.mxu0 0.0
    %1663 = vmatprep.subr.mxu0 0.0
    %1664 = vmatpush1.msra.mxu0 0.0
    %1665 = vmatprep.subr.mxu0 0.0
    %1666 = vmatpush1.msra.mxu0 0.0
    %1667 = vmatprep.subr.mxu0 0.0
    %1668 = vmatpush1.msra.mxu0 0.0
    %1669 = vmatprep.subr.mxu0 0.0
    %1670 = vmatpush1.msra.mxu0 0.0
    %1671 = vmatprep.subr.mxu0 0.0
    %1672 = vmatpush1.msra.mxu0 0.0
    %1673 = vmatprep.subr.mxu0 0.0
    %1674 = vmatpush1.msra.mxu0 0.0
    %1675 = vmatprep.subr.mxu0 0.0
    %1676 = vmatpush1.msra.mxu0 0.0
    %1677 = vmatprep.subr.mxu0 0.0
    %1678 = vmatpush1.msra.mxu0 0.0
    %1679 = vmatprep.mubr.f32.mxu0 0.0
    %v1680 = vand.u32 %v1295, 4294901760
    %1681 = vmatmul.mubr.f32.gmra.mrb[0].mxu0 %v1680
    %v1682 = vpop.f32.mrb[0].mxu0
    %v1683 = vadd.f32 %v1422, %v1682
    %v1684 = vpop.f32.mrb[0].mxu0
    %1685 = vmatprep.mubr.f32.mxu0 0.0
    %v1686 = vand.u32 %v1298, 4294901760
    %1687 = vmatmul.mubr.f32.gmra.mrb[0].mxu0 %v1686
    %v1688 = vpop.f32.mrb[0].mxu0
    %v1689 = vadd.f32 %v1432, %v1688
    %v1690 = vpop.f32.mrb[0].mxu0
    %1691 = vmatprep.mubr.f32.mxu0 0.0
    %v1692 = vand.u32 %v1301, 4294901760
    %1693 = vmatmul.mubr.f32.gmra.mrb[0].mxu0 %v1692
    %v1694 = vpop.f32.mrb[0].mxu0
    %v1695 = vadd.f32 %v1442, %v1694
    %v1696 = vpop.f32.mrb[0].mxu0
    %1697 = vmatprep.mubr.f32.mxu0 0.0
    %v1698 = vand.u32 %v1304, 4294901760
    %1699 = vmatmul.mubr.f32.gmra.mrb[0].mxu0 %v1698
    %v1700 = vpop.f32.mrb[0].mxu0
    %v1701 = vadd.f32 %v1452, %v1700
    %v1702 = vpop.f32.mrb[0].mxu0
    %1703 = vmatprep.mubr.f32.mxu0 0.0
    %v1704 = vand.u32 %v1307, 4294901760
    %1705 = vmatmul.mubr.f32.gmra.mrb[0].mxu0 %v1704
    %v1706 = vpop.f32.mrb[0].mxu0
    %v1707 = vadd.f32 %v1462, %v1706
    %v1708 = vpop.f32.mrb[0].mxu0
    %1709 = vmatprep.mubr.f32.mxu0 0.0
    %v1710 = vand.u32 %v1310, 4294901760
    %1711 = vmatmul.mubr.f32.gmra.mrb[0].mxu0 %v1710
    %v1712 = vpop.f32.mrb[0].mxu0
    %v1713 = vadd.f32 %v1472, %v1712
    %v1714 = vpop.f32.mrb[0].mxu0
    %1715 = vmatprep.mubr.f32.mxu0 0.0
    %v1716 = vand.u32 %v1313, 4294901760
    %1717 = vmatmul.mubr.f32.gmra.mrb[0].mxu0 %v1716
    %v1718 = vpop.f32.mrb[0].mxu0
    %v1719 = vadd.f32 %v1482, %v1718
    %v1720 = vpop.f32.mrb[0].mxu0
    %1721 = vmatprep.mubr.f32.mxu0 0.0
    %v1722 = vand.u32 %v1316, 4294901760
    %1723 = vmatmul.mubr.f32.gmra.mrb[0].mxu0 %v1722
    %v1724 = vpop.f32.mrb[0].mxu0
    %v1725 = vadd.f32 %v1492, %v1724
    %v1726 = vpop.f32.mrb[0].mxu0
    %1727 = vmatprep.mubr.f32.mxu0 0.0
    %v1728 = vand.u32 %v1319, 4294901760
    %1729 = vmatmul.mubr.f32.gmra.mrb[0].mxu0 %v1728
    %v1730 = vpop.f32.mrb[0].mxu0
    %v1731 = vadd.f32 %v1502, %v1730
    %v1732 = vpop.f32.mrb[0].mxu0
    %1733 = vmatprep.mubr.f32.mxu0 0.0
    %v1734 = vand.u32 %v1322, 4294901760
    %1735 = vmatmul.mubr.f32.gmra.mrb[0].mxu0 %v1734
    %v1736 = vpop.f32.mrb[0].mxu0
    %v1737 = vadd.f32 %v1512, %v1736
    %v1738 = vpop.f32.mrb[0].mxu0
    %1739 = vmatprep.mubr.f32.mxu0 0.0
    %v1740 = vand.u32 %v1325, 4294901760
    %1741 = vmatmul.mubr.f32.gmra.mrb[0].mxu0 %v1740
    %v1742 = vpop.f32.mrb[0].mxu0
    %v1743 = vadd.f32 %v1522, %v1742
    %v1744 = vpop.f32.mrb[0].mxu0
    %1745 = vmatprep.mubr.f32.mxu0 0.0
    %v1746 = vand.u32 %v1328, 4294901760
    %1747 = vmatmul.mubr.f32.gmra.mrb[0].mxu0 %v1746
    %v1748 = vpop.f32.mrb[0].mxu0
    %v1749 = vadd.f32 %v1532, %v1748
    %v1750 = vpop.f32.mrb[0].mxu0
    %1751 = vmatprep.mubr.f32.mxu0 0.0
    %v1752 = vand.u32 %v1331, 4294901760
    %1753 = vmatmul.mubr.f32.gmra.mrb[0].mxu0 %v1752
    %v1754 = vpop.f32.mrb[0].mxu0
    %v1755 = vadd.f32 %v1542, %v1754
    %v1756 = vpop.f32.mrb[0].mxu0
    %1757 = vmatprep.mubr.f32.mxu0 0.0
    %v1758 = vand.u32 %v1334, 4294901760
    %1759 = vmatmul.mubr.f32.gmra.mrb[0].mxu0 %v1758
    %v1760 = vpop.f32.mrb[0].mxu0
    %v1761 = vadd.f32 %v1552, %v1760
    %v1762 = vpop.f32.mrb[0].mxu0
    %1763 = vmatprep.mubr.f32.mxu0 0.0
    %v1764 = vand.u32 %v1337, 4294901760
    %1765 = vmatmul.mubr.f32.gmra.mrb[0].mxu0 %v1764
    %v1766 = vpop.f32.mrb[0].mxu0
    %v1767 = vadd.f32 %v1562, %v1766
    %v1768 = vpop.f32.mrb[0].mxu0
    %1769 = vmatprep.mubr.f32.mxu0 0.0
    %v1770 = vand.u32 %v1340, 4294901760
    %1771 = vmatmul.mubr.f32.gmra.mrb[0].mxu0 %v1770
    %v1772 = vpop.f32.mrb[0].mxu0
    %v1773 = vadd.f32 %v1572, %v1772
    %v1774 = vpop.f32.mrb[0].mxu0
    %1775 = vdwg.mxu0
    %1776 = vmatprep.subr.mxu0 0.0
    %v1777 = vand.u32 %v1278, 4294901760
    %v1778 = vsub.f32 %v1278, %v1777
    %1779 = vmatpush1.msra.mxu0 %v1778
    %1780 = vmatprep.subr.mxu0 0.0
    %v1781 = vand.u32 %v1279, 4294901760
    %v1782 = vsub.f32 %v1279, %v1781
    %1783 = vmatpush1.msra.mxu0 %v1782
    %1784 = vmatprep.subr.mxu0 0.0
    %v1785 = vand.u32 %v1280, 4294901760
    %v1786 = vsub.f32 %v1280, %v1785
    %1787 = vmatpush1.msra.mxu0 %v1786
    %1788 = vmatprep.subr.mxu0 0.0
    %v1789 = vand.u32 %v1281, 4294901760
    %v1790 = vsub.f32 %v1281, %v1789
    %1791 = vmatpush1.msra.mxu0 %v1790
    %1792 = vmatprep.subr.mxu0 0.0
    %v1793 = vand.u32 %v1282, 4294901760
    %v1794 = vsub.f32 %v1282, %v1793
    %1795 = vmatpush1.msra.mxu0 %v1794
    %1796 = vmatprep.subr.mxu0 0.0
    %v1797 = vand.u32 %v1283, 4294901760
    %v1798 = vsub.f32 %v1283, %v1797
    %1799 = vmatpush1.msra.mxu0 %v1798
    %1800 = vmatprep.subr.mxu0 0.0
    %v1801 = vand.u32 %v1284, 4294901760
    %v1802 = vsub.f32 %v1284, %v1801
    %1803 = vmatpush1.msra.mxu0 %v1802
    %1804 = vmatprep.subr.mxu0 0.0
    %v1805 = vand.u32 %v1285, 4294901760
    %v1806 = vsub.f32 %v1285, %v1805
    %1807 = vmatpush1.msra.mxu0 %v1806
    %1808 = vmatprep.subr.mxu0 0.0
    %1809 = vmatpush1.msra.mxu0 0.0
    %1810 = vmatprep.subr.mxu0 0.0
    %1811 = vmatpush1.msra.mxu0 0.0
    %1812 = vmatprep.subr.mxu0 0.0
    %1813 = vmatpush1.msra.mxu0 0.0
    %1814 = vmatprep.subr.mxu0 0.0
    %1815 = vmatpush1.msra.mxu0 0.0
    %1816 = vmatprep.subr.mxu0 0.0
    %1817 = vmatpush1.msra.mxu0 0.0
    %1818 = vmatprep.subr.mxu0 0.0
    %1819 = vmatpush1.msra.mxu0 0.0
    %1820 = vmatprep.subr.mxu0 0.0
    %1821 = vmatpush1.msra.mxu0 0.0
    %1822 = vmatprep.subr.mxu0 0.0
    %1823 = vmatpush1.msra.mxu0 0.0
    %1824 = vmatprep.subr.mxu0 0.0
    %1825 = vmatpush1.msra.mxu0 0.0
    %1826 = vmatprep.subr.mxu0 0.0
    %1827 = vmatpush1.msra.mxu0 0.0
    %1828 = vmatprep.subr.mxu0 0.0
    %1829 = vmatpush1.msra.mxu0 0.0
    %1830 = vmatprep.subr.mxu0 0.0
    %1831 = vmatpush1.msra.mxu0 0.0
    %1832 = vmatprep.subr.mxu0 0.0
    %1833 = vmatpush1.msra.mxu0 0.0
    %1834 = vmatprep.subr.mxu0 0.0
    %1835 = vmatpush1.msra.mxu0 0.0
    %1836 = vmatprep.subr.mxu0 0.0
    %1837 = vmatpush1.msra.mxu0 0.0
    %1838 = vmatprep.subr.mxu0 0.0
    %1839 = vmatpush1.msra.mxu0 0.0
    %1840 = vmatprep.subr.mxu0 0.0
    %1841 = vmatpush1.msra.mxu0 0.0
    %1842 = vmatprep.subr.mxu0 0.0
    %1843 = vmatpush1.msra.mxu0 0.0
    %1844 = vmatprep.subr.mxu0 0.0
    %1845 = vmatpush1.msra.mxu0 0.0
    %1846 = vmatprep.subr.mxu0 0.0
    %1847 = vmatpush1.msra.mxu0 0.0
    %1848 = vmatprep.subr.mxu0 0.0
    %1849 = vmatpush1.msra.mxu0 0.0
    %1850 = vmatprep.subr.mxu0 0.0
    %1851 = vmatpush1.msra.mxu0 0.0
    %1852 = vmatprep.subr.mxu0 0.0
    %1853 = vmatpush1.msra.mxu0 0.0
    %1854 = vmatprep.subr.mxu0 0.0
    %1855 = vmatpush1.msra.mxu0 0.0
    %1856 = vmatprep.mubr.f32.mxu0 0.0
    %v1857 = vand.u32 %v1295, 4294901760
    %v1858 = vsub.f32 %v1295, %v1857
    %1859 = vmatmul.mubr.f32.gmra.mrb[0].mxu0 %v1858
    %v1860 = vpop.f32.mrb[0].mxu0
    %v1861 = vadd.f32 %v1683, %v1860
    %v1862 = vpop.f32.mrb[0].mxu0
    %1863 = vmatprep.mubr.f32.mxu0 0.0
    %v1864 = vand.u32 %v1298, 4294901760
    %v1865 = vsub.f32 %v1298, %v1864
    %1866 = vmatmul.mubr.f32.gmra.mrb[0].mxu0 %v1865
    %v1867 = vpop.f32.mrb[0].mxu0
    %v1868 = vadd.f32 %v1689, %v1867
    %v1869 = vpop.f32.mrb[0].mxu0
    %1870 = vmatprep.mubr.f32.mxu0 0.0
    %v1871 = vand.u32 %v1301, 4294901760
    %v1872 = vsub.f32 %v1301, %v1871
    %1873 = vmatmul.mubr.f32.gmra.mrb[0].mxu0 %v1872
    %v1874 = vpop.f32.mrb[0].mxu0
    %v1875 = vadd.f32 %v1695, %v1874
    %v1876 = vpop.f32.mrb[0].mxu0
    %1877 = vmatprep.mubr.f32.mxu0 0.0
    %v1878 = vand.u32 %v1304, 4294901760
    %v1879 = vsub.f32 %v1304, %v1878
    %1880 = vmatmul.mubr.f32.gmra.mrb[0].mxu0 %v1879
    %v1881 = vpop.f32.mrb[0].mxu0
    %v1882 = vadd.f32 %v1701, %v1881
    %v1883 = vpop.f32.mrb[0].mxu0
    %1884 = vmatprep.mubr.f32.mxu0 0.0
    %v1885 = vand.u32 %v1307, 4294901760
    %v1886 = vsub.f32 %v1307, %v1885
    %1887 = vmatmul.mubr.f32.gmra.mrb[0].mxu0 %v1886
    %v1888 = vpop.f32.mrb[0].mxu0
    %v1889 = vadd.f32 %v1707, %v1888
    %v1890 = vpop.f32.mrb[0].mxu0
    %1891 = vmatprep.mubr.f32.mxu0 0.0
    %v1892 = vand.u32 %v1310, 4294901760
    %v1893 = vsub.f32 %v1310, %v1892
    %1894 = vmatmul.mubr.f32.gmra.mrb[0].mxu0 %v1893
    %v1895 = vpop.f32.mrb[0].mxu0
    %v1896 = vadd.f32 %v1713, %v1895
    %v1897 = vpop.f32.mrb[0].mxu0
    %1898 = vmatprep.mubr.f32.mxu0 0.0
    %v1899 = vand.u32 %v1313, 4294901760
    %v1900 = vsub.f32 %v1313, %v1899
    %1901 = vmatmul.mubr.f32.gmra.mrb[0].mxu0 %v1900
    %v1902 = vpop.f32.mrb[0].mxu0
    %v1903 = vadd.f32 %v1719, %v1902
    %v1904 = vpop.f32.mrb[0].mxu0
    %1905 = vmatprep.mubr.f32.mxu0 0.0
    %v1906 = vand.u32 %v1316, 4294901760
    %v1907 = vsub.f32 %v1316, %v1906
    %1908 = vmatmul.mubr.f32.gmra.mrb[0].mxu0 %v1907
    %v1909 = vpop.f32.mrb[0].mxu0
    %v1910 = vadd.f32 %v1725, %v1909
    %v1911 = vpop.f32.mrb[0].mxu0
    %1912 = vmatprep.mubr.f32.mxu0 0.0
    %v1913 = vand.u32 %v1319, 4294901760
    %v1914 = vsub.f32 %v1319, %v1913
    %1915 = vmatmul.mubr.f32.gmra.mrb[0].mxu0 %v1914
    %v1916 = vpop.f32.mrb[0].mxu0
    %v1917 = vadd.f32 %v1731, %v1916
    %v1918 = vpop.f32.mrb[0].mxu0
    %1919 = vmatprep.mubr.f32.mxu0 0.0
    %v1920 = vand.u32 %v1322, 4294901760
    %v1921 = vsub.f32 %v1322, %v1920
    %1922 = vmatmul.mubr.f32.gmra.mrb[0].mxu0 %v1921
    %v1923 = vpop.f32.mrb[0].mxu0
    %v1924 = vadd.f32 %v1737, %v1923
    %v1925 = vpop.f32.mrb[0].mxu0
    %1926 = vmatprep.mubr.f32.mxu0 0.0
    %v1927 = vand.u32 %v1325, 4294901760
    %v1928 = vsub.f32 %v1325, %v1927
    %1929 = vmatmul.mubr.f32.gmra.mrb[0].mxu0 %v1928
    %v1930 = vpop.f32.mrb[0].mxu0
    %v1931 = vadd.f32 %v1743, %v1930
    %v1932 = vpop.f32.mrb[0].mxu0
    %1933 = vmatprep.mubr.f32.mxu0 0.0
    %v1934 = vand.u32 %v1328, 4294901760
    %v1935 = vsub.f32 %v1328, %v1934
    %1936 = vmatmul.mubr.f32.gmra.mrb[0].mxu0 %v1935
    %v1937 = vpop.f32.mrb[0].mxu0
    %v1938 = vadd.f32 %v1749, %v1937
    %v1939 = vpop.f32.mrb[0].mxu0
    %1940 = vmatprep.mubr.f32.mxu0 0.0
    %v1941 = vand.u32 %v1331, 4294901760
    %v1942 = vsub.f32 %v1331, %v1941
    %1943 = vmatmul.mubr.f32.gmra.mrb[0].mxu0 %v1942
    %v1944 = vpop.f32.mrb[0].mxu0
    %v1945 = vadd.f32 %v1755, %v1944
    %v1946 = vpop.f32.mrb[0].mxu0
    %1947 = vmatprep.mubr.f32.mxu0 0.0
    %v1948 = vand.u32 %v1334, 4294901760
    %v1949 = vsub.f32 %v1334, %v1948
    %1950 = vmatmul.mubr.f32.gmra.mrb[0].mxu0 %v1949
    %v1951 = vpop.f32.mrb[0].mxu0
    %v1952 = vadd.f32 %v1761, %v1951
    %v1953 = vpop.f32.mrb[0].mxu0
    %1954 = vmatprep.mubr.f32.mxu0 0.0
    %v1955 = vand.u32 %v1337, 4294901760
    %v1956 = vsub.f32 %v1337, %v1955
    %1957 = vmatmul.mubr.f32.gmra.mrb[0].mxu0 %v1956
    %v1958 = vpop.f32.mrb[0].mxu0
    %v1959 = vadd.f32 %v1767, %v1958
    %v1960 = vpop.f32.mrb[0].mxu0
    %1961 = vmatprep.mubr.f32.mxu0 0.0
    %v1962 = vand.u32 %v1340, 4294901760
    %v1963 = vsub.f32 %v1340, %v1962
    %1964 = vmatmul.mubr.f32.gmra.mrb[0].mxu0 %v1963
    %v1965 = vpop.f32.mrb[0].mxu0
    %v1966 = vadd.f32 %v1773, %v1965
    %v1967 = vpop.f32.mrb[0].mxu0
    %1968 = vdwg.mxu0
    %1969 = vmatprep.subr.mxu0 0.0
    %v1970 = vand.u32 %v1278, 4294901760
    %1971 = vmatpush1.msra.mxu0 %v1970
    %1972 = vmatprep.subr.mxu0 0.0
    %v1973 = vand.u32 %v1279, 4294901760
    %1974 = vmatpush1.msra.mxu0 %v1973
    %1975 = vmatprep.subr.mxu0 0.0
    %v1976 = vand.u32 %v1280, 4294901760
    %1977 = vmatpush1.msra.mxu0 %v1976
    %1978 = vmatprep.subr.mxu0 0.0
    %v1979 = vand.u32 %v1281, 4294901760
    %1980 = vmatpush1.msra.mxu0 %v1979
    %1981 = vmatprep.subr.mxu0 0.0
    %v1982 = vand.u32 %v1282, 4294901760
    %1983 = vmatpush1.msra.mxu0 %v1982
    %1984 = vmatprep.subr.mxu0 0.0
    %v1985 = vand.u32 %v1283, 4294901760
    %1986 = vmatpush1.msra.mxu0 %v1985
    %1987 = vmatprep.subr.mxu0 0.0
    %v1988 = vand.u32 %v1284, 4294901760
    %1989 = vmatpush1.msra.mxu0 %v1988
    %1990 = vmatprep.subr.mxu0 0.0
    %v1991 = vand.u32 %v1285, 4294901760
    %1992 = vmatpush1.msra.mxu0 %v1991
    %1993 = vmatprep.subr.mxu0 0.0
    %1994 = vmatpush1.msra.mxu0 0.0
    %1995 = vmatprep.subr.mxu0 0.0
    %1996 = vmatpush1.msra.mxu0 0.0
    %1997 = vmatprep.subr.mxu0 0.0
    %1998 = vmatpush1.msra.mxu0 0.0
    %1999 = vmatprep.subr.mxu0 0.0
    %2000 = vmatpush1.msra.mxu0 0.0
    %2001 = vmatprep.subr.mxu0 0.0
    %2002 = vmatpush1.msra.mxu0 0.0
    %2003 = vmatprep.subr.mxu0 0.0
    %2004 = vmatpush1.msra.mxu0 0.0
    %2005 = vmatprep.subr.mxu0 0.0
    %2006 = vmatpush1.msra.mxu0 0.0
    %2007 = vmatprep.subr.mxu0 0.0
    %2008 = vmatpush1.msra.mxu0 0.0
    %2009 = vmatprep.subr.mxu0 0.0
    %2010 = vmatpush1.msra.mxu0 0.0
    %2011 = vmatprep.subr.mxu0 0.0
    %2012 = vmatpush1.msra.mxu0 0.0
    %2013 = vmatprep.subr.mxu0 0.0
    %2014 = vmatpush1.msra.mxu0 0.0
    %2015 = vmatprep.subr.mxu0 0.0
    %2016 = vmatpush1.msra.mxu0 0.0
    %2017 = vmatprep.subr.mxu0 0.0
    %2018 = vmatpush1.msra.mxu0 0.0
    %2019 = vmatprep.subr.mxu0 0.0
    %2020 = vmatpush1.msra.mxu0 0.0
    %2021 = vmatprep.subr.mxu0 0.0
    %2022 = vmatpush1.msra.mxu0 0.0
    %2023 = vmatprep.subr.mxu0 0.0
    %2024 = vmatpush1.msra.mxu0 0.0
    %2025 = vmatprep.subr.mxu0 0.0
    %2026 = vmatpush1.msra.mxu0 0.0
    %2027 = vmatprep.subr.mxu0 0.0
    %2028 = vmatpush1.msra.mxu0 0.0
    %2029 = vmatprep.subr.mxu0 0.0
    %2030 = vmatpush1.msra.mxu0 0.0
    %2031 = vmatprep.subr.mxu0 0.0
    %2032 = vmatpush1.msra.mxu0 0.0
    %2033 = vmatprep.subr.mxu0 0.0
    %2034 = vmatpush1.msra.mxu0 0.0
    %2035 = vmatprep.subr.mxu0 0.0
    %2036 = vmatpush1.msra.mxu0 0.0
    %2037 = vmatprep.subr.mxu0 0.0
    %2038 = vmatpush1.msra.mxu0 0.0
    %2039 = vmatprep.subr.mxu0 0.0
    %2040 = vmatpush1.msra.mxu0 0.0
    %2041 = vmatprep.mubr.f32.mxu0 0.0
    %v2042 = vand.u32 %v1295, 4294901760
    %v2043 = vsub.f32 %v1295, %v2042
    %v2044 = vand.u32 %v2043, 4294901760
    %2045 = vmatmul.mubr.f32.gmra.mrb[0].mxu0 %v2044
    %v2046 = vpop.f32.mrb[0].mxu0
    %v2047 = vadd.f32 %v1861, %v2046
    %v2048 = vpop.f32.mrb[0].mxu0
    %2049 = vmatprep.mubr.f32.mxu0 0.0
    %v2050 = vand.u32 %v1298, 4294901760
    %v2051 = vsub.f32 %v1298, %v2050
    %v2052 = vand.u32 %v2051, 4294901760
    %2053 = vmatmul.mubr.f32.gmra.mrb[0].mxu0 %v2052
    %v2054 = vpop.f32.mrb[0].mxu0
    %v2055 = vadd.f32 %v1868, %v2054
    %v2056 = vpop.f32.mrb[0].mxu0
    %2057 = vmatprep.mubr.f32.mxu0 0.0
    %v2058 = vand.u32 %v1301, 4294901760
    %v2059 = vsub.f32 %v1301, %v2058
    %v2060 = vand.u32 %v2059, 4294901760
    %2061 = vmatmul.mubr.f32.gmra.mrb[0].mxu0 %v2060
    %v2062 = vpop.f32.mrb[0].mxu0
    %v2063 = vadd.f32 %v1875, %v2062
    %v2064 = vpop.f32.mrb[0].mxu0
    %2065 = vmatprep.mubr.f32.mxu0 0.0
    %v2066 = vand.u32 %v1304, 4294901760
    %v2067 = vsub.f32 %v1304, %v2066
    %v2068 = vand.u32 %v2067, 4294901760
    %2069 = vmatmul.mubr.f32.gmra.mrb[0].mxu0 %v2068
    %v2070 = vpop.f32.mrb[0].mxu0
    %v2071 = vadd.f32 %v1882, %v2070
    %v2072 = vpop.f32.mrb[0].mxu0
    %2073 = vmatprep.mubr.f32.mxu0 0.0
    %v2074 = vand.u32 %v1307, 4294901760
    %v2075 = vsub.f32 %v1307, %v2074
    %v2076 = vand.u32 %v2075, 4294901760
    %2077 = vmatmul.mubr.f32.gmra.mrb[0].mxu0 %v2076
    %v2078 = vpop.f32.mrb[0].mxu0
    %v2079 = vadd.f32 %v1889, %v2078
    %v2080 = vpop.f32.mrb[0].mxu0
    %2081 = vmatprep.mubr.f32.mxu0 0.0
    %v2082 = vand.u32 %v1310, 4294901760
    %v2083 = vsub.f32 %v1310, %v2082
    %v2084 = vand.u32 %v2083, 4294901760
    %2085 = vmatmul.mubr.f32.gmra.mrb[0].mxu0 %v2084
    %v2086 = vpop.f32.mrb[0].mxu0
    %v2087 = vadd.f32 %v1896, %v2086
    %v2088 = vpop.f32.mrb[0].mxu0
    %2089 = vmatprep.mubr.f32.mxu0 0.0
    %v2090 = vand.u32 %v1313, 4294901760
    %v2091 = vsub.f32 %v1313, %v2090
    %v2092 = vand.u32 %v2091, 4294901760
    %2093 = vmatmul.mubr.f32.gmra.mrb[0].mxu0 %v2092
    %v2094 = vpop.f32.mrb[0].mxu0
    %v2095 = vadd.f32 %v1903, %v2094
    %v2096 = vpop.f32.mrb[0].mxu0
    %2097 = vmatprep.mubr.f32.mxu0 0.0
    %v2098 = vand.u32 %v1316, 4294901760
    %v2099 = vsub.f32 %v1316, %v2098
    %v2100 = vand.u32 %v2099, 4294901760
    %2101 = vmatmul.mubr.f32.gmra.mrb[0].mxu0 %v2100
    %v2102 = vpop.f32.mrb[0].mxu0
    %v2103 = vadd.f32 %v1910, %v2102
    %v2104 = vpop.f32.mrb[0].mxu0
    %2105 = vmatprep.mubr.f32.mxu0 0.0
    %v2106 = vand.u32 %v1319, 4294901760
    %v2107 = vsub.f32 %v1319, %v2106
    %v2108 = vand.u32 %v2107, 4294901760
    %2109 = vmatmul.mubr.f32.gmra.mrb[0].mxu0 %v2108
    %v2110 = vpop.f32.mrb[0].mxu0
    %v2111 = vadd.f32 %v1917, %v2110
    %v2112 = vpop.f32.mrb[0].mxu0
    %2113 = vmatprep.mubr.f32.mxu0 0.0
    %v2114 = vand.u32 %v1322, 4294901760
    %v2115 = vsub.f32 %v1322, %v2114
    %v2116 = vand.u32 %v2115, 4294901760
    %2117 = vmatmul.mubr.f32.gmra.mrb[0].mxu0 %v2116
    %v2118 = vpop.f32.mrb[0].mxu0
    %v2119 = vadd.f32 %v1924, %v2118
    %v2120 = vpop.f32.mrb[0].mxu0
    %2121 = vmatprep.mubr.f32.mxu0 0.0
    %v2122 = vand.u32 %v1325, 4294901760
    %v2123 = vsub.f32 %v1325, %v2122
    %v2124 = vand.u32 %v2123, 4294901760
    %2125 = vmatmul.mubr.f32.gmra.mrb[0].mxu0 %v2124
    %v2126 = vpop.f32.mrb[0].mxu0
    %v2127 = vadd.f32 %v1931, %v2126
    %v2128 = vpop.f32.mrb[0].mxu0
    %2129 = vmatprep.mubr.f32.mxu0 0.0
    %v2130 = vand.u32 %v1328, 4294901760
    %v2131 = vsub.f32 %v1328, %v2130
    %v2132 = vand.u32 %v2131, 4294901760
    %2133 = vmatmul.mubr.f32.gmra.mrb[0].mxu0 %v2132
    %v2134 = vpop.f32.mrb[0].mxu0
    %v2135 = vadd.f32 %v1938, %v2134
    %v2136 = vpop.f32.mrb[0].mxu0
    %2137 = vmatprep.mubr.f32.mxu0 0.0
    %v2138 = vand.u32 %v1331, 4294901760
    %v2139 = vsub.f32 %v1331, %v2138
    %v2140 = vand.u32 %v2139, 4294901760
    %2141 = vmatmul.mubr.f32.gmra.mrb[0].mxu0 %v2140
    %v2142 = vpop.f32.mrb[0].mxu0
    %v2143 = vadd.f32 %v1945, %v2142
    %v2144 = vpop.f32.mrb[0].mxu0
    %2145 = vmatprep.mubr.f32.mxu0 0.0
    %v2146 = vand.u32 %v1334, 4294901760
    %v2147 = vsub.f32 %v1334, %v2146
    %v2148 = vand.u32 %v2147, 4294901760
    %2149 = vmatmul.mubr.f32.gmra.mrb[0].mxu0 %v2148
    %v2150 = vpop.f32.mrb[0].mxu0
    %v2151 = vadd.f32 %v1952, %v2150
    %v2152 = vpop.f32.mrb[0].mxu0
    %2153 = vmatprep.mubr.f32.mxu0 0.0
    %v2154 = vand.u32 %v1337, 4294901760
    %v2155 = vsub.f32 %v1337, %v2154
    %v2156 = vand.u32 %v2155, 4294901760
    %2157 = vmatmul.mubr.f32.gmra.mrb[0].mxu0 %v2156
    %v2158 = vpop.f32.mrb[0].mxu0
    %v2159 = vadd.f32 %v1959, %v2158
    %v2160 = vpop.f32.mrb[0].mxu0
    %2161 = vmatprep.mubr.f32.mxu0 0.0
    %v2162 = vand.u32 %v1340, 4294901760
    %v2163 = vsub.f32 %v1340, %v2162
    %v2164 = vand.u32 %v2163, 4294901760
    %2165 = vmatmul.mubr.f32.gmra.mrb[0].mxu0 %v2164
    %v2166 = vpop.f32.mrb[0].mxu0
    %v2167 = vadd.f32 %v1966, %v2166
    %v2168 = vpop.f32.mrb[0].mxu0
    %2169 = vdwg.mxu0
    %2170 = vmatprep.subr.mxu0 0.0
    %v2171 = vand.u32 %v1278, 4294901760
    %v2172 = vsub.f32 %v1278, %v2171
    %v2173 = vand.u32 %v2172, 4294901760
    %2174 = vmatpush1.msra.mxu0 %v2173
    %2175 = vmatprep.subr.mxu0 0.0
    %v2176 = vand.u32 %v1279, 4294901760
    %v2177 = vsub.f32 %v1279, %v2176
    %v2178 = vand.u32 %v2177, 4294901760
    %2179 = vmatpush1.msra.mxu0 %v2178
    %2180 = vmatprep.subr.mxu0 0.0
    %v2181 = vand.u32 %v1280, 4294901760
    %v2182 = vsub.f32 %v1280, %v2181
    %v2183 = vand.u32 %v2182, 4294901760
    %2184 = vmatpush1.msra.mxu0 %v2183
    %2185 = vmatprep.subr.mxu0 0.0
    %v2186 = vand.u32 %v1281, 4294901760
    %v2187 = vsub.f32 %v1281, %v2186
    %v2188 = vand.u32 %v2187, 4294901760
    %2189 = vmatpush1.msra.mxu0 %v2188
    %2190 = vmatprep.subr.mxu0 0.0
    %v2191 = vand.u32 %v1282, 4294901760
    %v2192 = vsub.f32 %v1282, %v2191
    %v2193 = vand.u32 %v2192, 4294901760
    %2194 = vmatpush1.msra.mxu0 %v2193
    %2195 = vmatprep.subr.mxu0 0.0
    %v2196 = vand.u32 %v1283, 4294901760
    %v2197 = vsub.f32 %v1283, %v2196
    %v2198 = vand.u32 %v2197, 4294901760
    %2199 = vmatpush1.msra.mxu0 %v2198
    %2200 = vmatprep.subr.mxu0 0.0
    %v2201 = vand.u32 %v1284, 4294901760
    %v2202 = vsub.f32 %v1284, %v2201
    %v2203 = vand.u32 %v2202, 4294901760
    %2204 = vmatpush1.msra.mxu0 %v2203
    %2205 = vmatprep.subr.mxu0 0.0
    %v2206 = vand.u32 %v1285, 4294901760
    %v2207 = vsub.f32 %v1285, %v2206
    %v2208 = vand.u32 %v2207, 4294901760
    %2209 = vmatpush1.msra.mxu0 %v2208
    %2210 = vmatprep.subr.mxu0 0.0
    %2211 = vmatpush1.msra.mxu0 0.0
    %2212 = vmatprep.subr.mxu0 0.0
    %2213 = vmatpush1.msra.mxu0 0.0
    %2214 = vmatprep.subr.mxu0 0.0
    %2215 = vmatpush1.msra.mxu0 0.0
    %2216 = vmatprep.subr.mxu0 0.0
    %2217 = vmatpush1.msra.mxu0 0.0
    %2218 = vmatprep.subr.mxu0 0.0
    %2219 = vmatpush1.msra.mxu0 0.0
    %2220 = vmatprep.subr.mxu0 0.0
    %2221 = vmatpush1.msra.mxu0 0.0
    %2222 = vmatprep.subr.mxu0 0.0
    %2223 = vmatpush1.msra.mxu0 0.0
    %2224 = vmatprep.subr.mxu0 0.0
    %2225 = vmatpush1.msra.mxu0 0.0
    %2226 = vmatprep.subr.mxu0 0.0
    %2227 = vmatpush1.msra.mxu0 0.0
    %2228 = vmatprep.subr.mxu0 0.0
    %2229 = vmatpush1.msra.mxu0 0.0
    %2230 = vmatprep.subr.mxu0 0.0
    %2231 = vmatpush1.msra.mxu0 0.0
    %2232 = vmatprep.subr.mxu0 0.0
    %2233 = vmatpush1.msra.mxu0 0.0
    %2234 = vmatprep.subr.mxu0 0.0
    %2235 = vmatpush1.msra.mxu0 0.0
    %2236 = vmatprep.subr.mxu0 0.0
    %2237 = vmatpush1.msra.mxu0 0.0
    %2238 = vmatprep.subr.mxu0 0.0
    %2239 = vmatpush1.msra.mxu0 0.0
    %2240 = vmatprep.subr.mxu0 0.0
    %2241 = vmatpush1.msra.mxu0 0.0
    %2242 = vmatprep.subr.mxu0 0.0
    %2243 = vmatpush1.msra.mxu0 0.0
    %2244 = vmatprep.subr.mxu0 0.0
    %2245 = vmatpush1.msra.mxu0 0.0
    %2246 = vmatprep.subr.mxu0 0.0
    %2247 = vmatpush1.msra.mxu0 0.0
    %2248 = vmatprep.subr.mxu0 0.0
    %2249 = vmatpush1.msra.mxu0 0.0
    %2250 = vmatprep.subr.mxu0 0.0
    %2251 = vmatpush1.msra.mxu0 0.0
    %2252 = vmatprep.subr.mxu0 0.0
    %2253 = vmatpush1.msra.mxu0 0.0
    %2254 = vmatprep.subr.mxu0 0.0
    %2255 = vmatpush1.msra.mxu0 0.0
    %2256 = vmatprep.subr.mxu0 0.0
    %2257 = vmatpush1.msra.mxu0 0.0
    %2258 = vmatprep.mubr.f32.mxu0 0.0
    %v2259 = vand.u32 %v1295, 4294901760
    %2260 = vmatmul.mubr.f32.gmra.mrb[0].mxu0 %v2259
    %v2261 = vpop.f32.mrb[0].mxu0
    %v2262 = vadd.f32 %v2047, %v2261
    %v2263 = vpop.f32.mrb[0].mxu0
    %2264 = vmatprep.mubr.f32.mxu0 0.0
    %v2265 = vand.u32 %v1298, 4294901760
    %2266 = vmatmul.mubr.f32.gmra.mrb[0].mxu0 %v2265
    %v2267 = vpop.f32.mrb[0].mxu0
    %v2268 = vadd.f32 %v2055, %v2267
    %v2269 = vpop.f32.mrb[0].mxu0
    %2270 = vmatprep.mubr.f32.mxu0 0.0
    %v2271 = vand.u32 %v1301, 4294901760
    %2272 = vmatmul.mubr.f32.gmra.mrb[0].mxu0 %v2271
    %v2273 = vpop.f32.mrb[0].mxu0
    %v2274 = vadd.f32 %v2063, %v2273
    %v2275 = vpop.f32.mrb[0].mxu0
    %2276 = vmatprep.mubr.f32.mxu0 0.0
    %v2277 = vand.u32 %v1304, 4294901760
    %2278 = vmatmul.mubr.f32.gmra.mrb[0].mxu0 %v2277
    %v2279 = vpop.f32.mrb[0].mxu0
    %v2280 = vadd.f32 %v2071, %v2279
    %v2281 = vpop.f32.mrb[0].mxu0
    %2282 = vmatprep.mubr.f32.mxu0 0.0
    %v2283 = vand.u32 %v1307, 4294901760
    %2284 = vmatmul.mubr.f32.gmra.mrb[0].mxu0 %v2283
    %v2285 = vpop.f32.mrb[0].mxu0
    %v2286 = vadd.f32 %v2079, %v2285
    %v2287 = vpop.f32.mrb[0].mxu0
    %2288 = vmatprep.mubr.f32.mxu0 0.0
    %v2289 = vand.u32 %v1310, 4294901760
    %2290 = vmatmul.mubr.f32.gmra.mrb[0].mxu0 %v2289
    %v2291 = vpop.f32.mrb[0].mxu0
    %v2292 = vadd.f32 %v2087, %v2291
    %v2293 = vpop.f32.mrb[0].mxu0
    %2294 = vmatprep.mubr.f32.mxu0 0.0
    %v2295 = vand.u32 %v1313, 4294901760
    %2296 = vmatmul.mubr.f32.gmra.mrb[0].mxu0 %v2295
    %v2297 = vpop.f32.mrb[0].mxu0
    %v2298 = vadd.f32 %v2095, %v2297
    %v2299 = vpop.f32.mrb[0].mxu0
    %2300 = vmatprep.mubr.f32.mxu0 0.0
    %v2301 = vand.u32 %v1316, 4294901760
    %2302 = vmatmul.mubr.f32.gmra.mrb[0].mxu0 %v2301
    %v2303 = vpop.f32.mrb[0].mxu0
    %v2304 = vadd.f32 %v2103, %v2303
    %v2305 = vpop.f32.mrb[0].mxu0
    %2306 = vmatprep.mubr.f32.mxu0 0.0
    %v2307 = vand.u32 %v1319, 4294901760
    %2308 = vmatmul.mubr.f32.gmra.mrb[0].mxu0 %v2307
    %v2309 = vpop.f32.mrb[0].mxu0
    %v2310 = vadd.f32 %v2111, %v2309
    %v2311 = vpop.f32.mrb[0].mxu0
    %2312 = vmatprep.mubr.f32.mxu0 0.0
    %v2313 = vand.u32 %v1322, 4294901760
    %2314 = vmatmul.mubr.f32.gmra.mrb[0].mxu0 %v2313
    %v2315 = vpop.f32.mrb[0].mxu0
    %v2316 = vadd.f32 %v2119, %v2315
    %v2317 = vpop.f32.mrb[0].mxu0
    %2318 = vmatprep.mubr.f32.mxu0 0.0
    %v2319 = vand.u32 %v1325, 4294901760
    %2320 = vmatmul.mubr.f32.gmra.mrb[0].mxu0 %v2319
    %v2321 = vpop.f32.mrb[0].mxu0
    %v2322 = vadd.f32 %v2127, %v2321
    %v2323 = vpop.f32.mrb[0].mxu0
    %2324 = vmatprep.mubr.f32.mxu0 0.0
    %v2325 = vand.u32 %v1328, 4294901760
    %2326 = vmatmul.mubr.f32.gmra.mrb[0].mxu0 %v2325
    %v2327 = vpop.f32.mrb[0].mxu0
    %v2328 = vadd.f32 %v2135, %v2327
    %v2329 = vpop.f32.mrb[0].mxu0
    %2330 = vmatprep.mubr.f32.mxu0 0.0
    %v2331 = vand.u32 %v1331, 4294901760
    %2332 = vmatmul.mubr.f32.gmra.mrb[0].mxu0 %v2331
    %v2333 = vpop.f32.mrb[0].mxu0
    %v2334 = vadd.f32 %v2143, %v2333
    %v2335 = vpop.f32.mrb[0].mxu0
    %2336 = vmatprep.mubr.f32.mxu0 0.0
    %v2337 = vand.u32 %v1334, 4294901760
    %2338 = vmatmul.mubr.f32.gmra.mrb[0].mxu0 %v2337
    %v2339 = vpop.f32.mrb[0].mxu0
    %v2340 = vadd.f32 %v2151, %v2339
    %v2341 = vpop.f32.mrb[0].mxu0
    %2342 = vmatprep.mubr.f32.mxu0 0.0
    %v2343 = vand.u32 %v1337, 4294901760
    %2344 = vmatmul.mubr.f32.gmra.mrb[0].mxu0 %v2343
    %v2345 = vpop.f32.mrb[0].mxu0
    %v2346 = vadd.f32 %v2159, %v2345
    %v2347 = vpop.f32.mrb[0].mxu0
    %2348 = vmatprep.mubr.f32.mxu0 0.0
    %v2349 = vand.u32 %v1340, 4294901760
    %2350 = vmatmul.mubr.f32.gmra.mrb[0].mxu0 %v2349
    %v2351 = vpop.f32.mrb[0].mxu0
    %v2352 = vadd.f32 %v2167, %v2351
    %v2353 = vpop.f32.mrb[0].mxu0
    %2354 = vdwg.mxu0
    %2355 = vmatprep.subr.mxu0 0.0
    %v2356 = vand.u32 %v1278, 4294901760
    %2357 = vmatpush1.msra.mxu0 %v2356
    %2358 = vmatprep.subr.mxu0 0.0
    %v2359 = vand.u32 %v1279, 4294901760
    %2360 = vmatpush1.msra.mxu0 %v2359
    %2361 = vmatprep.subr.mxu0 0.0
    %v2362 = vand.u32 %v1280, 4294901760
    %2363 = vmatpush1.msra.mxu0 %v2362
    %2364 = vmatprep.subr.mxu0 0.0
    %v2365 = vand.u32 %v1281, 4294901760
    %2366 = vmatpush1.msra.mxu0 %v2365
    %2367 = vmatprep.subr.mxu0 0.0
    %v2368 = vand.u32 %v1282, 4294901760
    %2369 = vmatpush1.msra.mxu0 %v2368
    %2370 = vmatprep.subr.mxu0 0.0
    %v2371 = vand.u32 %v1283, 4294901760
    %2372 = vmatpush1.msra.mxu0 %v2371
    %2373 = vmatprep.subr.mxu0 0.0
    %v2374 = vand.u32 %v1284, 4294901760
    %2375 = vmatpush1.msra.mxu0 %v2374
    %2376 = vmatprep.subr.mxu0 0.0
    %v2377 = vand.u32 %v1285, 4294901760
    %2378 = vmatpush1.msra.mxu0 %v2377
    %2379 = vmatprep.subr.mxu0 0.0
    %2380 = vmatpush1.msra.mxu0 0.0
    %2381 = vmatprep.subr.mxu0 0.0
    %2382 = vmatpush1.msra.mxu0 0.0
    %2383 = vmatprep.subr.mxu0 0.0
    %2384 = vmatpush1.msra.mxu0 0.0
    %2385 = vmatprep.subr.mxu0 0.0
    %2386 = vmatpush1.msra.mxu0 0.0
    %2387 = vmatprep.subr.mxu0 0.0
    %2388 = vmatpush1.msra.mxu0 0.0
    %2389 = vmatprep.subr.mxu0 0.0
    %2390 = vmatpush1.msra.mxu0 0.0
    %2391 = vmatprep.subr.mxu0 0.0
    %2392 = vmatpush1.msra.mxu0 0.0
    %2393 = vmatprep.subr.mxu0 0.0
    %2394 = vmatpush1.msra.mxu0 0.0
    %2395 = vmatprep.subr.mxu0 0.0
    %2396 = vmatpush1.msra.mxu0 0.0
    %2397 = vmatprep.subr.mxu0 0.0
    %2398 = vmatpush1.msra.mxu0 0.0
    %2399 = vmatprep.subr.mxu0 0.0
    %2400 = vmatpush1.msra.mxu0 0.0
    %2401 = vmatprep.subr.mxu0 0.0
    %2402 = vmatpush1.msra.mxu0 0.0
    %2403 = vmatprep.subr.mxu0 0.0
    %2404 = vmatpush1.msra.mxu0 0.0
    %2405 = vmatprep.subr.mxu0 0.0
    %2406 = vmatpush1.msra.mxu0 0.0
    %2407 = vmatprep.subr.mxu0 0.0
    %2408 = vmatpush1.msra.mxu0 0.0
    %2409 = vmatprep.subr.mxu0 0.0
    %2410 = vmatpush1.msra.mxu0 0.0
    %2411 = vmatprep.subr.mxu0 0.0
    %2412 = vmatpush1.msra.mxu0 0.0
    %2413 = vmatprep.subr.mxu0 0.0
    %2414 = vmatpush1.msra.mxu0 0.0
    %2415 = vmatprep.subr.mxu0 0.0
    %2416 = vmatpush1.msra.mxu0 0.0
    %2417 = vmatprep.subr.mxu0 0.0
    %2418 = vmatpush1.msra.mxu0 0.0
    %2419 = vmatprep.subr.mxu0 0.0
    %2420 = vmatpush1.msra.mxu0 0.0
    %2421 = vmatprep.subr.mxu0 0.0
    %2422 = vmatpush1.msra.mxu0 0.0
    %2423 = vmatprep.subr.mxu0 0.0
    %2424 = vmatpush1.msra.mxu0 0.0
    %2425 = vmatprep.subr.mxu0 0.0
    %2426 = vmatpush1.msra.mxu0 0.0
    %2427 = vmatprep.mubr.f32.mxu0 0.0
    %v2428 = vand.u32 %v1295, 4294901760
    %2429 = vmatmul.mubr.f32.gmra.mrb[0].mxu0 %v2428
    %v2430 = vpop.f32.mrb[0].mxu0
    %v2431 = vadd.f32 %v2262, %v2430
    %v2432 = vpop.f32.mrb[0].mxu0
    %2433 = vmatprep.mubr.f32.mxu0 0.0
    %v2434 = vand.u32 %v1298, 4294901760
    %2435 = vmatmul.mubr.f32.gmra.mrb[0].mxu0 %v2434
    %v2436 = vpop.f32.mrb[0].mxu0
    %v2437 = vadd.f32 %v2268, %v2436
    %v2438 = vpop.f32.mrb[0].mxu0
    %2439 = vmatprep.mubr.f32.mxu0 0.0
    %v2440 = vand.u32 %v1301, 4294901760
    %2441 = vmatmul.mubr.f32.gmra.mrb[0].mxu0 %v2440
    %v2442 = vpop.f32.mrb[0].mxu0
    %v2443 = vadd.f32 %v2274, %v2442
    %v2444 = vpop.f32.mrb[0].mxu0
    %2445 = vmatprep.mubr.f32.mxu0 0.0
    %v2446 = vand.u32 %v1304, 4294901760
    %2447 = vmatmul.mubr.f32.gmra.mrb[0].mxu0 %v2446
    %v2448 = vpop.f32.mrb[0].mxu0
    %v2449 = vadd.f32 %v2280, %v2448
    %v2450 = vpop.f32.mrb[0].mxu0
    %2451 = vmatprep.mubr.f32.mxu0 0.0
    %v2452 = vand.u32 %v1307, 4294901760
    %2453 = vmatmul.mubr.f32.gmra.mrb[0].mxu0 %v2452
    %v2454 = vpop.f32.mrb[0].mxu0
    %v2455 = vadd.f32 %v2286, %v2454
    %v2456 = vpop.f32.mrb[0].mxu0
    %2457 = vmatprep.mubr.f32.mxu0 0.0
    %v2458 = vand.u32 %v1310, 4294901760
    %2459 = vmatmul.mubr.f32.gmra.mrb[0].mxu0 %v2458
    %v2460 = vpop.f32.mrb[0].mxu0
    %v2461 = vadd.f32 %v2292, %v2460
    %v2462 = vpop.f32.mrb[0].mxu0
    %2463 = vmatprep.mubr.f32.mxu0 0.0
    %v2464 = vand.u32 %v1313, 4294901760
    %2465 = vmatmul.mubr.f32.gmra.mrb[0].mxu0 %v2464
    %v2466 = vpop.f32.mrb[0].mxu0
    %v2467 = vadd.f32 %v2298, %v2466
    %v2468 = vpop.f32.mrb[0].mxu0
    %2469 = vmatprep.mubr.f32.mxu0 0.0
    %v2470 = vand.u32 %v1316, 4294901760
    %2471 = vmatmul.mubr.f32.gmra.mrb[0].mxu0 %v2470
    %v2472 = vpop.f32.mrb[0].mxu0
    %v2473 = vadd.f32 %v2304, %v2472
    %v2474 = vpop.f32.mrb[0].mxu0
    %2475 = vmatprep.mubr.f32.mxu0 0.0
    %v2476 = vand.u32 %v1319, 4294901760
    %2477 = vmatmul.mubr.f32.gmra.mrb[0].mxu0 %v2476
    %v2478 = vpop.f32.mrb[0].mxu0
    %v2479 = vadd.f32 %v2310, %v2478
    %v2480 = vpop.f32.mrb[0].mxu0
    %2481 = vmatprep.mubr.f32.mxu0 0.0
    %v2482 = vand.u32 %v1322, 4294901760
    %2483 = vmatmul.mubr.f32.gmra.mrb[0].mxu0 %v2482
    %v2484 = vpop.f32.mrb[0].mxu0
    %v2485 = vadd.f32 %v2316, %v2484
    %v2486 = vpop.f32.mrb[0].mxu0
    %2487 = vmatprep.mubr.f32.mxu0 0.0
    %v2488 = vand.u32 %v1325, 4294901760
    %2489 = vmatmul.mubr.f32.gmra.mrb[0].mxu0 %v2488
    %v2490 = vpop.f32.mrb[0].mxu0
    %v2491 = vadd.f32 %v2322, %v2490
    %v2492 = vpop.f32.mrb[0].mxu0
    %2493 = vmatprep.mubr.f32.mxu0 0.0
    %v2494 = vand.u32 %v1328, 4294901760
    %2495 = vmatmul.mubr.f32.gmra.mrb[0].mxu0 %v2494
    %v2496 = vpop.f32.mrb[0].mxu0
    %v2497 = vadd.f32 %v2328, %v2496
    %v2498 = vpop.f32.mrb[0].mxu0
    %2499 = vmatprep.mubr.f32.mxu0 0.0
    %v2500 = vand.u32 %v1331, 4294901760
    %2501 = vmatmul.mubr.f32.gmra.mrb[0].mxu0 %v2500
    %v2502 = vpop.f32.mrb[0].mxu0
    %v2503 = vadd.f32 %v2334, %v2502
    %v2504 = vpop.f32.mrb[0].mxu0
    %2505 = vmatprep.mubr.f32.mxu0 0.0
    %v2506 = vand.u32 %v1334, 4294901760
    %2507 = vmatmul.mubr.f32.gmra.mrb[0].mxu0 %v2506
    %v2508 = vpop.f32.mrb[0].mxu0
    %v2509 = vadd.f32 %v2340, %v2508
    %v2510 = vpop.f32.mrb[0].mxu0
    %2511 = vmatprep.mubr.f32.mxu0 0.0
    %v2512 = vand.u32 %v1337, 4294901760
    %2513 = vmatmul.mubr.f32.gmra.mrb[0].mxu0 %v2512
    %v2514 = vpop.f32.mrb[0].mxu0
    %v2515 = vadd.f32 %v2346, %v2514
    %v2516 = vpop.f32.mrb[0].mxu0
    %2517 = vmatprep.mubr.f32.mxu0 0.0
    %v2518 = vand.u32 %v1340, 4294901760
    %2519 = vmatmul.mubr.f32.gmra.mrb[0].mxu0 %v2518
    %v2520 = vpop.f32.mrb[0].mxu0
    %v2521 = vadd.f32 %v2352, %v2520
    %v2522 = vpop.f32.mrb[0].mxu0
    %2523 = vdwg.mxu0
    %v2524 = vmax.f32 %v2431, 0.0
    %v2525 = vmax.f32 %v2437, 0.0
    %v2526 = vmax.f32 %v2443, 0.0
    %v2527 = vmax.f32 %v2449, 0.0
    %v2528 = vmax.f32 %v2455, 0.0
    %v2529 = vmax.f32 %v2461, 0.0
    %v2530 = vmax.f32 %v2467, 0.0
    %v2531 = vmax.f32 %v2473, 0.0
    %v2532 = vmax.f32 %v2479, 0.0
    %v2533 = vmax.f32 %v2485, 0.0
    %v2534 = vmax.f32 %v2491, 0.0
    %v2535 = vmax.f32 %v2497, 0.0
    %v2536 = vmax.f32 %v2503, 0.0
    %v2537 = vmax.f32 %v2509, 0.0
    %v2538 = vmax.f32 %v2515, 0.0
    %v2539 = vmax.f32 %v2521, 0.0
    %v2540 = vld [vmem:[%s5] sm:$0xff]
    %v2541 = vld [vmem:[%s5 + $0x8] sm:$0xff]
    %v2542 = vld [vmem:[%s5 + $0x10] sm:$0xff]
    %v2543 = vld [vmem:[%s5 + $0x18] sm:$0xff]
    %v2544 = vld [vmem:[%s5 + $0x20] sm:$0xff]
    %v2545 = vld [vmem:[%s5 + $0x28] sm:$0xff]
    %v2546 = vld [vmem:[%s5 + $0x30] sm:$0xff]
    %v2547 = vld [vmem:[%s5 + $0x38] sm:$0xff]
    %v2548 = vld [vmem:[%s6] sm:$0x1]
    %v2550 = vlaneseq
    %v2551 = vshrl.u32 %v2550, 7
    %v2552 = vsub.s32 0, %v2551
    %v2553 = vrot.slane %v2548, %v2552
    %v2556 = vsel %vm1293, %v2524, 0
    %v2559 = vsel %vm1293, %v2525, 0
    %v2562 = vsel %vm1293, %v2526, 0
    %v2565 = vsel %vm1293, %v2527, 0
    %v2568 = vsel %vm1293, %v2528, 0
    %v2571 = vsel %vm1293, %v2529, 0
    %v2574 = vsel %vm1293, %v2530, 0
    %v2577 = vsel %vm1293, %v2531, 0
    %v2580 = vsel %vm1293, %v2532, 0
    %v2583 = vsel %vm1293, %v2533, 0
    %v2586 = vsel %vm1293, %v2534, 0
    %v2589 = vsel %vm1293, %v2535, 0
    %v2592 = vsel %vm1293, %v2536, 0
    %v2595 = vsel %vm1293, %v2537, 0
    %v2598 = vsel %vm1293, %v2538, 0
    %v2601 = vsel %vm1293, %v2539, 0
    %2603 = vmatprep.subr.mxu0 0.0
    %v2604 = vand.u32 %v2540, 4294901760
    %2605 = vmatpush1.msra.mxu0 %v2604
    %2606 = vmatprep.subr.mxu0 0.0
    %v2607 = vand.u32 %v2541, 4294901760
    %2608 = vmatpush1.msra.mxu0 %v2607
    %2609 = vmatprep.subr.mxu0 0.0
    %v2610 = vand.u32 %v2542, 4294901760
    %2611 = vmatpush1.msra.mxu0 %v2610
    %2612 = vmatprep.subr.mxu0 0.0
    %v2613 = vand.u32 %v2543, 4294901760
    %2614 = vmatpush1.msra.mxu0 %v2613
    %2615 = vmatprep.subr.mxu0 0.0
    %v2616 = vand.u32 %v2544, 4294901760
    %2617 = vmatpush1.msra.mxu0 %v2616
    %2618 = vmatprep.subr.mxu0 0.0
    %v2619 = vand.u32 %v2545, 4294901760
    %2620 = vmatpush1.msra.mxu0 %v2619
    %2621 = vmatprep.subr.mxu0 0.0
    %v2622 = vand.u32 %v2546, 4294901760
    %2623 = vmatpush1.msra.mxu0 %v2622
    %2624 = vmatprep.subr.mxu0 0.0
    %v2625 = vand.u32 %v2547, 4294901760
    %2626 = vmatpush1.msra.mxu0 %v2625
    %2627 = vmatprep.subr.mxu0 0.0
    %2628 = vmatpush1.msra.mxu0 0.0
    %2629 = vmatprep.subr.mxu0 0.0
    %2630 = vmatpush1.msra.mxu0 0.0
    %2631 = vmatprep.subr.mxu0 0.0
    %2632 = vmatpush1.msra.mxu0 0.0
    %2633 = vmatprep.subr.mxu0 0.0
    %2634 = vmatpush1.msra.mxu0 0.0
    %2635 = vmatprep.subr.mxu0 0.0
    %2636 = vmatpush1.msra.mxu0 0.0
    %2637 = vmatprep.subr.mxu0 0.0
    %2638 = vmatpush1.msra.mxu0 0.0
    %2639 = vmatprep.subr.mxu0 0.0
    %2640 = vmatpush1.msra.mxu0 0.0
    %2641 = vmatprep.subr.mxu0 0.0
    %2642 = vmatpush1.msra.mxu0 0.0
    %2643 = vmatprep.subr.mxu0 0.0
    %2644 = vmatpush1.msra.mxu0 0.0
    %2645 = vmatprep.subr.mxu0 0.0
    %2646 = vmatpush1.msra.mxu0 0.0
    %2647 = vmatprep.subr.mxu0 0.0
    %2648 = vmatpush1.msra.mxu0 0.0
    %2649 = vmatprep.subr.mxu0 0.0
    %2650 = vmatpush1.msra.mxu0 0.0
    %2651 = vmatprep.subr.mxu0 0.0
    %2652 = vmatpush1.msra.mxu0 0.0
    %2653 = vmatprep.subr.mxu0 0.0
    %2654 = vmatpush1.msra.mxu0 0.0
    %2655 = vmatprep.subr.mxu0 0.0
    %2656 = vmatpush1.msra.mxu0 0.0
    %2657 = vmatprep.subr.mxu0 0.0
    %2658 = vmatpush1.msra.mxu0 0.0
    %2659 = vmatprep.subr.mxu0 0.0
    %2660 = vmatpush1.msra.mxu0 0.0
    %2661 = vmatprep.subr.mxu0 0.0
    %2662 = vmatpush1.msra.mxu0 0.0
    %2663 = vmatprep.subr.mxu0 0.0
    %2664 = vmatpush1.msra.mxu0 0.0
    %2665 = vmatprep.subr.mxu0 0.0
    %2666 = vmatpush1.msra.mxu0 0.0
    %2667 = vmatprep.subr.mxu0 0.0
    %2668 = vmatpush1.msra.mxu0 0.0
    %2669 = vmatprep.subr.mxu0 0.0
    %2670 = vmatpush1.msra.mxu0 0.0
    %2671 = vmatprep.subr.mxu0 0.0
    %2672 = vmatpush1.msra.mxu0 0.0
    %2673 = vmatprep.subr.mxu0 0.0
    %2674 = vmatpush1.msra.mxu0 0.0
    %2675 = vmatprep.mubr.f32.mxu0 0.0
    %v2676 = vand.u32 %v2556, 4294901760
    %v2677 = vsub.f32 %v2556, %v2676
    %v2678 = vand.u32 %v2677, 4294901760
    %v2679 = vsub.f32 %v2677, %v2678
    %v2680 = vand.u32 %v2679, 4294901760
    %2681 = vmatmul.mubr.f32.gmra.mrb[0].mxu0 %v2680
    %v2682 = vpop.f32.mrb[0].mxu0
    %v2683 = vadd.f32 %v2553, %v2682
    %v2684 = vpop.f32.mrb[0].mxu0
    %2685 = vmatprep.mubr.f32.mxu0 0.0
    %v2686 = vand.u32 %v2559, 4294901760
    %v2687 = vsub.f32 %v2559, %v2686
    %v2688 = vand.u32 %v2687, 4294901760
    %v2689 = vsub.f32 %v2687, %v2688
    %v2690 = vand.u32 %v2689, 4294901760
    %2691 = vmatmul.mubr.f32.gmra.mrb[0].mxu0 %v2690
    %v2692 = vpop.f32.mrb[0].mxu0
    %v2693 = vadd.f32 %v2553, %v2692
    %v2694 = vpop.f32.mrb[0].mxu0
    %2695 = vmatprep.mubr.f32.mxu0 0.0
    %v2696 = vand.u32 %v2562, 4294901760
    %v2697 = vsub.f32 %v2562, %v2696
    %v2698 = vand.u32 %v2697, 4294901760
    %v2699 = vsub.f32 %v2697, %v2698
    %v2700 = vand.u32 %v2699, 4294901760
    %2701 = vmatmul.mubr.f32.gmra.mrb[0].mxu0 %v2700
    %v2702 = vpop.f32.mrb[0].mxu0
    %v2703 = vadd.f32 %v2553, %v2702
    %v2704 = vpop.f32.mrb[0].mxu0
    %2705 = vmatprep.mubr.f32.mxu0 0.0
    %v2706 = vand.u32 %v2565, 4294901760
    %v2707 = vsub.f32 %v2565, %v2706
    %v2708 = vand.u32 %v2707, 4294901760
    %v2709 = vsub.f32 %v2707, %v2708
    %v2710 = vand.u32 %v2709, 4294901760
    %2711 = vmatmul.mubr.f32.gmra.mrb[0].mxu0 %v2710
    %v2712 = vpop.f32.mrb[0].mxu0
    %v2713 = vadd.f32 %v2553, %v2712
    %v2714 = vpop.f32.mrb[0].mxu0
    %2715 = vmatprep.mubr.f32.mxu0 0.0
    %v2716 = vand.u32 %v2568, 4294901760
    %v2717 = vsub.f32 %v2568, %v2716
    %v2718 = vand.u32 %v2717, 4294901760
    %v2719 = vsub.f32 %v2717, %v2718
    %v2720 = vand.u32 %v2719, 4294901760
    %2721 = vmatmul.mubr.f32.gmra.mrb[0].mxu0 %v2720
    %v2722 = vpop.f32.mrb[0].mxu0
    %v2723 = vadd.f32 %v2553, %v2722
    %v2724 = vpop.f32.mrb[0].mxu0
    %2725 = vmatprep.mubr.f32.mxu0 0.0
    %v2726 = vand.u32 %v2571, 4294901760
    %v2727 = vsub.f32 %v2571, %v2726
    %v2728 = vand.u32 %v2727, 4294901760
    %v2729 = vsub.f32 %v2727, %v2728
    %v2730 = vand.u32 %v2729, 4294901760
    %2731 = vmatmul.mubr.f32.gmra.mrb[0].mxu0 %v2730
    %v2732 = vpop.f32.mrb[0].mxu0
    %v2733 = vadd.f32 %v2553, %v2732
    %v2734 = vpop.f32.mrb[0].mxu0
    %2735 = vmatprep.mubr.f32.mxu0 0.0
    %v2736 = vand.u32 %v2574, 4294901760
    %v2737 = vsub.f32 %v2574, %v2736
    %v2738 = vand.u32 %v2737, 4294901760
    %v2739 = vsub.f32 %v2737, %v2738
    %v2740 = vand.u32 %v2739, 4294901760
    %2741 = vmatmul.mubr.f32.gmra.mrb[0].mxu0 %v2740
    %v2742 = vpop.f32.mrb[0].mxu0
    %v2743 = vadd.f32 %v2553, %v2742
    %v2744 = vpop.f32.mrb[0].mxu0
    %2745 = vmatprep.mubr.f32.mxu0 0.0
    %v2746 = vand.u32 %v2577, 4294901760
    %v2747 = vsub.f32 %v2577, %v2746
    %v2748 = vand.u32 %v2747, 4294901760
    %v2749 = vsub.f32 %v2747, %v2748
    %v2750 = vand.u32 %v2749, 4294901760
    %2751 = vmatmul.mubr.f32.gmra.mrb[0].mxu0 %v2750
    %v2752 = vpop.f32.mrb[0].mxu0
    %v2753 = vadd.f32 %v2553, %v2752
    %v2754 = vpop.f32.mrb[0].mxu0
    %2755 = vmatprep.mubr.f32.mxu0 0.0
    %v2756 = vand.u32 %v2580, 4294901760
    %v2757 = vsub.f32 %v2580, %v2756
    %v2758 = vand.u32 %v2757, 4294901760
    %v2759 = vsub.f32 %v2757, %v2758
    %v2760 = vand.u32 %v2759, 4294901760
    %2761 = vmatmul.mubr.f32.gmra.mrb[0].mxu0 %v2760
    %v2762 = vpop.f32.mrb[0].mxu0
    %v2763 = vadd.f32 %v2553, %v2762
    %v2764 = vpop.f32.mrb[0].mxu0
    %2765 = vmatprep.mubr.f32.mxu0 0.0
    %v2766 = vand.u32 %v2583, 4294901760
    %v2767 = vsub.f32 %v2583, %v2766
    %v2768 = vand.u32 %v2767, 4294901760
    %v2769 = vsub.f32 %v2767, %v2768
    %v2770 = vand.u32 %v2769, 4294901760
    %2771 = vmatmul.mubr.f32.gmra.mrb[0].mxu0 %v2770
    %v2772 = vpop.f32.mrb[0].mxu0
    %v2773 = vadd.f32 %v2553, %v2772
    %v2774 = vpop.f32.mrb[0].mxu0
    %2775 = vmatprep.mubr.f32.mxu0 0.0
    %v2776 = vand.u32 %v2586, 4294901760
    %v2777 = vsub.f32 %v2586, %v2776
    %v2778 = vand.u32 %v2777, 4294901760
    %v2779 = vsub.f32 %v2777, %v2778
    %v2780 = vand.u32 %v2779, 4294901760
    %2781 = vmatmul.mubr.f32.gmra.mrb[0].mxu0 %v2780
    %v2782 = vpop.f32.mrb[0].mxu0
    %v2783 = vadd.f32 %v2553, %v2782
    %v2784 = vpop.f32.mrb[0].mxu0
    %2785 = vmatprep.mubr.f32.mxu0 0.0
    %v2786 = vand.u32 %v2589, 4294901760
    %v2787 = vsub.f32 %v2589, %v2786
    %v2788 = vand.u32 %v2787, 4294901760
    %v2789 = vsub.f32 %v2787, %v2788
    %v2790 = vand.u32 %v2789, 4294901760
    %2791 = vmatmul.mubr.f32.gmra.mrb[0].mxu0 %v2790
    %v2792 = vpop.f32.mrb[0].mxu0
    %v2793 = vadd.f32 %v2553, %v2792
    %v2794 = vpop.f32.mrb[0].mxu0
    %2795 = vmatprep.mubr.f32.mxu0 0.0
    %v2796 = vand.u32 %v2592, 4294901760
    %v2797 = vsub.f32 %v2592, %v2796
    %v2798 = vand.u32 %v2797, 4294901760
    %v2799 = vsub.f32 %v2797, %v2798
    %v2800 = vand.u32 %v2799, 4294901760
    %2801 = vmatmul.mubr.f32.gmra.mrb[0].mxu0 %v2800
    %v2802 = vpop.f32.mrb[0].mxu0
    %v2803 = vadd.f32 %v2553, %v2802
    %v2804 = vpop.f32.mrb[0].mxu0
    %2805 = vmatprep.mubr.f32.mxu0 0.0
    %v2806 = vand.u32 %v2595, 4294901760
    %v2807 = vsub.f32 %v2595, %v2806
    %v2808 = vand.u32 %v2807, 4294901760
    %v2809 = vsub.f32 %v2807, %v2808
    %v2810 = vand.u32 %v2809, 4294901760
    %2811 = vmatmul.mubr.f32.gmra.mrb[0].mxu0 %v2810
    %v2812 = vpop.f32.mrb[0].mxu0
    %v2813 = vadd.f32 %v2553, %v2812
    %v2814 = vpop.f32.mrb[0].mxu0
    %2815 = vmatprep.mubr.f32.mxu0 0.0
    %v2816 = vand.u32 %v2598, 4294901760
    %v2817 = vsub.f32 %v2598, %v2816
    %v2818 = vand.u32 %v2817, 4294901760
    %v2819 = vsub.f32 %v2817, %v2818
    %v2820 = vand.u32 %v2819, 4294901760
    %2821 = vmatmul.mubr.f32.gmra.mrb[0].mxu0 %v2820
    %v2822 = vpop.f32.mrb[0].mxu0
    %v2823 = vadd.f32 %v2553, %v2822
    %v2824 = vpop.f32.mrb[0].mxu0
    %2825 = vmatprep.mubr.f32.mxu0 0.0
    %v2826 = vand.u32 %v2601, 4294901760
    %v2827 = vsub.f32 %v2601, %v2826
    %v2828 = vand.u32 %v2827, 4294901760
    %v2829 = vsub.f32 %v2827, %v2828
    %v2830 = vand.u32 %v2829, 4294901760
    %2831 = vmatmul.mubr.f32.gmra.mrb[0].mxu0 %v2830
    %v2832 = vpop.f32.mrb[0].mxu0
    %v2833 = vadd.f32 %v2553, %v2832
    %v2834 = vpop.f32.mrb[0].mxu0
    %2835 = vdwg.mxu0
    %2836 = vmatprep.subr.mxu0 0.0
    %v2837 = vand.u32 %v2540, 4294901760
    %v2838 = vsub.f32 %v2540, %v2837
    %v2839 = vand.u32 %v2838, 4294901760
    %v2840 = vsub.f32 %v2838, %v2839
    %v2841 = vand.u32 %v2840, 4294901760
    %2842 = vmatpush1.msra.mxu0 %v2841
    %2843 = vmatprep.subr.mxu0 0.0
    %v2844 = vand.u32 %v2541, 4294901760
    %v2845 = vsub.f32 %v2541, %v2844
    %v2846 = vand.u32 %v2845, 4294901760
    %v2847 = vsub.f32 %v2845, %v2846
    %v2848 = vand.u32 %v2847, 4294901760
    %2849 = vmatpush1.msra.mxu0 %v2848
    %2850 = vmatprep.subr.mxu0 0.0
    %v2851 = vand.u32 %v2542, 4294901760
    %v2852 = vsub.f32 %v2542, %v2851
    %v2853 = vand.u32 %v2852, 4294901760
    %v2854 = vsub.f32 %v2852, %v2853
    %v2855 = vand.u32 %v2854, 4294901760
    %2856 = vmatpush1.msra.mxu0 %v2855
    %2857 = vmatprep.subr.mxu0 0.0
    %v2858 = vand.u32 %v2543, 4294901760
    %v2859 = vsub.f32 %v2543, %v2858
    %v2860 = vand.u32 %v2859, 4294901760
    %v2861 = vsub.f32 %v2859, %v2860
    %v2862 = vand.u32 %v2861, 4294901760
    %2863 = vmatpush1.msra.mxu0 %v2862
    %2864 = vmatprep.subr.mxu0 0.0
    %v2865 = vand.u32 %v2544, 4294901760
    %v2866 = vsub.f32 %v2544, %v2865
    %v2867 = vand.u32 %v2866, 4294901760
    %v2868 = vsub.f32 %v2866, %v2867
    %v2869 = vand.u32 %v2868, 4294901760
    %2870 = vmatpush1.msra.mxu0 %v2869
    %2871 = vmatprep.subr.mxu0 0.0
    %v2872 = vand.u32 %v2545, 4294901760
    %v2873 = vsub.f32 %v2545, %v2872
    %v2874 = vand.u32 %v2873, 4294901760
    %v2875 = vsub.f32 %v2873, %v2874
    %v2876 = vand.u32 %v2875, 4294901760
    %2877 = vmatpush1.msra.mxu0 %v2876
    %2878 = vmatprep.subr.mxu0 0.0
    %v2879 = vand.u32 %v2546, 4294901760
    %v2880 = vsub.f32 %v2546, %v2879
    %v2881 = vand.u32 %v2880, 4294901760
    %v2882 = vsub.f32 %v2880, %v2881
    %v2883 = vand.u32 %v2882, 4294901760
    %2884 = vmatpush1.msra.mxu0 %v2883
    %2885 = vmatprep.subr.mxu0 0.0
    %v2886 = vand.u32 %v2547, 4294901760
    %v2887 = vsub.f32 %v2547, %v2886
    %v2888 = vand.u32 %v2887, 4294901760
    %v2889 = vsub.f32 %v2887, %v2888
    %v2890 = vand.u32 %v2889, 4294901760
    %2891 = vmatpush1.msra.mxu0 %v2890
    %2892 = vmatprep.subr.mxu0 0.0
    %2893 = vmatpush1.msra.mxu0 0.0
    %2894 = vmatprep.subr.mxu0 0.0
    %2895 = vmatpush1.msra.mxu0 0.0
    %2896 = vmatprep.subr.mxu0 0.0
    %2897 = vmatpush1.msra.mxu0 0.0
    %2898 = vmatprep.subr.mxu0 0.0
    %2899 = vmatpush1.msra.mxu0 0.0
    %2900 = vmatprep.subr.mxu0 0.0
    %2901 = vmatpush1.msra.mxu0 0.0
    %2902 = vmatprep.subr.mxu0 0.0
    %2903 = vmatpush1.msra.mxu0 0.0
    %2904 = vmatprep.subr.mxu0 0.0
    %2905 = vmatpush1.msra.mxu0 0.0
    %2906 = vmatprep.subr.mxu0 0.0
    %2907 = vmatpush1.msra.mxu0 0.0
    %2908 = vmatprep.subr.mxu0 0.0
    %2909 = vmatpush1.msra.mxu0 0.0
    %2910 = vmatprep.subr.mxu0 0.0
    %2911 = vmatpush1.msra.mxu0 0.0
    %2912 = vmatprep.subr.mxu0 0.0
    %2913 = vmatpush1.msra.mxu0 0.0
    %2914 = vmatprep.subr.mxu0 0.0
    %2915 = vmatpush1.msra.mxu0 0.0
    %2916 = vmatprep.subr.mxu0 0.0
    %2917 = vmatpush1.msra.mxu0 0.0
    %2918 = vmatprep.subr.mxu0 0.0
    %2919 = vmatpush1.msra.mxu0 0.0
    %2920 = vmatprep.subr.mxu0 0.0
    %2921 = vmatpush1.msra.mxu0 0.0
    %2922 = vmatprep.subr.mxu0 0.0
    %2923 = vmatpush1.msra.mxu0 0.0
    %2924 = vmatprep.subr.mxu0 0.0
    %2925 = vmatpush1.msra.mxu0 0.0
    %2926 = vmatprep.subr.mxu0 0.0
    %2927 = vmatpush1.msra.mxu0 0.0
    %2928 = vmatprep.subr.mxu0 0.0
    %2929 = vmatpush1.msra.mxu0 0.0
    %2930 = vmatprep.subr.mxu0 0.0
    %2931 = vmatpush1.msra.mxu0 0.0
    %2932 = vmatprep.subr.mxu0 0.0
    %2933 = vmatpush1.msra.mxu0 0.0
    %2934 = vmatprep.subr.mxu0 0.0
    %2935 = vmatpush1.msra.mxu0 0.0
    %2936 = vmatprep.subr.mxu0 0.0
    %2937 = vmatpush1.msra.mxu0 0.0
    %2938 = vmatprep.subr.mxu0 0.0
    %2939 = vmatpush1.msra.mxu0 0.0
    %2940 = vmatprep.mubr.f32.mxu0 0.0
    %v2941 = vand.u32 %v2556, 4294901760
    %2942 = vmatmul.mubr.f32.gmra.mrb[0].mxu0 %v2941
    %v2943 = vpop.f32.mrb[0].mxu0
    %v2944 = vadd.f32 %v2683, %v2943
    %v2945 = vpop.f32.mrb[0].mxu0
    %2946 = vmatprep.mubr.f32.mxu0 0.0
    %v2947 = vand.u32 %v2559, 4294901760
    %2948 = vmatmul.mubr.f32.gmra.mrb[0].mxu0 %v2947
    %v2949 = vpop.f32.mrb[0].mxu0
    %v2950 = vadd.f32 %v2693, %v2949
    %v2951 = vpop.f32.mrb[0].mxu0
    %2952 = vmatprep.mubr.f32.mxu0 0.0
    %v2953 = vand.u32 %v2562, 4294901760
    %2954 = vmatmul.mubr.f32.gmra.mrb[0].mxu0 %v2953
    %v2955 = vpop.f32.mrb[0].mxu0
    %v2956 = vadd.f32 %v2703, %v2955
    %v2957 = vpop.f32.mrb[0].mxu0
    %2958 = vmatprep.mubr.f32.mxu0 0.0
    %v2959 = vand.u32 %v2565, 4294901760
    %2960 = vmatmul.mubr.f32.gmra.mrb[0].mxu0 %v2959
    %v2961 = vpop.f32.mrb[0].mxu0
    %v2962 = vadd.f32 %v2713, %v2961
    %v2963 = vpop.f32.mrb[0].mxu0
    %2964 = vmatprep.mubr.f32.mxu0 0.0
    %v2965 = vand.u32 %v2568, 4294901760
    %2966 = vmatmul.mubr.f32.gmra.mrb[0].mxu0 %v2965
    %v2967 = vpop.f32.mrb[0].mxu0
    %v2968 = vadd.f32 %v2723, %v2967
    %v2969 = vpop.f32.mrb[0].mxu0
    %2970 = vmatprep.mubr.f32.mxu0 0.0
    %v2971 = vand.u32 %v2571, 4294901760
    %2972 = vmatmul.mubr.f32.gmra.mrb[0].mxu0 %v2971
    %v2973 = vpop.f32.mrb[0].mxu0
    %v2974 = vadd.f32 %v2733, %v2973
    %v2975 = vpop.f32.mrb[0].mxu0
    %2976 = vmatprep.mubr.f32.mxu0 0.0
    %v2977 = vand.u32 %v2574, 4294901760
    %2978 = vmatmul.mubr.f32.gmra.mrb[0].mxu0 %v2977
    %v2979 = vpop.f32.mrb[0].mxu0
    %v2980 = vadd.f32 %v2743, %v2979
    %v2981 = vpop.f32.mrb[0].mxu0
    %2982 = vmatprep.mubr.f32.mxu0 0.0
    %v2983 = vand.u32 %v2577, 4294901760
    %2984 = vmatmul.mubr.f32.gmra.mrb[0].mxu0 %v2983
    %v2985 = vpop.f32.mrb[0].mxu0
    %v2986 = vadd.f32 %v2753, %v2985
    %v2987 = vpop.f32.mrb[0].mxu0
    %2988 = vmatprep.mubr.f32.mxu0 0.0
    %v2989 = vand.u32 %v2580, 4294901760
    %2990 = vmatmul.mubr.f32.gmra.mrb[0].mxu0 %v2989
    %v2991 = vpop.f32.mrb[0].mxu0
    %v2992 = vadd.f32 %v2763, %v2991
    %v2993 = vpop.f32.mrb[0].mxu0
    %2994 = vmatprep.mubr.f32.mxu0 0.0
    %v2995 = vand.u32 %v2583, 4294901760
    %2996 = vmatmul.mubr.f32.gmra.mrb[0].mxu0 %v2995
    %v2997 = vpop.f32.mrb[0].mxu0
    %v2998 = vadd.f32 %v2773, %v2997
    %v2999 = vpop.f32.mrb[0].mxu0
    %3000 = vmatprep.mubr.f32.mxu0 0.0
    %v3001 = vand.u32 %v2586, 4294901760
    %3002 = vmatmul.mubr.f32.gmra.mrb[0].mxu0 %v3001
    %v3003 = vpop.f32.mrb[0].mxu0
    %v3004 = vadd.f32 %v2783, %v3003
    %v3005 = vpop.f32.mrb[0].mxu0
    %3006 = vmatprep.mubr.f32.mxu0 0.0
    %v3007 = vand.u32 %v2589, 4294901760
    %3008 = vmatmul.mubr.f32.gmra.mrb[0].mxu0 %v3007
    %v3009 = vpop.f32.mrb[0].mxu0
    %v3010 = vadd.f32 %v2793, %v3009
    %v3011 = vpop.f32.mrb[0].mxu0
    %3012 = vmatprep.mubr.f32.mxu0 0.0
    %v3013 = vand.u32 %v2592, 4294901760
    %3014 = vmatmul.mubr.f32.gmra.mrb[0].mxu0 %v3013
    %v3015 = vpop.f32.mrb[0].mxu0
    %v3016 = vadd.f32 %v2803, %v3015
    %v3017 = vpop.f32.mrb[0].mxu0
    %3018 = vmatprep.mubr.f32.mxu0 0.0
    %v3019 = vand.u32 %v2595, 4294901760
    %3020 = vmatmul.mubr.f32.gmra.mrb[0].mxu0 %v3019
    %v3021 = vpop.f32.mrb[0].mxu0
    %v3022 = vadd.f32 %v2813, %v3021
    %v3023 = vpop.f32.mrb[0].mxu0
    %3024 = vmatprep.mubr.f32.mxu0 0.0
    %v3025 = vand.u32 %v2598, 4294901760
    %3026 = vmatmul.mubr.f32.gmra.mrb[0].mxu0 %v3025
    %v3027 = vpop.f32.mrb[0].mxu0
    %v3028 = vadd.f32 %v2823, %v3027
    %v3029 = vpop.f32.mrb[0].mxu0
    %3030 = vmatprep.mubr.f32.mxu0 0.0
    %v3031 = vand.u32 %v2601, 4294901760
    %3032 = vmatmul.mubr.f32.gmra.mrb[0].mxu0 %v3031
    %v3033 = vpop.f32.mrb[0].mxu0
    %v3034 = vadd.f32 %v2833, %v3033
    %v3035 = vpop.f32.mrb[0].mxu0
    %3036 = vdwg.mxu0
    %3037 = vmatprep.subr.mxu0 0.0
    %v3038 = vand.u32 %v2540, 4294901760
    %v3039 = vsub.f32 %v2540, %v3038
    %3040 = vmatpush1.msra.mxu0 %v3039
    %3041 = vmatprep.subr.mxu0 0.0
    %v3042 = vand.u32 %v2541, 4294901760
    %v3043 = vsub.f32 %v2541, %v3042
    %3044 = vmatpush1.msra.mxu0 %v3043
    %3045 = vmatprep.subr.mxu0 0.0
    %v3046 = vand.u32 %v2542, 4294901760
    %v3047 = vsub.f32 %v2542, %v3046
    %3048 = vmatpush1.msra.mxu0 %v3047
    %3049 = vmatprep.subr.mxu0 0.0
    %v3050 = vand.u32 %v2543, 4294901760
    %v3051 = vsub.f32 %v2543, %v3050
    %3052 = vmatpush1.msra.mxu0 %v3051
    %3053 = vmatprep.subr.mxu0 0.0
    %v3054 = vand.u32 %v2544, 4294901760
    %v3055 = vsub.f32 %v2544, %v3054
    %3056 = vmatpush1.msra.mxu0 %v3055
    %3057 = vmatprep.subr.mxu0 0.0
    %v3058 = vand.u32 %v2545, 4294901760
    %v3059 = vsub.f32 %v2545, %v3058
    %3060 = vmatpush1.msra.mxu0 %v3059
    %3061 = vmatprep.subr.mxu0 0.0
    %v3062 = vand.u32 %v2546, 4294901760
    %v3063 = vsub.f32 %v2546, %v3062
    %3064 = vmatpush1.msra.mxu0 %v3063
    %3065 = vmatprep.subr.mxu0 0.0
    %v3066 = vand.u32 %v2547, 4294901760
    %v3067 = vsub.f32 %v2547, %v3066
    %3068 = vmatpush1.msra.mxu0 %v3067
    %3069 = vmatprep.subr.mxu0 0.0
    %3070 = vmatpush1.msra.mxu0 0.0
    %3071 = vmatprep.subr.mxu0 0.0
    %3072 = vmatpush1.msra.mxu0 0.0
    %3073 = vmatprep.subr.mxu0 0.0
    %3074 = vmatpush1.msra.mxu0 0.0
    %3075 = vmatprep.subr.mxu0 0.0
    %3076 = vmatpush1.msra.mxu0 0.0
    %3077 = vmatprep.subr.mxu0 0.0
    %3078 = vmatpush1.msra.mxu0 0.0
    %3079 = vmatprep.subr.mxu0 0.0
    %3080 = vmatpush1.msra.mxu0 0.0
    %3081 = vmatprep.subr.mxu0 0.0
    %3082 = vmatpush1.msra.mxu0 0.0
    %3083 = vmatprep.subr.mxu0 0.0
    %3084 = vmatpush1.msra.mxu0 0.0
    %3085 = vmatprep.subr.mxu0 0.0
    %3086 = vmatpush1.msra.mxu0 0.0
    %3087 = vmatprep.subr.mxu0 0.0
    %3088 = vmatpush1.msra.mxu0 0.0
    %3089 = vmatprep.subr.mxu0 0.0
    %3090 = vmatpush1.msra.mxu0 0.0
    %3091 = vmatprep.subr.mxu0 0.0
    %3092 = vmatpush1.msra.mxu0 0.0
    %3093 = vmatprep.subr.mxu0 0.0
    %3094 = vmatpush1.msra.mxu0 0.0
    %3095 = vmatprep.subr.mxu0 0.0
    %3096 = vmatpush1.msra.mxu0 0.0
    %3097 = vmatprep.subr.mxu0 0.0
    %3098 = vmatpush1.msra.mxu0 0.0
    %3099 = vmatprep.subr.mxu0 0.0
    %3100 = vmatpush1.msra.mxu0 0.0
    %3101 = vmatprep.subr.mxu0 0.0
    %3102 = vmatpush1.msra.mxu0 0.0
    %3103 = vmatprep.subr.mxu0 0.0
    %3104 = vmatpush1.msra.mxu0 0.0
    %3105 = vmatprep.subr.mxu0 0.0
    %3106 = vmatpush1.msra.mxu0 0.0
    %3107 = vmatprep.subr.mxu0 0.0
    %3108 = vmatpush1.msra.mxu0 0.0
    %3109 = vmatprep.subr.mxu0 0.0
    %3110 = vmatpush1.msra.mxu0 0.0
    %3111 = vmatprep.subr.mxu0 0.0
    %3112 = vmatpush1.msra.mxu0 0.0
    %3113 = vmatprep.subr.mxu0 0.0
    %3114 = vmatpush1.msra.mxu0 0.0
    %3115 = vmatprep.subr.mxu0 0.0
    %3116 = vmatpush1.msra.mxu0 0.0
    %3117 = vmatprep.mubr.f32.mxu0 0.0
    %v3118 = vand.u32 %v2556, 4294901760
    %v3119 = vsub.f32 %v2556, %v3118
    %3120 = vmatmul.mubr.f32.gmra.mrb[0].mxu0 %v3119
    %v3121 = vpop.f32.mrb[0].mxu0
    %v3122 = vadd.f32 %v2944, %v3121
    %v3123 = vpop.f32.mrb[0].mxu0
    %3124 = vmatprep.mubr.f32.mxu0 0.0
    %v3125 = vand.u32 %v2559, 4294901760
    %v3126 = vsub.f32 %v2559, %v3125
    %3127 = vmatmul.mubr.f32.gmra.mrb[0].mxu0 %v3126
    %v3128 = vpop.f32.mrb[0].mxu0
    %v3129 = vadd.f32 %v2950, %v3128
    %v3130 = vpop.f32.mrb[0].mxu0
    %3131 = vmatprep.mubr.f32.mxu0 0.0
    %v3132 = vand.u32 %v2562, 4294901760
    %v3133 = vsub.f32 %v2562, %v3132
    %3134 = vmatmul.mubr.f32.gmra.mrb[0].mxu0 %v3133
    %v3135 = vpop.f32.mrb[0].mxu0
    %v3136 = vadd.f32 %v2956, %v3135
    %v3137 = vpop.f32.mrb[0].mxu0
    %3138 = vmatprep.mubr.f32.mxu0 0.0
    %v3139 = vand.u32 %v2565, 4294901760
    %v3140 = vsub.f32 %v2565, %v3139
    %3141 = vmatmul.mubr.f32.gmra.mrb[0].mxu0 %v3140
    %v3142 = vpop.f32.mrb[0].mxu0
    %v3143 = vadd.f32 %v2962, %v3142
    %v3144 = vpop.f32.mrb[0].mxu0
    %3145 = vmatprep.mubr.f32.mxu0 0.0
    %v3146 = vand.u32 %v2568, 4294901760
    %v3147 = vsub.f32 %v2568, %v3146
    %3148 = vmatmul.mubr.f32.gmra.mrb[0].mxu0 %v3147
    %v3149 = vpop.f32.mrb[0].mxu0
    %v3150 = vadd.f32 %v2968, %v3149
    %v3151 = vpop.f32.mrb[0].mxu0
    %3152 = vmatprep.mubr.f32.mxu0 0.0
    %v3153 = vand.u32 %v2571, 4294901760
    %v3154 = vsub.f32 %v2571, %v3153
    %3155 = vmatmul.mubr.f32.gmra.mrb[0].mxu0 %v3154
    %v3156 = vpop.f32.mrb[0].mxu0
    %v3157 = vadd.f32 %v2974, %v3156
    %v3158 = vpop.f32.mrb[0].mxu0
    %3159 = vmatprep.mubr.f32.mxu0 0.0
    %v3160 = vand.u32 %v2574, 4294901760
    %v3161 = vsub.f32 %v2574, %v3160
    %3162 = vmatmul.mubr.f32.gmra.mrb[0].mxu0 %v3161
    %v3163 = vpop.f32.mrb[0].mxu0
    %v3164 = vadd.f32 %v2980, %v3163
    %v3165 = vpop.f32.mrb[0].mxu0
    %3166 = vmatprep.mubr.f32.mxu0 0.0
    %v3167 = vand.u32 %v2577, 4294901760
    %v3168 = vsub.f32 %v2577, %v3167
    %3169 = vmatmul.mubr.f32.gmra.mrb[0].mxu0 %v3168
    %v3170 = vpop.f32.mrb[0].mxu0
    %v3171 = vadd.f32 %v2986, %v3170
    %v3172 = vpop.f32.mrb[0].mxu0
    %3173 = vmatprep.mubr.f32.mxu0 0.0
    %v3174 = vand.u32 %v2580, 4294901760
    %v3175 = vsub.f32 %v2580, %v3174
    %3176 = vmatmul.mubr.f32.gmra.mrb[0].mxu0 %v3175
    %v3177 = vpop.f32.mrb[0].mxu0
    %v3178 = vadd.f32 %v2992, %v3177
    %v3179 = vpop.f32.mrb[0].mxu0
    %3180 = vmatprep.mubr.f32.mxu0 0.0
    %v3181 = vand.u32 %v2583, 4294901760
    %v3182 = vsub.f32 %v2583, %v3181
    %3183 = vmatmul.mubr.f32.gmra.mrb[0].mxu0 %v3182
    %v3184 = vpop.f32.mrb[0].mxu0
    %v3185 = vadd.f32 %v2998, %v3184
    %v3186 = vpop.f32.mrb[0].mxu0
    %3187 = vmatprep.mubr.f32.mxu0 0.0
    %v3188 = vand.u32 %v2586, 4294901760
    %v3189 = vsub.f32 %v2586, %v3188
    %3190 = vmatmul.mubr.f32.gmra.mrb[0].mxu0 %v3189
    %v3191 = vpop.f32.mrb[0].mxu0
    %v3192 = vadd.f32 %v3004, %v3191
    %v3193 = vpop.f32.mrb[0].mxu0
    %3194 = vmatprep.mubr.f32.mxu0 0.0
    %v3195 = vand.u32 %v2589, 4294901760
    %v3196 = vsub.f32 %v2589, %v3195
    %3197 = vmatmul.mubr.f32.gmra.mrb[0].mxu0 %v3196
    %v3198 = vpop.f32.mrb[0].mxu0
    %v3199 = vadd.f32 %v3010, %v3198
    %v3200 = vpop.f32.mrb[0].mxu0
    %3201 = vmatprep.mubr.f32.mxu0 0.0
    %v3202 = vand.u32 %v2592, 4294901760
    %v3203 = vsub.f32 %v2592, %v3202
    %3204 = vmatmul.mubr.f32.gmra.mrb[0].mxu0 %v3203
    %v3205 = vpop.f32.mrb[0].mxu0
    %v3206 = vadd.f32 %v3016, %v3205
    %v3207 = vpop.f32.mrb[0].mxu0
    %3208 = vmatprep.mubr.f32.mxu0 0.0
    %v3209 = vand.u32 %v2595, 4294901760
    %v3210 = vsub.f32 %v2595, %v3209
    %3211 = vmatmul.mubr.f32.gmra.mrb[0].mxu0 %v3210
    %v3212 = vpop.f32.mrb[0].mxu0
    %v3213 = vadd.f32 %v3022, %v3212
    %v3214 = vpop.f32.mrb[0].mxu0
    %3215 = vmatprep.mubr.f32.mxu0 0.0
    %v3216 = vand.u32 %v2598, 4294901760
    %v3217 = vsub.f32 %v2598, %v3216
    %3218 = vmatmul.mubr.f32.gmra.mrb[0].mxu0 %v3217
    %v3219 = vpop.f32.mrb[0].mxu0
    %v3220 = vadd.f32 %v3028, %v3219
    %v3221 = vpop.f32.mrb[0].mxu0
    %3222 = vmatprep.mubr.f32.mxu0 0.0
    %v3223 = vand.u32 %v2601, 4294901760
    %v3224 = vsub.f32 %v2601, %v3223
    %3225 = vmatmul.mubr.f32.gmra.mrb[0].mxu0 %v3224
    %v3226 = vpop.f32.mrb[0].mxu0
    %v3227 = vadd.f32 %v3034, %v3226
    %v3228 = vpop.f32.mrb[0].mxu0
    %3229 = vdwg.mxu0
    %3230 = vmatprep.subr.mxu0 0.0
    %v3231 = vand.u32 %v2540, 4294901760
    %3232 = vmatpush1.msra.mxu0 %v3231
    %3233 = vmatprep.subr.mxu0 0.0
    %v3234 = vand.u32 %v2541, 4294901760
    %3235 = vmatpush1.msra.mxu0 %v3234
    %3236 = vmatprep.subr.mxu0 0.0
    %v3237 = vand.u32 %v2542, 4294901760
    %3238 = vmatpush1.msra.mxu0 %v3237
    %3239 = vmatprep.subr.mxu0 0.0
    %v3240 = vand.u32 %v2543, 4294901760
    %3241 = vmatpush1.msra.mxu0 %v3240
    %3242 = vmatprep.subr.mxu0 0.0
    %v3243 = vand.u32 %v2544, 4294901760
    %3244 = vmatpush1.msra.mxu0 %v3243
    %3245 = vmatprep.subr.mxu0 0.0
    %v3246 = vand.u32 %v2545, 4294901760
    %3247 = vmatpush1.msra.mxu0 %v3246
    %3248 = vmatprep.subr.mxu0 0.0
    %v3249 = vand.u32 %v2546, 4294901760
    %3250 = vmatpush1.msra.mxu0 %v3249
    %3251 = vmatprep.subr.mxu0 0.0
    %v3252 = vand.u32 %v2547, 4294901760
    %3253 = vmatpush1.msra.mxu0 %v3252
    %3254 = vmatprep.subr.mxu0 0.0
    %3255 = vmatpush1.msra.mxu0 0.0
    %3256 = vmatprep.subr.mxu0 0.0
    %3257 = vmatpush1.msra.mxu0 0.0
    %3258 = vmatprep.subr.mxu0 0.0
    %3259 = vmatpush1.msra.mxu0 0.0
    %3260 = vmatprep.subr.mxu0 0.0
    %3261 = vmatpush1.msra.mxu0 0.0
    %3262 = vmatprep.subr.mxu0 0.0
    %3263 = vmatpush1.msra.mxu0 0.0
    %3264 = vmatprep.subr.mxu0 0.0
    %3265 = vmatpush1.msra.mxu0 0.0
    %3266 = vmatprep.subr.mxu0 0.0
    %3267 = vmatpush1.msra.mxu0 0.0
    %3268 = vmatprep.subr.mxu0 0.0
    %3269 = vmatpush1.msra.mxu0 0.0
    %3270 = vmatprep.subr.mxu0 0.0
    %3271 = vmatpush1.msra.mxu0 0.0
    %3272 = vmatprep.subr.mxu0 0.0
    %3273 = vmatpush1.msra.mxu0 0.0
    %3274 = vmatprep.subr.mxu0 0.0
    %3275 = vmatpush1.msra.mxu0 0.0
    %3276 = vmatprep.subr.mxu0 0.0
    %3277 = vmatpush1.msra.mxu0 0.0
    %3278 = vmatprep.subr.mxu0 0.0
    %3279 = vmatpush1.msra.mxu0 0.0
    %3280 = vmatprep.subr.mxu0 0.0
    %3281 = vmatpush1.msra.mxu0 0.0
    %3282 = vmatprep.subr.mxu0 0.0
    %3283 = vmatpush1.msra.mxu0 0.0
    %3284 = vmatprep.subr.mxu0 0.0
    %3285 = vmatpush1.msra.mxu0 0.0
    %3286 = vmatprep.subr.mxu0 0.0
    %3287 = vmatpush1.msra.mxu0 0.0
    %3288 = vmatprep.subr.mxu0 0.0
    %3289 = vmatpush1.msra.mxu0 0.0
    %3290 = vmatprep.subr.mxu0 0.0
    %3291 = vmatpush1.msra.mxu0 0.0
    %3292 = vmatprep.subr.mxu0 0.0
    %3293 = vmatpush1.msra.mxu0 0.0
    %3294 = vmatprep.subr.mxu0 0.0
    %3295 = vmatpush1.msra.mxu0 0.0
    %3296 = vmatprep.subr.mxu0 0.0
    %3297 = vmatpush1.msra.mxu0 0.0
    %3298 = vmatprep.subr.mxu0 0.0
    %3299 = vmatpush1.msra.mxu0 0.0
    %3300 = vmatprep.subr.mxu0 0.0
    %3301 = vmatpush1.msra.mxu0 0.0
    %3302 = vmatprep.mubr.f32.mxu0 0.0
    %v3303 = vand.u32 %v2556, 4294901760
    %v3304 = vsub.f32 %v2556, %v3303
    %v3305 = vand.u32 %v3304, 4294901760
    %3306 = vmatmul.mubr.f32.gmra.mrb[0].mxu0 %v3305
    %v3307 = vpop.f32.mrb[0].mxu0
    %v3308 = vadd.f32 %v3122, %v3307
    %v3309 = vpop.f32.mrb[0].mxu0
    %3310 = vmatprep.mubr.f32.mxu0 0.0
    %v3311 = vand.u32 %v2559, 4294901760
    %v3312 = vsub.f32 %v2559, %v3311
    %v3313 = vand.u32 %v3312, 4294901760
    %3314 = vmatmul.mubr.f32.gmra.mrb[0].mxu0 %v3313
    %v3315 = vpop.f32.mrb[0].mxu0
    %v3316 = vadd.f32 %v3129, %v3315
    %v3317 = vpop.f32.mrb[0].mxu0
    %3318 = vmatprep.mubr.f32.mxu0 0.0
    %v3319 = vand.u32 %v2562, 4294901760
    %v3320 = vsub.f32 %v2562, %v3319
    %v3321 = vand.u32 %v3320, 4294901760
    %3322 = vmatmul.mubr.f32.gmra.mrb[0].mxu0 %v3321
    %v3323 = vpop.f32.mrb[0].mxu0
    %v3324 = vadd.f32 %v3136, %v3323
    %v3325 = vpop.f32.mrb[0].mxu0
    %3326 = vmatprep.mubr.f32.mxu0 0.0
    %v3327 = vand.u32 %v2565, 4294901760
    %v3328 = vsub.f32 %v2565, %v3327
    %v3329 = vand.u32 %v3328, 4294901760
    %3330 = vmatmul.mubr.f32.gmra.mrb[0].mxu0 %v3329
    %v3331 = vpop.f32.mrb[0].mxu0
    %v3332 = vadd.f32 %v3143, %v3331
    %v3333 = vpop.f32.mrb[0].mxu0
    %3334 = vmatprep.mubr.f32.mxu0 0.0
    %v3335 = vand.u32 %v2568, 4294901760
    %v3336 = vsub.f32 %v2568, %v3335
    %v3337 = vand.u32 %v3336, 4294901760
    %3338 = vmatmul.mubr.f32.gmra.mrb[0].mxu0 %v3337
    %v3339 = vpop.f32.mrb[0].mxu0
    %v3340 = vadd.f32 %v3150, %v3339
    %v3341 = vpop.f32.mrb[0].mxu0
    %3342 = vmatprep.mubr.f32.mxu0 0.0
    %v3343 = vand.u32 %v2571, 4294901760
    %v3344 = vsub.f32 %v2571, %v3343
    %v3345 = vand.u32 %v3344, 4294901760
    %3346 = vmatmul.mubr.f32.gmra.mrb[0].mxu0 %v3345
    %v3347 = vpop.f32.mrb[0].mxu0
    %v3348 = vadd.f32 %v3157, %v3347
    %v3349 = vpop.f32.mrb[0].mxu0
    %3350 = vmatprep.mubr.f32.mxu0 0.0
    %v3351 = vand.u32 %v2574, 4294901760
    %v3352 = vsub.f32 %v2574, %v3351
    %v3353 = vand.u32 %v3352, 4294901760
    %3354 = vmatmul.mubr.f32.gmra.mrb[0].mxu0 %v3353
    %v3355 = vpop.f32.mrb[0].mxu0
    %v3356 = vadd.f32 %v3164, %v3355
    %v3357 = vpop.f32.mrb[0].mxu0
    %3358 = vmatprep.mubr.f32.mxu0 0.0
    %v3359 = vand.u32 %v2577, 4294901760
    %v3360 = vsub.f32 %v2577, %v3359
    %v3361 = vand.u32 %v3360, 4294901760
    %3362 = vmatmul.mubr.f32.gmra.mrb[0].mxu0 %v3361
    %v3363 = vpop.f32.mrb[0].mxu0
    %v3364 = vadd.f32 %v3171, %v3363
    %v3365 = vpop.f32.mrb[0].mxu0
    %3366 = vmatprep.mubr.f32.mxu0 0.0
    %v3367 = vand.u32 %v2580, 4294901760
    %v3368 = vsub.f32 %v2580, %v3367
    %v3369 = vand.u32 %v3368, 4294901760
    %3370 = vmatmul.mubr.f32.gmra.mrb[0].mxu0 %v3369
    %v3371 = vpop.f32.mrb[0].mxu0
    %v3372 = vadd.f32 %v3178, %v3371
    %v3373 = vpop.f32.mrb[0].mxu0
    %3374 = vmatprep.mubr.f32.mxu0 0.0
    %v3375 = vand.u32 %v2583, 4294901760
    %v3376 = vsub.f32 %v2583, %v3375
    %v3377 = vand.u32 %v3376, 4294901760
    %3378 = vmatmul.mubr.f32.gmra.mrb[0].mxu0 %v3377
    %v3379 = vpop.f32.mrb[0].mxu0
    %v3380 = vadd.f32 %v3185, %v3379
    %v3381 = vpop.f32.mrb[0].mxu0
    %3382 = vmatprep.mubr.f32.mxu0 0.0
    %v3383 = vand.u32 %v2586, 4294901760
    %v3384 = vsub.f32 %v2586, %v3383
    %v3385 = vand.u32 %v3384, 4294901760
    %3386 = vmatmul.mubr.f32.gmra.mrb[0].mxu0 %v3385
    %v3387 = vpop.f32.mrb[0].mxu0
    %v3388 = vadd.f32 %v3192, %v3387
    %v3389 = vpop.f32.mrb[0].mxu0
    %3390 = vmatprep.mubr.f32.mxu0 0.0
    %v3391 = vand.u32 %v2589, 4294901760
    %v3392 = vsub.f32 %v2589, %v3391
    %v3393 = vand.u32 %v3392, 4294901760
    %3394 = vmatmul.mubr.f32.gmra.mrb[0].mxu0 %v3393
    %v3395 = vpop.f32.mrb[0].mxu0
    %v3396 = vadd.f32 %v3199, %v3395
    %v3397 = vpop.f32.mrb[0].mxu0
    %3398 = vmatprep.mubr.f32.mxu0 0.0
    %v3399 = vand.u32 %v2592, 4294901760
    %v3400 = vsub.f32 %v2592, %v3399
    %v3401 = vand.u32 %v3400, 4294901760
    %3402 = vmatmul.mubr.f32.gmra.mrb[0].mxu0 %v3401
    %v3403 = vpop.f32.mrb[0].mxu0
    %v3404 = vadd.f32 %v3206, %v3403
    %v3405 = vpop.f32.mrb[0].mxu0
    %3406 = vmatprep.mubr.f32.mxu0 0.0
    %v3407 = vand.u32 %v2595, 4294901760
    %v3408 = vsub.f32 %v2595, %v3407
    %v3409 = vand.u32 %v3408, 4294901760
    %3410 = vmatmul.mubr.f32.gmra.mrb[0].mxu0 %v3409
    %v3411 = vpop.f32.mrb[0].mxu0
    %v3412 = vadd.f32 %v3213, %v3411
    %v3413 = vpop.f32.mrb[0].mxu0
    %3414 = vmatprep.mubr.f32.mxu0 0.0
    %v3415 = vand.u32 %v2598, 4294901760
    %v3416 = vsub.f32 %v2598, %v3415
    %v3417 = vand.u32 %v3416, 4294901760
    %3418 = vmatmul.mubr.f32.gmra.mrb[0].mxu0 %v3417
    %v3419 = vpop.f32.mrb[0].mxu0
    %v3420 = vadd.f32 %v3220, %v3419
    %v3421 = vpop.f32.mrb[0].mxu0
    %3422 = vmatprep.mubr.f32.mxu0 0.0
    %v3423 = vand.u32 %v2601, 4294901760
    %v3424 = vsub.f32 %v2601, %v3423
    %v3425 = vand.u32 %v3424, 4294901760
    %3426 = vmatmul.mubr.f32.gmra.mrb[0].mxu0 %v3425
    %v3427 = vpop.f32.mrb[0].mxu0
    %v3428 = vadd.f32 %v3227, %v3427
    %v3429 = vpop.f32.mrb[0].mxu0
    %3430 = vdwg.mxu0
    %3431 = vmatprep.subr.mxu0 0.0
    %v3432 = vand.u32 %v2540, 4294901760
    %v3433 = vsub.f32 %v2540, %v3432
    %v3434 = vand.u32 %v3433, 4294901760
    %3435 = vmatpush1.msra.mxu0 %v3434
    %3436 = vmatprep.subr.mxu0 0.0
    %v3437 = vand.u32 %v2541, 4294901760
    %v3438 = vsub.f32 %v2541, %v3437
    %v3439 = vand.u32 %v3438, 4294901760
    %3440 = vmatpush1.msra.mxu0 %v3439
    %3441 = vmatprep.subr.mxu0 0.0
    %v3442 = vand.u32 %v2542, 4294901760
    %v3443 = vsub.f32 %v2542, %v3442
    %v3444 = vand.u32 %v3443, 4294901760
    %3445 = vmatpush1.msra.mxu0 %v3444
    %3446 = vmatprep.subr.mxu0 0.0
    %v3447 = vand.u32 %v2543, 4294901760
    %v3448 = vsub.f32 %v2543, %v3447
    %v3449 = vand.u32 %v3448, 4294901760
    %3450 = vmatpush1.msra.mxu0 %v3449
    %3451 = vmatprep.subr.mxu0 0.0
    %v3452 = vand.u32 %v2544, 4294901760
    %v3453 = vsub.f32 %v2544, %v3452
    %v3454 = vand.u32 %v3453, 4294901760
    %3455 = vmatpush1.msra.mxu0 %v3454
    %3456 = vmatprep.subr.mxu0 0.0
    %v3457 = vand.u32 %v2545, 4294901760
    %v3458 = vsub.f32 %v2545, %v3457
    %v3459 = vand.u32 %v3458, 4294901760
    %3460 = vmatpush1.msra.mxu0 %v3459
    %3461 = vmatprep.subr.mxu0 0.0
    %v3462 = vand.u32 %v2546, 4294901760
    %v3463 = vsub.f32 %v2546, %v3462
    %v3464 = vand.u32 %v3463, 4294901760
    %3465 = vmatpush1.msra.mxu0 %v3464
    %3466 = vmatprep.subr.mxu0 0.0
    %v3467 = vand.u32 %v2547, 4294901760
    %v3468 = vsub.f32 %v2547, %v3467
    %v3469 = vand.u32 %v3468, 4294901760
    %3470 = vmatpush1.msra.mxu0 %v3469
    %3471 = vmatprep.subr.mxu0 0.0
    %3472 = vmatpush1.msra.mxu0 0.0
    %3473 = vmatprep.subr.mxu0 0.0
    %3474 = vmatpush1.msra.mxu0 0.0
    %3475 = vmatprep.subr.mxu0 0.0
    %3476 = vmatpush1.msra.mxu0 0.0
    %3477 = vmatprep.subr.mxu0 0.0
    %3478 = vmatpush1.msra.mxu0 0.0
    %3479 = vmatprep.subr.mxu0 0.0
    %3480 = vmatpush1.msra.mxu0 0.0
    %3481 = vmatprep.subr.mxu0 0.0
    %3482 = vmatpush1.msra.mxu0 0.0
    %3483 = vmatprep.subr.mxu0 0.0
    %3484 = vmatpush1.msra.mxu0 0.0
    %3485 = vmatprep.subr.mxu0 0.0
    %3486 = vmatpush1.msra.mxu0 0.0
    %3487 = vmatprep.subr.mxu0 0.0
    %3488 = vmatpush1.msra.mxu0 0.0
    %3489 = vmatprep.subr.mxu0 0.0
    %3490 = vmatpush1.msra.mxu0 0.0
    %3491 = vmatprep.subr.mxu0 0.0
    %3492 = vmatpush1.msra.mxu0 0.0
    %3493 = vmatprep.subr.mxu0 0.0
    %3494 = vmatpush1.msra.mxu0 0.0
    %3495 = vmatprep.subr.mxu0 0.0
    %3496 = vmatpush1.msra.mxu0 0.0
    %3497 = vmatprep.subr.mxu0 0.0
    %3498 = vmatpush1.msra.mxu0 0.0
    %3499 = vmatprep.subr.mxu0 0.0
    %3500 = vmatpush1.msra.mxu0 0.0
    %3501 = vmatprep.subr.mxu0 0.0
    %3502 = vmatpush1.msra.mxu0 0.0
    %3503 = vmatprep.subr.mxu0 0.0
    %3504 = vmatpush1.msra.mxu0 0.0
    %3505 = vmatprep.subr.mxu0 0.0
    %3506 = vmatpush1.msra.mxu0 0.0
    %3507 = vmatprep.subr.mxu0 0.0
    %3508 = vmatpush1.msra.mxu0 0.0
    %3509 = vmatprep.subr.mxu0 0.0
    %3510 = vmatpush1.msra.mxu0 0.0
    %3511 = vmatprep.subr.mxu0 0.0
    %3512 = vmatpush1.msra.mxu0 0.0
    %3513 = vmatprep.subr.mxu0 0.0
    %3514 = vmatpush1.msra.mxu0 0.0
    %3515 = vmatprep.subr.mxu0 0.0
    %3516 = vmatpush1.msra.mxu0 0.0
    %3517 = vmatprep.subr.mxu0 0.0
    %3518 = vmatpush1.msra.mxu0 0.0
    %3519 = vmatprep.mubr.f32.mxu0 0.0
    %v3520 = vand.u32 %v2556, 4294901760
    %3521 = vmatmul.mubr.f32.gmra.mrb[0].mxu0 %v3520
    %v3522 = vpop.f32.mrb[0].mxu0
    %v3523 = vadd.f32 %v3308, %v3522
    %v3524 = vpop.f32.mrb[0].mxu0
    %3525 = vmatprep.mubr.f32.mxu0 0.0
    %v3526 = vand.u32 %v2559, 4294901760
    %3527 = vmatmul.mubr.f32.gmra.mrb[0].mxu0 %v3526
    %v3528 = vpop.f32.mrb[0].mxu0
    %v3529 = vadd.f32 %v3316, %v3528
    %v3530 = vpop.f32.mrb[0].mxu0
    %3531 = vmatprep.mubr.f32.mxu0 0.0
    %v3532 = vand.u32 %v2562, 4294901760
    %3533 = vmatmul.mubr.f32.gmra.mrb[0].mxu0 %v3532
    %v3534 = vpop.f32.mrb[0].mxu0
    %v3535 = vadd.f32 %v3324, %v3534
    %v3536 = vpop.f32.mrb[0].mxu0
    %3537 = vmatprep.mubr.f32.mxu0 0.0
    %v3538 = vand.u32 %v2565, 4294901760
    %3539 = vmatmul.mubr.f32.gmra.mrb[0].mxu0 %v3538
    %v3540 = vpop.f32.mrb[0].mxu0
    %v3541 = vadd.f32 %v3332, %v3540
    %v3542 = vpop.f32.mrb[0].mxu0
    %3543 = vmatprep.mubr.f32.mxu0 0.0
    %v3544 = vand.u32 %v2568, 4294901760
    %3545 = vmatmul.mubr.f32.gmra.mrb[0].mxu0 %v3544
    %v3546 = vpop.f32.mrb[0].mxu0
    %v3547 = vadd.f32 %v3340, %v3546
    %v3548 = vpop.f32.mrb[0].mxu0
    %3549 = vmatprep.mubr.f32.mxu0 0.0
    %v3550 = vand.u32 %v2571, 4294901760
    %3551 = vmatmul.mubr.f32.gmra.mrb[0].mxu0 %v3550
    %v3552 = vpop.f32.mrb[0].mxu0
    %v3553 = vadd.f32 %v3348, %v3552
    %v3554 = vpop.f32.mrb[0].mxu0
    %3555 = vmatprep.mubr.f32.mxu0 0.0
    %v3556 = vand.u32 %v2574, 4294901760
    %3557 = vmatmul.mubr.f32.gmra.mrb[0].mxu0 %v3556
    %v3558 = vpop.f32.mrb[0].mxu0
    %v3559 = vadd.f32 %v3356, %v3558
    %v3560 = vpop.f32.mrb[0].mxu0
    %3561 = vmatprep.mubr.f32.mxu0 0.0
    %v3562 = vand.u32 %v2577, 4294901760
    %3563 = vmatmul.mubr.f32.gmra.mrb[0].mxu0 %v3562
    %v3564 = vpop.f32.mrb[0].mxu0
    %v3565 = vadd.f32 %v3364, %v3564
    %v3566 = vpop.f32.mrb[0].mxu0
    %3567 = vmatprep.mubr.f32.mxu0 0.0
    %v3568 = vand.u32 %v2580, 4294901760
    %3569 = vmatmul.mubr.f32.gmra.mrb[0].mxu0 %v3568
    %v3570 = vpop.f32.mrb[0].mxu0
    %v3571 = vadd.f32 %v3372, %v3570
    %v3572 = vpop.f32.mrb[0].mxu0
    %3573 = vmatprep.mubr.f32.mxu0 0.0
    %v3574 = vand.u32 %v2583, 4294901760
    %3575 = vmatmul.mubr.f32.gmra.mrb[0].mxu0 %v3574
    %v3576 = vpop.f32.mrb[0].mxu0
    %v3577 = vadd.f32 %v3380, %v3576
    %v3578 = vpop.f32.mrb[0].mxu0
    %3579 = vmatprep.mubr.f32.mxu0 0.0
    %v3580 = vand.u32 %v2586, 4294901760
    %3581 = vmatmul.mubr.f32.gmra.mrb[0].mxu0 %v3580
    %v3582 = vpop.f32.mrb[0].mxu0
    %v3583 = vadd.f32 %v3388, %v3582
    %v3584 = vpop.f32.mrb[0].mxu0
    %3585 = vmatprep.mubr.f32.mxu0 0.0
    %v3586 = vand.u32 %v2589, 4294901760
    %3587 = vmatmul.mubr.f32.gmra.mrb[0].mxu0 %v3586
    %v3588 = vpop.f32.mrb[0].mxu0
    %v3589 = vadd.f32 %v3396, %v3588
    %v3590 = vpop.f32.mrb[0].mxu0
    %3591 = vmatprep.mubr.f32.mxu0 0.0
    %v3592 = vand.u32 %v2592, 4294901760
    %3593 = vmatmul.mubr.f32.gmra.mrb[0].mxu0 %v3592
    %v3594 = vpop.f32.mrb[0].mxu0
    %v3595 = vadd.f32 %v3404, %v3594
    %v3596 = vpop.f32.mrb[0].mxu0
    %3597 = vmatprep.mubr.f32.mxu0 0.0
    %v3598 = vand.u32 %v2595, 4294901760
    %3599 = vmatmul.mubr.f32.gmra.mrb[0].mxu0 %v3598
    %v3600 = vpop.f32.mrb[0].mxu0
    %v3601 = vadd.f32 %v3412, %v3600
    %v3602 = vpop.f32.mrb[0].mxu0
    %3603 = vmatprep.mubr.f32.mxu0 0.0
    %v3604 = vand.u32 %v2598, 4294901760
    %3605 = vmatmul.mubr.f32.gmra.mrb[0].mxu0 %v3604
    %v3606 = vpop.f32.mrb[0].mxu0
    %v3607 = vadd.f32 %v3420, %v3606
    %v3608 = vpop.f32.mrb[0].mxu0
    %3609 = vmatprep.mubr.f32.mxu0 0.0
    %v3610 = vand.u32 %v2601, 4294901760
    %3611 = vmatmul.mubr.f32.gmra.mrb[0].mxu0 %v3610
    %v3612 = vpop.f32.mrb[0].mxu0
    %v3613 = vadd.f32 %v3428, %v3612
    %v3614 = vpop.f32.mrb[0].mxu0
    %3615 = vdwg.mxu0
    %3616 = vmatprep.subr.mxu0 0.0
    %v3617 = vand.u32 %v2540, 4294901760
    %3618 = vmatpush1.msra.mxu0 %v3617
    %3619 = vmatprep.subr.mxu0 0.0
    %v3620 = vand.u32 %v2541, 4294901760
    %3621 = vmatpush1.msra.mxu0 %v3620
    %3622 = vmatprep.subr.mxu0 0.0
    %v3623 = vand.u32 %v2542, 4294901760
    %3624 = vmatpush1.msra.mxu0 %v3623
    %3625 = vmatprep.subr.mxu0 0.0
    %v3626 = vand.u32 %v2543, 4294901760
    %3627 = vmatpush1.msra.mxu0 %v3626
    %3628 = vmatprep.subr.mxu0 0.0
    %v3629 = vand.u32 %v2544, 4294901760
    %3630 = vmatpush1.msra.mxu0 %v3629
    %3631 = vmatprep.subr.mxu0 0.0
    %v3632 = vand.u32 %v2545, 4294901760
    %3633 = vmatpush1.msra.mxu0 %v3632
    %3634 = vmatprep.subr.mxu0 0.0
    %v3635 = vand.u32 %v2546, 4294901760
    %3636 = vmatpush1.msra.mxu0 %v3635
    %3637 = vmatprep.subr.mxu0 0.0
    %v3638 = vand.u32 %v2547, 4294901760
    %3639 = vmatpush1.msra.mxu0 %v3638
    %3640 = vmatprep.subr.mxu0 0.0
    %3641 = vmatpush1.msra.mxu0 0.0
    %3642 = vmatprep.subr.mxu0 0.0
    %3643 = vmatpush1.msra.mxu0 0.0
    %3644 = vmatprep.subr.mxu0 0.0
    %3645 = vmatpush1.msra.mxu0 0.0
    %3646 = vmatprep.subr.mxu0 0.0
    %3647 = vmatpush1.msra.mxu0 0.0
    %3648 = vmatprep.subr.mxu0 0.0
    %3649 = vmatpush1.msra.mxu0 0.0
    %3650 = vmatprep.subr.mxu0 0.0
    %3651 = vmatpush1.msra.mxu0 0.0
    %3652 = vmatprep.subr.mxu0 0.0
    %3653 = vmatpush1.msra.mxu0 0.0
    %3654 = vmatprep.subr.mxu0 0.0
    %3655 = vmatpush1.msra.mxu0 0.0
    %3656 = vmatprep.subr.mxu0 0.0
    %3657 = vmatpush1.msra.mxu0 0.0
    %3658 = vmatprep.subr.mxu0 0.0
    %3659 = vmatpush1.msra.mxu0 0.0
    %3660 = vmatprep.subr.mxu0 0.0
    %3661 = vmatpush1.msra.mxu0 0.0
    %3662 = vmatprep.subr.mxu0 0.0
    %3663 = vmatpush1.msra.mxu0 0.0
    %3664 = vmatprep.subr.mxu0 0.0
    %3665 = vmatpush1.msra.mxu0 0.0
    %3666 = vmatprep.subr.mxu0 0.0
    %3667 = vmatpush1.msra.mxu0 0.0
    %3668 = vmatprep.subr.mxu0 0.0
    %3669 = vmatpush1.msra.mxu0 0.0
    %3670 = vmatprep.subr.mxu0 0.0
    %3671 = vmatpush1.msra.mxu0 0.0
    %3672 = vmatprep.subr.mxu0 0.0
    %3673 = vmatpush1.msra.mxu0 0.0
    %3674 = vmatprep.subr.mxu0 0.0
    %3675 = vmatpush1.msra.mxu0 0.0
    %3676 = vmatprep.subr.mxu0 0.0
    %3677 = vmatpush1.msra.mxu0 0.0
    %3678 = vmatprep.subr.mxu0 0.0
    %3679 = vmatpush1.msra.mxu0 0.0
    %3680 = vmatprep.subr.mxu0 0.0
    %3681 = vmatpush1.msra.mxu0 0.0
    %3682 = vmatprep.subr.mxu0 0.0
    %3683 = vmatpush1.msra.mxu0 0.0
    %3684 = vmatprep.subr.mxu0 0.0
    %3685 = vmatpush1.msra.mxu0 0.0
    %3686 = vmatprep.subr.mxu0 0.0
    %3687 = vmatpush1.msra.mxu0 0.0
    %3688 = vmatprep.mubr.f32.mxu0 0.0
    %v3689 = vand.u32 %v2556, 4294901760
    %3690 = vmatmul.mubr.f32.gmra.mrb[0].mxu0 %v3689
    %v3691 = vpop.f32.mrb[0].mxu0
    %v3692 = vadd.f32 %v3523, %v3691
    %v3693 = vpop.f32.mrb[0].mxu0
    %3694 = vmatprep.mubr.f32.mxu0 0.0
    %v3695 = vand.u32 %v2559, 4294901760
    %3696 = vmatmul.mubr.f32.gmra.mrb[0].mxu0 %v3695
    %v3697 = vpop.f32.mrb[0].mxu0
    %v3698 = vadd.f32 %v3529, %v3697
    %v3699 = vpop.f32.mrb[0].mxu0
    %3700 = vmatprep.mubr.f32.mxu0 0.0
    %v3701 = vand.u32 %v2562, 4294901760
    %3702 = vmatmul.mubr.f32.gmra.mrb[0].mxu0 %v3701
    %v3703 = vpop.f32.mrb[0].mxu0
    %v3704 = vadd.f32 %v3535, %v3703
    %v3705 = vpop.f32.mrb[0].mxu0
    %3706 = vmatprep.mubr.f32.mxu0 0.0
    %v3707 = vand.u32 %v2565, 4294901760
    %3708 = vmatmul.mubr.f32.gmra.mrb[0].mxu0 %v3707
    %v3709 = vpop.f32.mrb[0].mxu0
    %v3710 = vadd.f32 %v3541, %v3709
    %v3711 = vpop.f32.mrb[0].mxu0
    %3712 = vmatprep.mubr.f32.mxu0 0.0
    %v3713 = vand.u32 %v2568, 4294901760
    %3714 = vmatmul.mubr.f32.gmra.mrb[0].mxu0 %v3713
    %v3715 = vpop.f32.mrb[0].mxu0
    %v3716 = vadd.f32 %v3547, %v3715
    %v3717 = vpop.f32.mrb[0].mxu0
    %3718 = vmatprep.mubr.f32.mxu0 0.0
    %v3719 = vand.u32 %v2571, 4294901760
    %3720 = vmatmul.mubr.f32.gmra.mrb[0].mxu0 %v3719
    %v3721 = vpop.f32.mrb[0].mxu0
    %v3722 = vadd.f32 %v3553, %v3721
    %v3723 = vpop.f32.mrb[0].mxu0
    %3724 = vmatprep.mubr.f32.mxu0 0.0
    %v3725 = vand.u32 %v2574, 4294901760
    %3726 = vmatmul.mubr.f32.gmra.mrb[0].mxu0 %v3725
    %v3727 = vpop.f32.mrb[0].mxu0
    %v3728 = vadd.f32 %v3559, %v3727
    %v3729 = vpop.f32.mrb[0].mxu0
    %3730 = vmatprep.mubr.f32.mxu0 0.0
    %v3731 = vand.u32 %v2577, 4294901760
    %3732 = vmatmul.mubr.f32.gmra.mrb[0].mxu0 %v3731
    %v3733 = vpop.f32.mrb[0].mxu0
    %v3734 = vadd.f32 %v3565, %v3733
    %v3735 = vpop.f32.mrb[0].mxu0
    %3736 = vmatprep.mubr.f32.mxu0 0.0
    %v3737 = vand.u32 %v2580, 4294901760
    %3738 = vmatmul.mubr.f32.gmra.mrb[0].mxu0 %v3737
    %v3739 = vpop.f32.mrb[0].mxu0
    %v3740 = vadd.f32 %v3571, %v3739
    %v3741 = vpop.f32.mrb[0].mxu0
    %3742 = vmatprep.mubr.f32.mxu0 0.0
    %v3743 = vand.u32 %v2583, 4294901760
    %3744 = vmatmul.mubr.f32.gmra.mrb[0].mxu0 %v3743
    %v3745 = vpop.f32.mrb[0].mxu0
    %v3746 = vadd.f32 %v3577, %v3745
    %v3747 = vpop.f32.mrb[0].mxu0
    %3748 = vmatprep.mubr.f32.mxu0 0.0
    %v3749 = vand.u32 %v2586, 4294901760
    %3750 = vmatmul.mubr.f32.gmra.mrb[0].mxu0 %v3749
    %v3751 = vpop.f32.mrb[0].mxu0
    %v3752 = vadd.f32 %v3583, %v3751
    %v3753 = vpop.f32.mrb[0].mxu0
    %3754 = vmatprep.mubr.f32.mxu0 0.0
    %v3755 = vand.u32 %v2589, 4294901760
    %3756 = vmatmul.mubr.f32.gmra.mrb[0].mxu0 %v3755
    %v3757 = vpop.f32.mrb[0].mxu0
    %v3758 = vadd.f32 %v3589, %v3757
    %v3759 = vpop.f32.mrb[0].mxu0
    %3760 = vmatprep.mubr.f32.mxu0 0.0
    %v3761 = vand.u32 %v2592, 4294901760
    %3762 = vmatmul.mubr.f32.gmra.mrb[0].mxu0 %v3761
    %v3763 = vpop.f32.mrb[0].mxu0
    %v3764 = vadd.f32 %v3595, %v3763
    %v3765 = vpop.f32.mrb[0].mxu0
    %3766 = vmatprep.mubr.f32.mxu0 0.0
    %v3767 = vand.u32 %v2595, 4294901760
    %3768 = vmatmul.mubr.f32.gmra.mrb[0].mxu0 %v3767
    %v3769 = vpop.f32.mrb[0].mxu0
    %v3770 = vadd.f32 %v3601, %v3769
    %v3771 = vpop.f32.mrb[0].mxu0
    %3772 = vmatprep.mubr.f32.mxu0 0.0
    %v3773 = vand.u32 %v2598, 4294901760
    %3774 = vmatmul.mubr.f32.gmra.mrb[0].mxu0 %v3773
    %v3775 = vpop.f32.mrb[0].mxu0
    %v3776 = vadd.f32 %v3607, %v3775
    %v3777 = vpop.f32.mrb[0].mxu0
    %3778 = vmatprep.mubr.f32.mxu0 0.0
    %v3779 = vand.u32 %v2601, 4294901760
    %3780 = vmatmul.mubr.f32.gmra.mrb[0].mxu0 %v3779
    %v3781 = vpop.f32.mrb[0].mxu0
    %v3782 = vadd.f32 %v3613, %v3781
    %v3783 = vpop.f32.mrb[0].mxu0
    %3784 = vdwg.mxu0
    %v3785 = vmax.f32 %v3692, 0.0
    %v3786 = vmax.f32 %v3698, 0.0
    %v3787 = vmax.f32 %v3704, 0.0
    %v3788 = vmax.f32 %v3710, 0.0
    %v3789 = vmax.f32 %v3716, 0.0
    %v3790 = vmax.f32 %v3722, 0.0
    %v3791 = vmax.f32 %v3728, 0.0
    %v3792 = vmax.f32 %v3734, 0.0
    %v3793 = vmax.f32 %v3740, 0.0
    %v3794 = vmax.f32 %v3746, 0.0
    %v3795 = vmax.f32 %v3752, 0.0
    %v3796 = vmax.f32 %v3758, 0.0
    %v3797 = vmax.f32 %v3764, 0.0
    %v3798 = vmax.f32 %v3770, 0.0
    %v3799 = vmax.f32 %v3776, 0.0
    %v3800 = vmax.f32 %v3782, 0.0
    %v3801 = vld [vmem:[%s7] sm:$0xff]
    %v3802 = vld [vmem:[%s7 + $0x8] sm:$0xff]
    %v3803 = vld [vmem:[%s8] sm:$0xff]
    %v3804 = vld [vmem:[%s8 + $0x8] sm:$0xff]
    %3806 = vset.pattern.permute.xlu0 0
    %3807 = vperm.xlu0 %3806, %v3803
    %v3808 = vpop.permute.xlu0 %3807
    %3811 = vset.pattern.permute.xlu0 0
    %3812 = vperm.xlu0 %3811, %v3804
    %v3813 = vpop.permute.xlu0 %3812
    %v3816 = vsel %vm1293, %v3801, 0
    %v3819 = vsel %vm1293, %v3802, 0
    %v3822 = vsel %vm1293, %v3785, 0
    %v3825 = vsel %vm1293, %v3786, 0
    %v3828 = vsel %vm1293, %v3787, 0
    %v3831 = vsel %vm1293, %v3788, 0
    %v3834 = vsel %vm1293, %v3789, 0
    %v3837 = vsel %vm1293, %v3790, 0
    %v3840 = vsel %vm1293, %v3791, 0
    %v3843 = vsel %vm1293, %v3792, 0
    %v3846 = vsel %vm1293, %v3793, 0
    %v3849 = vsel %vm1293, %v3794, 0
    %v3852 = vsel %vm1293, %v3795, 0
    %v3855 = vsel %vm1293, %v3796, 0
    %v3858 = vsel %vm1293, %v3797, 0
    %v3861 = vsel %vm1293, %v3798, 0
    %v3864 = vsel %vm1293, %v3799, 0
    %v3867 = vsel %vm1293, %v3800, 0
    %3869 = vmatprep.subr.mxu0 0.0
    %v3870 = vand.u32 %v3822, 4294901760
    %3871 = vmatpush1.xpose.msra.mxu0 %v3870
    %3872 = vmatprep.subr.mxu0 0.0
    %v3873 = vand.u32 %v3825, 4294901760
    %3874 = vmatpush1.xpose.msra.mxu0 %v3873
    %3875 = vmatprep.subr.mxu0 0.0
    %v3876 = vand.u32 %v3828, 4294901760
    %3877 = vmatpush1.xpose.msra.mxu0 %v3876
    %3878 = vmatprep.subr.mxu0 0.0
    %v3879 = vand.u32 %v3831, 4294901760
    %3880 = vmatpush1.xpose.msra.mxu0 %v3879
    %3881 = vmatprep.subr.mxu0 0.0
    %v3882 = vand.u32 %v3834, 4294901760
    %3883 = vmatpush1.xpose.msra.mxu0 %v3882
    %3884 = vmatprep.subr.mxu0 0.0
    %v3885 = vand.u32 %v3837, 4294901760
    %3886 = vmatpush1.xpose.msra.mxu0 %v3885
    %3887 = vmatprep.subr.mxu0 0.0
    %v3888 = vand.u32 %v3840, 4294901760
    %3889 = vmatpush1.xpose.msra.mxu0 %v3888
    %3890 = vmatprep.subr.mxu0 0.0
    %v3891 = vand.u32 %v3843, 4294901760
    %3892 = vmatpush1.xpose.msra.mxu0 %v3891
    %3893 = vmatprep.subr.mxu0 0.0
    %v3894 = vand.u32 %v3846, 4294901760
    %3895 = vmatpush1.xpose.msra.mxu0 %v3894
    %3896 = vmatprep.subr.mxu0 0.0
    %v3897 = vand.u32 %v3849, 4294901760
    %3898 = vmatpush1.xpose.msra.mxu0 %v3897
    %3899 = vmatprep.subr.mxu0 0.0
    %v3900 = vand.u32 %v3852, 4294901760
    %3901 = vmatpush1.xpose.msra.mxu0 %v3900
    %3902 = vmatprep.subr.mxu0 0.0
    %v3903 = vand.u32 %v3855, 4294901760
    %3904 = vmatpush1.xpose.msra.mxu0 %v3903
    %3905 = vmatprep.subr.mxu0 0.0
    %v3906 = vand.u32 %v3858, 4294901760
    %3907 = vmatpush1.xpose.msra.mxu0 %v3906
    %3908 = vmatprep.subr.mxu0 0.0
    %v3909 = vand.u32 %v3861, 4294901760
    %3910 = vmatpush1.xpose.msra.mxu0 %v3909
    %3911 = vmatprep.subr.mxu0 0.0
    %v3912 = vand.u32 %v3864, 4294901760
    %3913 = vmatpush1.xpose.msra.mxu0 %v3912
    %3914 = vmatprep.subr.mxu0 0.0
    %v3915 = vand.u32 %v3867, 4294901760
    %3916 = vmatpush1.xpose.msra.mxu0 %v3915
    %3917 = vmatprep.subr.mxu0 0.0
    %3918 = vmatpush1.xpose.msra.mxu0 0.0
    %3919 = vmatprep.subr.mxu0 0.0
    %3920 = vmatpush1.xpose.msra.mxu0 0.0
    %3921 = vmatprep.subr.mxu0 0.0
    %3922 = vmatpush1.xpose.msra.mxu0 0.0
    %3923 = vmatprep.subr.mxu0 0.0
    %3924 = vmatpush1.xpose.msra.mxu0 0.0
    %3925 = vmatprep.subr.mxu0 0.0
    %3926 = vmatpush1.xpose.msra.mxu0 0.0
    %3927 = vmatprep.subr.mxu0 0.0
    %3928 = vmatpush1.xpose.msra.mxu0 0.0
    %3929 = vmatprep.subr.mxu0 0.0
    %3930 = vmatpush1.xpose.msra.mxu0 0.0
    %3931 = vmatprep.subr.mxu0 0.0
    %3932 = vmatpush1.xpose.msra.mxu0 0.0
    %3933 = vmatprep.subr.mxu0 0.0
    %3934 = vmatpush1.xpose.msra.mxu0 0.0
    %3935 = vmatprep.subr.mxu0 0.0
    %3936 = vmatpush1.xpose.msra.mxu0 0.0
    %3937 = vmatprep.subr.mxu0 0.0
    %3938 = vmatpush1.xpose.msra.mxu0 0.0
    %3939 = vmatprep.subr.mxu0 0.0
    %3940 = vmatpush1.xpose.msra.mxu0 0.0
    %3941 = vmatprep.subr.mxu0 0.0
    %3942 = vmatpush1.xpose.msra.mxu0 0.0
    %3943 = vmatprep.subr.mxu0 0.0
    %3944 = vmatpush1.xpose.msra.mxu0 0.0
    %3945 = vmatprep.subr.mxu0 0.0
    %3946 = vmatpush1.xpose.msra.mxu0 0.0
    %3947 = vmatprep.subr.mxu0 0.0
    %3948 = vmatpush1.xpose.msra.mxu0 0.0
    %3949 = vmatprep.mubr.f32.mxu0 0.0
    %v3950 = vand.u32 %v3816, 4294901760
    %v3951 = vsub.f32 %v3816, %v3950
    %v3952 = vand.u32 %v3951, 4294901760
    %v3953 = vsub.f32 %v3951, %v3952
    %v3954 = vand.u32 %v3953, 4294901760
    %3955 = vmatmul.mubr.f32.gmra.mrb[0].mxu0 %v3954
    %v3956 = vpop.f32.mrb[0].mxu0
    %v3957 = vadd.f32 %v3808, %v3956
    %v3958 = vpop.f32.mrb[0].mxu0
    %3959 = vmatprep.mubr.f32.mxu0 0.0
    %v3960 = vand.u32 %v3819, 4294901760
    %v3961 = vsub.f32 %v3819, %v3960
    %v3962 = vand.u32 %v3961, 4294901760
    %v3963 = vsub.f32 %v3961, %v3962
    %v3964 = vand.u32 %v3963, 4294901760
    %3965 = vmatmul.mubr.f32.gmra.mrb[0].mxu0 %v3964
    %v3966 = vpop.f32.mrb[0].mxu0
    %v3967 = vadd.f32 %v3813, %v3966
    %v3968 = vpop.f32.mrb[0].mxu0
    %3969 = vdwg.mxu0
    %3970 = vmatprep.subr.mxu0 0.0
    %v3971 = vand.u32 %v3822, 4294901760
    %v3972 = vsub.f32 %v3822, %v3971
    %v3973 = vand.u32 %v3972, 4294901760
    %v3974 = vsub.f32 %v3972, %v3973
    %v3975 = vand.u32 %v3974, 4294901760
    %3976 = vmatpush1.xpose.msra.mxu0 %v3975
    %3977 = vmatprep.subr.mxu0 0.0
    %v3978 = vand.u32 %v3825, 4294901760
    %v3979 = vsub.f32 %v3825, %v3978
    %v3980 = vand.u32 %v3979, 4294901760
    %v3981 = vsub.f32 %v3979, %v3980
    %v3982 = vand.u32 %v3981, 4294901760
    %3983 = vmatpush1.xpose.msra.mxu0 %v3982
    %3984 = vmatprep.subr.mxu0 0.0
    %v3985 = vand.u32 %v3828, 4294901760
    %v3986 = vsub.f32 %v3828, %v3985
    %v3987 = vand.u32 %v3986, 4294901760
    %v3988 = vsub.f32 %v3986, %v3987
    %v3989 = vand.u32 %v3988, 4294901760
    %3990 = vmatpush1.xpose.msra.mxu0 %v3989
    %3991 = vmatprep.subr.mxu0 0.0
    %v3992 = vand.u32 %v3831, 4294901760
    %v3993 = vsub.f32 %v3831, %v3992
    %v3994 = vand.u32 %v3993, 4294901760
    %v3995 = vsub.f32 %v3993, %v3994
    %v3996 = vand.u32 %v3995, 4294901760
    %3997 = vmatpush1.xpose.msra.mxu0 %v3996
    %3998 = vmatprep.subr.mxu0 0.0
    %v3999 = vand.u32 %v3834, 4294901760
    %v4000 = vsub.f32 %v3834, %v3999
    %v4001 = vand.u32 %v4000, 4294901760
    %v4002 = vsub.f32 %v4000, %v4001
    %v4003 = vand.u32 %v4002, 4294901760
    %4004 = vmatpush1.xpose.msra.mxu0 %v4003
    %4005 = vmatprep.subr.mxu0 0.0
    %v4006 = vand.u32 %v3837, 4294901760
    %v4007 = vsub.f32 %v3837, %v4006
    %v4008 = vand.u32 %v4007, 4294901760
    %v4009 = vsub.f32 %v4007, %v4008
    %v4010 = vand.u32 %v4009, 4294901760
    %4011 = vmatpush1.xpose.msra.mxu0 %v4010
    %4012 = vmatprep.subr.mxu0 0.0
    %v4013 = vand.u32 %v3840, 4294901760
    %v4014 = vsub.f32 %v3840, %v4013
    %v4015 = vand.u32 %v4014, 4294901760
    %v4016 = vsub.f32 %v4014, %v4015
    %v4017 = vand.u32 %v4016, 4294901760
    %4018 = vmatpush1.xpose.msra.mxu0 %v4017
    %4019 = vmatprep.subr.mxu0 0.0
    %v4020 = vand.u32 %v3843, 4294901760
    %v4021 = vsub.f32 %v3843, %v4020
    %v4022 = vand.u32 %v4021, 4294901760
    %v4023 = vsub.f32 %v4021, %v4022
    %v4024 = vand.u32 %v4023, 4294901760
    %4025 = vmatpush1.xpose.msra.mxu0 %v4024
    %4026 = vmatprep.subr.mxu0 0.0
    %v4027 = vand.u32 %v3846, 4294901760
    %v4028 = vsub.f32 %v3846, %v4027
    %v4029 = vand.u32 %v4028, 4294901760
    %v4030 = vsub.f32 %v4028, %v4029
    %v4031 = vand.u32 %v4030, 4294901760
    %4032 = vmatpush1.xpose.msra.mxu0 %v4031
    %4033 = vmatprep.subr.mxu0 0.0
    %v4034 = vand.u32 %v3849, 4294901760
    %v4035 = vsub.f32 %v3849, %v4034
    %v4036 = vand.u32 %v4035, 4294901760
    %v4037 = vsub.f32 %v4035, %v4036
    %v4038 = vand.u32 %v4037, 4294901760
    %4039 = vmatpush1.xpose.msra.mxu0 %v4038
    %4040 = vmatprep.subr.mxu0 0.0
    %v4041 = vand.u32 %v3852, 4294901760
    %v4042 = vsub.f32 %v3852, %v4041
    %v4043 = vand.u32 %v4042, 4294901760
    %v4044 = vsub.f32 %v4042, %v4043
    %v4045 = vand.u32 %v4044, 4294901760
    %4046 = vmatpush1.xpose.msra.mxu0 %v4045
    %4047 = vmatprep.subr.mxu0 0.0
    %v4048 = vand.u32 %v3855, 4294901760
    %v4049 = vsub.f32 %v3855, %v4048
    %v4050 = vand.u32 %v4049, 4294901760
    %v4051 = vsub.f32 %v4049, %v4050
    %v4052 = vand.u32 %v4051, 4294901760
    %4053 = vmatpush1.xpose.msra.mxu0 %v4052
    %4054 = vmatprep.subr.mxu0 0.0
    %v4055 = vand.u32 %v3858, 4294901760
    %v4056 = vsub.f32 %v3858, %v4055
    %v4057 = vand.u32 %v4056, 4294901760
    %v4058 = vsub.f32 %v4056, %v4057
    %v4059 = vand.u32 %v4058, 4294901760
    %4060 = vmatpush1.xpose.msra.mxu0 %v4059
    %4061 = vmatprep.subr.mxu0 0.0
    %v4062 = vand.u32 %v3861, 4294901760
    %v4063 = vsub.f32 %v3861, %v4062
    %v4064 = vand.u32 %v4063, 4294901760
    %v4065 = vsub.f32 %v4063, %v4064
    %v4066 = vand.u32 %v4065, 4294901760
    %4067 = vmatpush1.xpose.msra.mxu0 %v4066
    %4068 = vmatprep.subr.mxu0 0.0
    %v4069 = vand.u32 %v3864, 4294901760
    %v4070 = vsub.f32 %v3864, %v4069
    %v4071 = vand.u32 %v4070, 4294901760
    %v4072 = vsub.f32 %v4070, %v4071
    %v4073 = vand.u32 %v4072, 4294901760
    %4074 = vmatpush1.xpose.msra.mxu0 %v4073
    %4075 = vmatprep.subr.mxu0 0.0
    %v4076 = vand.u32 %v3867, 4294901760
    %v4077 = vsub.f32 %v3867, %v4076
    %v4078 = vand.u32 %v4077, 4294901760
    %v4079 = vsub.f32 %v4077, %v4078
    %v4080 = vand.u32 %v4079, 4294901760
    %4081 = vmatpush1.xpose.msra.mxu0 %v4080
    %4082 = vmatprep.subr.mxu0 0.0
    %4083 = vmatpush1.xpose.msra.mxu0 0.0
    %4084 = vmatprep.subr.mxu0 0.0
    %4085 = vmatpush1.xpose.msra.mxu0 0.0
    %4086 = vmatprep.subr.mxu0 0.0
    %4087 = vmatpush1.xpose.msra.mxu0 0.0
    %4088 = vmatprep.subr.mxu0 0.0
    %4089 = vmatpush1.xpose.msra.mxu0 0.0
    %4090 = vmatprep.subr.mxu0 0.0
    %4091 = vmatpush1.xpose.msra.mxu0 0.0
    %4092 = vmatprep.subr.mxu0 0.0
    %4093 = vmatpush1.xpose.msra.mxu0 0.0
    %4094 = vmatprep.subr.mxu0 0.0
    %4095 = vmatpush1.xpose.msra.mxu0 0.0
    %4096 = vmatprep.subr.mxu0 0.0
    %4097 = vmatpush1.xpose.msra.mxu0 0.0
    %4098 = vmatprep.subr.mxu0 0.0
    %4099 = vmatpush1.xpose.msra.mxu0 0.0
    %4100 = vmatprep.subr.mxu0 0.0
    %4101 = vmatpush1.xpose.msra.mxu0 0.0
    %4102 = vmatprep.subr.mxu0 0.0
    %4103 = vmatpush1.xpose.msra.mxu0 0.0
    %4104 = vmatprep.subr.mxu0 0.0
    %4105 = vmatpush1.xpose.msra.mxu0 0.0
    %4106 = vmatprep.subr.mxu0 0.0
    %4107 = vmatpush1.xpose.msra.mxu0 0.0
    %4108 = vmatprep.subr.mxu0 0.0
    %4109 = vmatpush1.xpose.msra.mxu0 0.0
    %4110 = vmatprep.subr.mxu0 0.0
    %4111 = vmatpush1.xpose.msra.mxu0 0.0
    %4112 = vmatprep.subr.mxu0 0.0
    %4113 = vmatpush1.xpose.msra.mxu0 0.0
    %4114 = vmatprep.mubr.f32.mxu0 0.0
    %v4115 = vand.u32 %v3816, 4294901760
    %4116 = vmatmul.mubr.f32.gmra.mrb[0].mxu0 %v4115
    %v4117 = vpop.f32.mrb[0].mxu0
    %v4118 = vadd.f32 %v3957, %v4117
    %v4119 = vpop.f32.mrb[0].mxu0
    %4120 = vmatprep.mubr.f32.mxu0 0.0
    %v4121 = vand.u32 %v3819, 4294901760
    %4122 = vmatmul.mubr.f32.gmra.mrb[0].mxu0 %v4121
    %v4123 = vpop.f32.mrb[0].mxu0
    %v4124 = vadd.f32 %v3967, %v4123
    %v4125 = vpop.f32.mrb[0].mxu0
    %4126 = vdwg.mxu0
    %4127 = vmatprep.subr.mxu0 0.0
    %v4128 = vand.u32 %v3822, 4294901760
    %v4129 = vsub.f32 %v3822, %v4128
    %4130 = vmatpush1.xpose.msra.mxu0 %v4129
    %4131 = vmatprep.subr.mxu0 0.0
    %v4132 = vand.u32 %v3825, 4294901760
    %v4133 = vsub.f32 %v3825, %v4132
    %4134 = vmatpush1.xpose.msra.mxu0 %v4133
    %4135 = vmatprep.subr.mxu0 0.0
    %v4136 = vand.u32 %v3828, 4294901760
    %v4137 = vsub.f32 %v3828, %v4136
    %4138 = vmatpush1.xpose.msra.mxu0 %v4137
    %4139 = vmatprep.subr.mxu0 0.0
    %v4140 = vand.u32 %v3831, 4294901760
    %v4141 = vsub.f32 %v3831, %v4140
    %4142 = vmatpush1.xpose.msra.mxu0 %v4141
    %4143 = vmatprep.subr.mxu0 0.0
    %v4144 = vand.u32 %v3834, 4294901760
    %v4145 = vsub.f32 %v3834, %v4144
    %4146 = vmatpush1.xpose.msra.mxu0 %v4145
    %4147 = vmatprep.subr.mxu0 0.0
    %v4148 = vand.u32 %v3837, 4294901760
    %v4149 = vsub.f32 %v3837, %v4148
    %4150 = vmatpush1.xpose.msra.mxu0 %v4149
    %4151 = vmatprep.subr.mxu0 0.0
    %v4152 = vand.u32 %v3840, 4294901760
    %v4153 = vsub.f32 %v3840, %v4152
    %4154 = vmatpush1.xpose.msra.mxu0 %v4153
    %4155 = vmatprep.subr.mxu0 0.0
    %v4156 = vand.u32 %v3843, 4294901760
    %v4157 = vsub.f32 %v3843, %v4156
    %4158 = vmatpush1.xpose.msra.mxu0 %v4157
    %4159 = vmatprep.subr.mxu0 0.0
    %v4160 = vand.u32 %v3846, 4294901760
    %v4161 = vsub.f32 %v3846, %v4160
    %4162 = vmatpush1.xpose.msra.mxu0 %v4161
    %4163 = vmatprep.subr.mxu0 0.0
    %v4164 = vand.u32 %v3849, 4294901760
    %v4165 = vsub.f32 %v3849, %v4164
    %4166 = vmatpush1.xpose.msra.mxu0 %v4165
    %4167 = vmatprep.subr.mxu0 0.0
    %v4168 = vand.u32 %v3852, 4294901760
    %v4169 = vsub.f32 %v3852, %v4168
    %4170 = vmatpush1.xpose.msra.mxu0 %v4169
    %4171 = vmatprep.subr.mxu0 0.0
    %v4172 = vand.u32 %v3855, 4294901760
    %v4173 = vsub.f32 %v3855, %v4172
    %4174 = vmatpush1.xpose.msra.mxu0 %v4173
    %4175 = vmatprep.subr.mxu0 0.0
    %v4176 = vand.u32 %v3858, 4294901760
    %v4177 = vsub.f32 %v3858, %v4176
    %4178 = vmatpush1.xpose.msra.mxu0 %v4177
    %4179 = vmatprep.subr.mxu0 0.0
    %v4180 = vand.u32 %v3861, 4294901760
    %v4181 = vsub.f32 %v3861, %v4180
    %4182 = vmatpush1.xpose.msra.mxu0 %v4181
    %4183 = vmatprep.subr.mxu0 0.0
    %v4184 = vand.u32 %v3864, 4294901760
    %v4185 = vsub.f32 %v3864, %v4184
    %4186 = vmatpush1.xpose.msra.mxu0 %v4185
    %4187 = vmatprep.subr.mxu0 0.0
    %v4188 = vand.u32 %v3867, 4294901760
    %v4189 = vsub.f32 %v3867, %v4188
    %4190 = vmatpush1.xpose.msra.mxu0 %v4189
    %4191 = vmatprep.subr.mxu0 0.0
    %4192 = vmatpush1.xpose.msra.mxu0 0.0
    %4193 = vmatprep.subr.mxu0 0.0
    %4194 = vmatpush1.xpose.msra.mxu0 0.0
    %4195 = vmatprep.subr.mxu0 0.0
    %4196 = vmatpush1.xpose.msra.mxu0 0.0
    %4197 = vmatprep.subr.mxu0 0.0
    %4198 = vmatpush1.xpose.msra.mxu0 0.0
    %4199 = vmatprep.subr.mxu0 0.0
    %4200 = vmatpush1.xpose.msra.mxu0 0.0
    %4201 = vmatprep.subr.mxu0 0.0
    %4202 = vmatpush1.xpose.msra.mxu0 0.0
    %4203 = vmatprep.subr.mxu0 0.0
    %4204 = vmatpush1.xpose.msra.mxu0 0.0
    %4205 = vmatprep.subr.mxu0 0.0
    %4206 = vmatpush1.xpose.msra.mxu0 0.0
    %4207 = vmatprep.subr.mxu0 0.0
    %4208 = vmatpush1.xpose.msra.mxu0 0.0
    %4209 = vmatprep.subr.mxu0 0.0
    %4210 = vmatpush1.xpose.msra.mxu0 0.0
    %4211 = vmatprep.subr.mxu0 0.0
    %4212 = vmatpush1.xpose.msra.mxu0 0.0
    %4213 = vmatprep.subr.mxu0 0.0
    %4214 = vmatpush1.xpose.msra.mxu0 0.0
    %4215 = vmatprep.subr.mxu0 0.0
    %4216 = vmatpush1.xpose.msra.mxu0 0.0
    %4217 = vmatprep.subr.mxu0 0.0
    %4218 = vmatpush1.xpose.msra.mxu0 0.0
    %4219 = vmatprep.subr.mxu0 0.0
    %4220 = vmatpush1.xpose.msra.mxu0 0.0
    %4221 = vmatprep.subr.mxu0 0.0
    %4222 = vmatpush1.xpose.msra.mxu0 0.0
    %4223 = vmatprep.mubr.f32.mxu0 0.0
    %v4224 = vand.u32 %v3816, 4294901760
    %v4225 = vsub.f32 %v3816, %v4224
    %4226 = vmatmul.mubr.f32.gmra.mrb[0].mxu0 %v4225
    %v4227 = vpop.f32.mrb[0].mxu0
    %v4228 = vadd.f32 %v4118, %v4227
    %v4229 = vpop.f32.mrb[0].mxu0
    %4230 = vmatprep.mubr.f32.mxu0 0.0
    %v4231 = vand.u32 %v3819, 4294901760
    %v4232 = vsub.f32 %v3819, %v4231
    %4233 = vmatmul.mubr.f32.gmra.mrb[0].mxu0 %v4232
    %v4234 = vpop.f32.mrb[0].mxu0
    %v4235 = vadd.f32 %v4124, %v4234
    %v4236 = vpop.f32.mrb[0].mxu0
    %4237 = vdwg.mxu0
    %4238 = vmatprep.subr.mxu0 0.0
    %v4239 = vand.u32 %v3822, 4294901760
    %4240 = vmatpush1.xpose.msra.mxu0 %v4239
    %4241 = vmatprep.subr.mxu0 0.0
    %v4242 = vand.u32 %v3825, 4294901760
    %4243 = vmatpush1.xpose.msra.mxu0 %v4242
    %4244 = vmatprep.subr.mxu0 0.0
    %v4245 = vand.u32 %v3828, 4294901760
    %4246 = vmatpush1.xpose.msra.mxu0 %v4245
    %4247 = vmatprep.subr.mxu0 0.0
    %v4248 = vand.u32 %v3831, 4294901760
    %4249 = vmatpush1.xpose.msra.mxu0 %v4248
    %4250 = vmatprep.subr.mxu0 0.0
    %v4251 = vand.u32 %v3834, 4294901760
    %4252 = vmatpush1.xpose.msra.mxu0 %v4251
    %4253 = vmatprep.subr.mxu0 0.0
    %v4254 = vand.u32 %v3837, 4294901760
    %4255 = vmatpush1.xpose.msra.mxu0 %v4254
    %4256 = vmatprep.subr.mxu0 0.0
    %v4257 = vand.u32 %v3840, 4294901760
    %4258 = vmatpush1.xpose.msra.mxu0 %v4257
    %4259 = vmatprep.subr.mxu0 0.0
    %v4260 = vand.u32 %v3843, 4294901760
    %4261 = vmatpush1.xpose.msra.mxu0 %v4260
    %4262 = vmatprep.subr.mxu0 0.0
    %v4263 = vand.u32 %v3846, 4294901760
    %4264 = vmatpush1.xpose.msra.mxu0 %v4263
    %4265 = vmatprep.subr.mxu0 0.0
    %v4266 = vand.u32 %v3849, 4294901760
    %4267 = vmatpush1.xpose.msra.mxu0 %v4266
    %4268 = vmatprep.subr.mxu0 0.0
    %v4269 = vand.u32 %v3852, 4294901760
    %4270 = vmatpush1.xpose.msra.mxu0 %v4269
    %4271 = vmatprep.subr.mxu0 0.0
    %v4272 = vand.u32 %v3855, 4294901760
    %4273 = vmatpush1.xpose.msra.mxu0 %v4272
    %4274 = vmatprep.subr.mxu0 0.0
    %v4275 = vand.u32 %v3858, 4294901760
    %4276 = vmatpush1.xpose.msra.mxu0 %v4275
    %4277 = vmatprep.subr.mxu0 0.0
    %v4278 = vand.u32 %v3861, 4294901760
    %4279 = vmatpush1.xpose.msra.mxu0 %v4278
    %4280 = vmatprep.subr.mxu0 0.0
    %v4281 = vand.u32 %v3864, 4294901760
    %4282 = vmatpush1.xpose.msra.mxu0 %v4281
    %4283 = vmatprep.subr.mxu0 0.0
    %v4284 = vand.u32 %v3867, 4294901760
    %4285 = vmatpush1.xpose.msra.mxu0 %v4284
    %4286 = vmatprep.subr.mxu0 0.0
    %4287 = vmatpush1.xpose.msra.mxu0 0.0
    %4288 = vmatprep.subr.mxu0 0.0
    %4289 = vmatpush1.xpose.msra.mxu0 0.0
    %4290 = vmatprep.subr.mxu0 0.0
    %4291 = vmatpush1.xpose.msra.mxu0 0.0
    %4292 = vmatprep.subr.mxu0 0.0
    %4293 = vmatpush1.xpose.msra.mxu0 0.0
    %4294 = vmatprep.subr.mxu0 0.0
    %4295 = vmatpush1.xpose.msra.mxu0 0.0
    %4296 = vmatprep.subr.mxu0 0.0
    %4297 = vmatpush1.xpose.msra.mxu0 0.0
    %4298 = vmatprep.subr.mxu0 0.0
    %4299 = vmatpush1.xpose.msra.mxu0 0.0
    %4300 = vmatprep.subr.mxu0 0.0
    %4301 = vmatpush1.xpose.msra.mxu0 0.0
    %4302 = vmatprep.subr.mxu0 0.0
    %4303 = vmatpush1.xpose.msra.mxu0 0.0
    %4304 = vmatprep.subr.mxu0 0.0
    %4305 = vmatpush1.xpose.msra.mxu0 0.0
    %4306 = vmatprep.subr.mxu0 0.0
    %4307 = vmatpush1.xpose.msra.mxu0 0.0
    %4308 = vmatprep.subr.mxu0 0.0
    %4309 = vmatpush1.xpose.msra.mxu0 0.0
    %4310 = vmatprep.subr.mxu0 0.0
    %4311 = vmatpush1.xpose.msra.mxu0 0.0
    %4312 = vmatprep.subr.mxu0 0.0
    %4313 = vmatpush1.xpose.msra.mxu0 0.0
    %4314 = vmatprep.subr.mxu0 0.0
    %4315 = vmatpush1.xpose.msra.mxu0 0.0
    %4316 = vmatprep.subr.mxu0 0.0
    %4317 = vmatpush1.xpose.msra.mxu0 0.0
    %4318 = vmatprep.mubr.f32.mxu0 0.0
    %v4319 = vand.u32 %v3816, 4294901760
    %v4320 = vsub.f32 %v3816, %v4319
    %v4321 = vand.u32 %v4320, 4294901760
    %4322 = vmatmul.mubr.f32.gmra.mrb[0].mxu0 %v4321
    %v4323 = vpop.f32.mrb[0].mxu0
    %v4324 = vadd.f32 %v4228, %v4323
    %v4325 = vpop.f32.mrb[0].mxu0
    %4326 = vmatprep.mubr.f32.mxu0 0.0
    %v4327 = vand.u32 %v3819, 4294901760
    %v4328 = vsub.f32 %v3819, %v4327
    %v4329 = vand.u32 %v4328, 4294901760
    %4330 = vmatmul.mubr.f32.gmra.mrb[0].mxu0 %v4329
    %v4331 = vpop.f32.mrb[0].mxu0
    %v4332 = vadd.f32 %v4235, %v4331
    %v4333 = vpop.f32.mrb[0].mxu0
    %4334 = vdwg.mxu0
    %4335 = vmatprep.subr.mxu0 0.0
    %v4336 = vand.u32 %v3822, 4294901760
    %v4337 = vsub.f32 %v3822, %v4336
    %v4338 = vand.u32 %v4337, 4294901760
    %4339 = vmatpush1.xpose.msra.mxu0 %v4338
    %4340 = vmatprep.subr.mxu0 0.0
    %v4341 = vand.u32 %v3825, 4294901760
    %v4342 = vsub.f32 %v3825, %v4341
    %v4343 = vand.u32 %v4342, 4294901760
    %4344 = vmatpush1.xpose.msra.mxu0 %v4343
    %4345 = vmatprep.subr.mxu0 0.0
    %v4346 = vand.u32 %v3828, 4294901760
    %v4347 = vsub.f32 %v3828, %v4346
    %v4348 = vand.u32 %v4347, 4294901760
    %4349 = vmatpush1.xpose.msra.mxu0 %v4348
    %4350 = vmatprep.subr.mxu0 0.0
    %v4351 = vand.u32 %v3831, 4294901760
    %v4352 = vsub.f32 %v3831, %v4351
    %v4353 = vand.u32 %v4352, 4294901760
    %4354 = vmatpush1.xpose.msra.mxu0 %v4353
    %4355 = vmatprep.subr.mxu0 0.0
    %v4356 = vand.u32 %v3834, 4294901760
    %v4357 = vsub.f32 %v3834, %v4356
    %v4358 = vand.u32 %v4357, 4294901760
    %4359 = vmatpush1.xpose.msra.mxu0 %v4358
    %4360 = vmatprep.subr.mxu0 0.0
    %v4361 = vand.u32 %v3837, 4294901760
    %v4362 = vsub.f32 %v3837, %v4361
    %v4363 = vand.u32 %v4362, 4294901760
    %4364 = vmatpush1.xpose.msra.mxu0 %v4363
    %4365 = vmatprep.subr.mxu0 0.0
    %v4366 = vand.u32 %v3840, 4294901760
    %v4367 = vsub.f32 %v3840, %v4366
    %v4368 = vand.u32 %v4367, 4294901760
    %4369 = vmatpush1.xpose.msra.mxu0 %v4368
    %4370 = vmatprep.subr.mxu0 0.0
    %v4371 = vand.u32 %v3843, 4294901760
    %v4372 = vsub.f32 %v3843, %v4371
    %v4373 = vand.u32 %v4372, 4294901760
    %4374 = vmatpush1.xpose.msra.mxu0 %v4373
    %4375 = vmatprep.subr.mxu0 0.0
    %v4376 = vand.u32 %v3846, 4294901760
    %v4377 = vsub.f32 %v3846, %v4376
    %v4378 = vand.u32 %v4377, 4294901760
    %4379 = vmatpush1.xpose.msra.mxu0 %v4378
    %4380 = vmatprep.subr.mxu0 0.0
    %v4381 = vand.u32 %v3849, 4294901760
    %v4382 = vsub.f32 %v3849, %v4381
    %v4383 = vand.u32 %v4382, 4294901760
    %4384 = vmatpush1.xpose.msra.mxu0 %v4383
    %4385 = vmatprep.subr.mxu0 0.0
    %v4386 = vand.u32 %v3852, 4294901760
    %v4387 = vsub.f32 %v3852, %v4386
    %v4388 = vand.u32 %v4387, 4294901760
    %4389 = vmatpush1.xpose.msra.mxu0 %v4388
    %4390 = vmatprep.subr.mxu0 0.0
    %v4391 = vand.u32 %v3855, 4294901760
    %v4392 = vsub.f32 %v3855, %v4391
    %v4393 = vand.u32 %v4392, 4294901760
    %4394 = vmatpush1.xpose.msra.mxu0 %v4393
    %4395 = vmatprep.subr.mxu0 0.0
    %v4396 = vand.u32 %v3858, 4294901760
    %v4397 = vsub.f32 %v3858, %v4396
    %v4398 = vand.u32 %v4397, 4294901760
    %4399 = vmatpush1.xpose.msra.mxu0 %v4398
    %4400 = vmatprep.subr.mxu0 0.0
    %v4401 = vand.u32 %v3861, 4294901760
    %v4402 = vsub.f32 %v3861, %v4401
    %v4403 = vand.u32 %v4402, 4294901760
    %4404 = vmatpush1.xpose.msra.mxu0 %v4403
    %4405 = vmatprep.subr.mxu0 0.0
    %v4406 = vand.u32 %v3864, 4294901760
    %v4407 = vsub.f32 %v3864, %v4406
    %v4408 = vand.u32 %v4407, 4294901760
    %4409 = vmatpush1.xpose.msra.mxu0 %v4408
    %4410 = vmatprep.subr.mxu0 0.0
    %v4411 = vand.u32 %v3867, 4294901760
    %v4412 = vsub.f32 %v3867, %v4411
    %v4413 = vand.u32 %v4412, 4294901760
    %4414 = vmatpush1.xpose.msra.mxu0 %v4413
    %4415 = vmatprep.subr.mxu0 0.0
    %4416 = vmatpush1.xpose.msra.mxu0 0.0
    %4417 = vmatprep.subr.mxu0 0.0
    %4418 = vmatpush1.xpose.msra.mxu0 0.0
    %4419 = vmatprep.subr.mxu0 0.0
    %4420 = vmatpush1.xpose.msra.mxu0 0.0
    %4421 = vmatprep.subr.mxu0 0.0
    %4422 = vmatpush1.xpose.msra.mxu0 0.0
    %4423 = vmatprep.subr.mxu0 0.0
    %4424 = vmatpush1.xpose.msra.mxu0 0.0
    %4425 = vmatprep.subr.mxu0 0.0
    %4426 = vmatpush1.xpose.msra.mxu0 0.0
    %4427 = vmatprep.subr.mxu0 0.0
    %4428 = vmatpush1.xpose.msra.mxu0 0.0
    %4429 = vmatprep.subr.mxu0 0.0
    %4430 = vmatpush1.xpose.msra.mxu0 0.0
    %4431 = vmatprep.subr.mxu0 0.0
    %4432 = vmatpush1.xpose.msra.mxu0 0.0
    %4433 = vmatprep.subr.mxu0 0.0
    %4434 = vmatpush1.xpose.msra.mxu0 0.0
    %4435 = vmatprep.subr.mxu0 0.0
    %4436 = vmatpush1.xpose.msra.mxu0 0.0
    %4437 = vmatprep.subr.mxu0 0.0
    %4438 = vmatpush1.xpose.msra.mxu0 0.0
    %4439 = vmatprep.subr.mxu0 0.0
    %4440 = vmatpush1.xpose.msra.mxu0 0.0
    %4441 = vmatprep.subr.mxu0 0.0
    %4442 = vmatpush1.xpose.msra.mxu0 0.0
    %4443 = vmatprep.subr.mxu0 0.0
    %4444 = vmatpush1.xpose.msra.mxu0 0.0
    %4445 = vmatprep.subr.mxu0 0.0
    %4446 = vmatpush1.xpose.msra.mxu0 0.0
    %4447 = vmatprep.mubr.f32.mxu0 0.0
    %v4448 = vand.u32 %v3816, 4294901760
    %4449 = vmatmul.mubr.f32.gmra.mrb[0].mxu0 %v4448
    %v4450 = vpop.f32.mrb[0].mxu0
    %v4451 = vadd.f32 %v4324, %v4450
    %v4452 = vpop.f32.mrb[0].mxu0
    %4453 = vmatprep.mubr.f32.mxu0 0.0
    %v4454 = vand.u32 %v3819, 4294901760
    %4455 = vmatmul.mubr.f32.gmra.mrb[0].mxu0 %v4454
    %v4456 = vpop.f32.mrb[0].mxu0
    %v4457 = vadd.f32 %v4332, %v4456
    %v4458 = vpop.f32.mrb[0].mxu0
    %4459 = vdwg.mxu0
    %4460 = vmatprep.subr.mxu0 0.0
    %v4461 = vand.u32 %v3822, 4294901760
    %4462 = vmatpush1.xpose.msra.mxu0 %v4461
    %4463 = vmatprep.subr.mxu0 0.0
    %v4464 = vand.u32 %v3825, 4294901760
    %4465 = vmatpush1.xpose.msra.mxu0 %v4464
    %4466 = vmatprep.subr.mxu0 0.0
    %v4467 = vand.u32 %v3828, 4294901760
    %4468 = vmatpush1.xpose.msra.mxu0 %v4467
    %4469 = vmatprep.subr.mxu0 0.0
    %v4470 = vand.u32 %v3831, 4294901760
    %4471 = vmatpush1.xpose.msra.mxu0 %v4470
    %4472 = vmatprep.subr.mxu0 0.0
    %v4473 = vand.u32 %v3834, 4294901760
    %4474 = vmatpush1.xpose.msra.mxu0 %v4473
    %4475 = vmatprep.subr.mxu0 0.0
    %v4476 = vand.u32 %v3837, 4294901760
    %4477 = vmatpush1.xpose.msra.mxu0 %v4476
    %4478 = vmatprep.subr.mxu0 0.0
    %v4479 = vand.u32 %v3840, 4294901760
    %4480 = vmatpush1.xpose.msra.mxu0 %v4479
    %4481 = vmatprep.subr.mxu0 0.0
    %v4482 = vand.u32 %v3843, 4294901760
    %4483 = vmatpush1.xpose.msra.mxu0 %v4482
    %4484 = vmatprep.subr.mxu0 0.0
    %v4485 = vand.u32 %v3846, 4294901760
    %4486 = vmatpush1.xpose.msra.mxu0 %v4485
    %4487 = vmatprep.subr.mxu0 0.0
    %v4488 = vand.u32 %v3849, 4294901760
    %4489 = vmatpush1.xpose.msra.mxu0 %v4488
    %4490 = vmatprep.subr.mxu0 0.0
    %v4491 = vand.u32 %v3852, 4294901760
    %4492 = vmatpush1.xpose.msra.mxu0 %v4491
    %4493 = vmatprep.subr.mxu0 0.0
    %v4494 = vand.u32 %v3855, 4294901760
    %4495 = vmatpush1.xpose.msra.mxu0 %v4494
    %4496 = vmatprep.subr.mxu0 0.0
    %v4497 = vand.u32 %v3858, 4294901760
    %4498 = vmatpush1.xpose.msra.mxu0 %v4497
    %4499 = vmatprep.subr.mxu0 0.0
    %v4500 = vand.u32 %v3861, 4294901760
    %4501 = vmatpush1.xpose.msra.mxu0 %v4500
    %4502 = vmatprep.subr.mxu0 0.0
    %v4503 = vand.u32 %v3864, 4294901760
    %4504 = vmatpush1.xpose.msra.mxu0 %v4503
    %4505 = vmatprep.subr.mxu0 0.0
    %v4506 = vand.u32 %v3867, 4294901760
    %4507 = vmatpush1.xpose.msra.mxu0 %v4506
    %4508 = vmatprep.subr.mxu0 0.0
    %4509 = vmatpush1.xpose.msra.mxu0 0.0
    %4510 = vmatprep.subr.mxu0 0.0
    %4511 = vmatpush1.xpose.msra.mxu0 0.0
    %4512 = vmatprep.subr.mxu0 0.0
    %4513 = vmatpush1.xpose.msra.mxu0 0.0
    %4514 = vmatprep.subr.mxu0 0.0
    %4515 = vmatpush1.xpose.msra.mxu0 0.0
    %4516 = vmatprep.subr.mxu0 0.0
    %4517 = vmatpush1.xpose.msra.mxu0 0.0
    %4518 = vmatprep.subr.mxu0 0.0
    %4519 = vmatpush1.xpose.msra.mxu0 0.0
    %4520 = vmatprep.subr.mxu0 0.0
    %4521 = vmatpush1.xpose.msra.mxu0 0.0
    %4522 = vmatprep.subr.mxu0 0.0
    %4523 = vmatpush1.xpose.msra.mxu0 0.0
    %4524 = vmatprep.subr.mxu0 0.0
    %4525 = vmatpush1.xpose.msra.mxu0 0.0
    %4526 = vmatprep.subr.mxu0 0.0
    %4527 = vmatpush1.xpose.msra.mxu0 0.0
    %4528 = vmatprep.subr.mxu0 0.0
    %4529 = vmatpush1.xpose.msra.mxu0 0.0
    %4530 = vmatprep.subr.mxu0 0.0
    %4531 = vmatpush1.xpose.msra.mxu0 0.0
    %4532 = vmatprep.subr.mxu0 0.0
    %4533 = vmatpush1.xpose.msra.mxu0 0.0
    %4534 = vmatprep.subr.mxu0 0.0
    %4535 = vmatpush1.xpose.msra.mxu0 0.0
    %4536 = vmatprep.subr.mxu0 0.0
    %4537 = vmatpush1.xpose.msra.mxu0 0.0
    %4538 = vmatprep.subr.mxu0 0.0
    %4539 = vmatpush1.xpose.msra.mxu0 0.0
    %4540 = vmatprep.mubr.f32.mxu0 0.0
    %v4541 = vand.u32 %v3816, 4294901760
    %4542 = vmatmul.mubr.f32.gmra.mrb[0].mxu0 %v4541
    %v4543 = vpop.f32.mrb[0].mxu0
    %v4544 = vadd.f32 %v4451, %v4543
    %v4545 = vpop.f32.mrb[0].mxu0
    %4546 = vmatprep.mubr.f32.mxu0 0.0
    %v4547 = vand.u32 %v3819, 4294901760
    %4548 = vmatmul.mubr.f32.gmra.mrb[0].mxu0 %v4547
    %v4549 = vpop.f32.mrb[0].mxu0
    %v4550 = vadd.f32 %v4457, %v4549
    %v4551 = vpop.f32.mrb[0].mxu0
    %4552 = vdwg.mxu0
    %v4553 = vxor.u32 %v4544, 2147483648
    %v4554 = vxor.u32 %v4550, 2147483648
    %v4555 = vmul.f32 %v4553, 1.442695
    %v4556 = vpow.pop %v4555
    %v4557 = vmul.f32 %v4554, 1.442695
    %v4558 = vpow.pop %v4557
    %v4559 = vadd.f32 %v4556, 1.0
    %v4560 = vadd.f32 %v4558, 1.0
    %v4561 = vrcp.pop %v4559
    %v4562 = vmul.f32 1.0, %v4561
    %v4563 = vrcp.pop %v4560
    %v4564 = vmul.f32 1.0, %v4563
    %4565 = vst [vmem:[%s9] sm:$0xff] %v4562
    %4566 = vst [vmem:[%s9 + $0x8] sm:$0xff] %v4564
    // Predicated region
    $region46: #{mynet_forward.1} parent=1 // pred_check
      _
    $region47: #{mynet_forward.1} parent=1 // pred_check_branch
      %4568 = sbr.rel (0) target = $region49
    $region48: #{mynet_forward.1} parent=1 // pred_region
      _
    $region49: #{mynet_forward.1} parent=1 // pred_fallthru
      _
    // Predicated region
    $region50: #{mynet_forward.1} parent=1 // pred_check
      _
    $region51: #{mynet_forward.1} parent=1 // pred_check_branch
      %4570 = sbr.rel (0) target = $region53
    $region52: #{mynet_forward.1} parent=1 // pred_region
      _
    $region53: #{mynet_forward.1} parent=1 // pred_fallthru
      _
    %4571 = vsyncpa [#allocation3], 1
    %4572 = vsyncpa [#allocation5], 1

</llo_original>
